<compile_context>
chip_gen: v5e
topology: v5e:2x2
jax: 0.10.0
libtpu: 0.0.40
codegen_flags: <defaults>
</compile_context>

<pallas_src>
import functools

import jax
import jax.numpy as jnp
from jax.experimental import pallas as pl
from jax.experimental.pallas import tpu as pltpu


# ----------------------------------------------------------------------------
# Shared math helpers (used by the kernel and by the pure-JAX references)
# ----------------------------------------------------------------------------
def _apply_act(x, act):
    if act == "relu":
        return jnp.maximum(x, 0.0)
    if act == "hswish":
        return x * (jnp.clip(x + 3.0, 0.0, 6.0) * (1.0 / 6.0))
    raise ValueError(f"unknown activation {act!r}")


def _hsigmoid(x):
    return jnp.clip(x + 3.0, 0.0, 6.0) * (1.0 / 6.0)


def _fold_bn(w, bn, eps=1e-5):
    """Fold an eval-mode BatchNorm into the preceding (bias-free) conv weight."""
    scale = bn["gamma"] * jax.lax.rsqrt(bn["var"] + eps)
    w_f = w * scale.reshape((-1,) + (1,) * (w.ndim - 1))
    b_f = bn["beta"] - bn["mean"] * scale
    return w_f, b_f


def _round_up(v, m):
    return -(-v // m) * m


def _padded_bytes(shape, itemsize):
    """Conservative VMEM footprint of an array ((8,128)-tiled last two dims)."""
    s = list(shape)
    if len(s) >= 1:
        s[-1] = _round_up(s[-1], 128)
    if len(s) >= 2:
        s[-2] = _round_up(s[-2], 8)
    n = 1
    for d in s:
        n *= d
    return n * itemsize


def _pick_channel_tile(cexp, per_channel_bytes, budget_bytes):
    """Largest Cexp tile that divides Cexp, satisfies the BlockSpec lane rule
    (== Cexp or a multiple of 128) and fits the VMEM budget."""
    cands = [cexp] + [t for t in range(128, cexp, 128) if cexp % t == 0]
    fitting = [t for t in cands if t * per_channel_bytes <= budget_bytes]
    return max(fitting) if fitting else min(cands)


# ----------------------------------------------------------------------------
# Fused Block kernel
# ----------------------------------------------------------------------------
def _block_kernel(*refs, s, k, pad, H, W, Wd, Wd8, Ho, Wo, col_off, act,
                  has_se, residual, sc_conv, mxu_dtype):
    o_ref, h1_ref = refs[-2], refs[-1]
    it = iter(refs[:-2])
    x_ref = next(it)
    w1_ref = next(it)
    b1_ref = next(it)
    w2_ref = next(it)
    b2_ref = next(it)
    w3_ref = next(it)
    b3_ref = next(it)
    if has_se:
        wse1_ref = next(it)
        bse1_ref = next(it)
        wse2_ref = next(it)
        bse2_ref = next(it)
    if sc_conv:
        wsc_ref = next(it)
        bsc_ref = next(it)

    cb = pl.program_id(1)
    ncb = pl.num_programs(1)

    # --- zero the padded scratch once per image.  Its border is the conv
    #     zero-padding and is never written by the interior stores below.
    @pl.when(cb == 0)
    def _():
        h1_ref[...] = jnp.zeros_like(h1_ref)

    # --- 1) expand 1x1 conv + BN + activation -> padded, phase-split scratch.
    # x_ref[0, pc] holds the column-phase-pc samples of the image flattened to
    # (H*Wd8, Cin), so the matmul is a plain 2-D MXU op.  Wd8 % 8 == 0 keeps
    # the (H//s, s, Wd8, C) view of the result a free (layout-preserving)
    # reshape; rows are routed to (quotient, parity) coordinates.
    for pc in range(s):
        y = jnp.dot(x_ref[0, pc], w1_ref[...],
                    preferred_element_type=jnp.float32)            # (H*Wd8, Ce)
        y = _apply_act(y + b1_ref[...], act)                       # f32
        y = y.reshape(H // s, s, Wd8, y.shape[-1])
        for pr in range(s):
            roff = (pr + pad) // s
            h1_ref[pc,
                   roff:roff + H // s,
                   (pr + pad) % s,
                   col_off[pc]:col_off[pc] + Wd, :] = y[:, pr, :Wd, :]

    # --- 2) depthwise kxk conv + BN + activation (pure VPU; stride and zero
    #        padding are already folded into the scratch layout).
    # Padded position (row, col) lives at
    #   h1_ref[col % s, row // s, row % s, col // s, :]
    # so tap (dy, dx) of the strided conv is a static contiguous slice.
    acc = None
    for dy in range(k):
        for dx in range(k):
            tap = h1_ref[dx % s,
                         dy // s:dy // s + Ho,
                         dy % s,
                         dx // s:dx // s + Wo, :]                  # (Ho, Wo, Ce)
            term = tap * w2_ref[dy * k + dx:dy * k + dx + 1, :]
            acc = term if acc is None else acc + term
    h2 = _apply_act(acc + b2_ref[...], act)                        # (Ho, Wo, Ce) f32

    # --- 3) project 1x1 conv, accumulated into the VMEM-resident output block
    #        across Cexp channel blocks.
    h2f = h2.reshape(Ho * Wo, h2.shape[-1]).astype(mxu_dtype)
    contrib = jnp.dot(h2f, w3_ref[...], preferred_element_type=jnp.float32)

    @pl.when(cb == 0)
    def _():
        o_ref[0] = contrib + b3_ref[...]

    @pl.when(cb > 0)
    def _():
        o_ref[0] = o_ref[0] + contrib

    # --- 4) SE gate + shortcut once all channel blocks are accumulated.
    if has_se or residual:
        @pl.when(cb == ncb - 1)
        def _():
            t = o_ref[0]                                           # (Ho*Wo, Cout)
            if has_se:
                m = jnp.mean(t, axis=0, keepdims=True)             # global avg pool
                z = jnp.dot(m.astype(mxu_dtype), wse1_ref[...],
                            preferred_element_type=jnp.float32) + bse1_ref[...]
                z = jnp.maximum(z, 0.0)
                g = jnp.dot(z.astype(mxu_dtype), wse2_ref[...],
                            preferred_element_type=jnp.float32) + bse2_ref[...]
                t = t * _hsigmoid(g)
            if residual:                                           # s == 1 here
                xs = x_ref[0, 0]                                   # (H*Wd8, Cin)
                if sc_conv:
                    sc = jnp.dot(xs, wsc_ref[...],
                                 preferred_element_type=jnp.float32) + bsc_ref[...]
                else:
                    sc = xs.astype(jnp.float32)
                if Wd8 != W:                                       # drop filler columns
                    sc = sc.reshape(H, Wd8, sc.shape[-1])[:, :W, :]
                    sc = sc.reshape(H * W, sc.shape[-1])
                t = t + sc
            o_ref[0] = t


# ----------------------------------------------------------------------------
# Forward wrapper
# ----------------------------------------------------------------------------
def block_forward(x, p, *, kernel_size, stride, act="hswish",
                  mxu_dtype=jnp.bfloat16):
    """MobileNetV3 Block forward (inference).  x: (N, Cin, H, W) float32 NCHW."""
    N, Cin, H, W = x.shape
    k, s = int(kernel_size), int(stride)
    pad = k // 2
    Cexp = p["w1"].shape[0]
    Cout = p["w3"].shape[0]
    has_se = "wse1" in p
    residual = s == 1
    sc_conv = residual and (Cin != Cout)
    if sc_conv and "wsc" not in p:
        raise ValueError("stride==1 with Cin != Cout requires 'wsc'/'bnsc' shortcut params")
    if s > 1 and (H % s or W % s):
        raise ValueError("stride>1 requires H and W divisible by the stride")

    Ho = (H + 2 * pad - k) // s + 1
    Wo = (W + 2 * pad - k) // s + 1

    # Fold the (eval-mode) BatchNorms into the conv weights / per-channel biases.
    w1, b1 = _fold_bn(p["w1"], p["bn1"])          # (Cexp, Cin)
    w2, b2 = _fold_bn(p["w2"], p["bn2"])          # (Cexp, k, k)
    w3, b3 = _fold_bn(p["w3"], p["bn3"])          # (Cout, Cexp)

    # Channels-last input; MXU operands in bf16, biases / VPU math in f32.
    x_cl = jnp.transpose(x, (0, 2, 3, 1)).astype(mxu_dtype)       # (N, H, W, Cin)

    # Column-phase split: phase pc holds the input columns whose *padded*
    # column index is congruent to pc (mod s).  Each phase is flattened to
    # (H*Wd8, Cin) with Wd8 a multiple of 8 (filler cols never get stored).
    Wd = W // s
    Wd8 = _round_up(Wd, 8)
    phases, col_off = [], []
    for pc in range(s):
        w0 = (pc - pad) % s
        cols = x_cl[:, :, w0::s, :]                               # (N, H, Wd, Cin)
        if Wd8 != Wd:
            cols = jnp.pad(cols, ((0, 0), (0, 0), (0, Wd8 - Wd), (0, 0)))
        phases.append(cols.reshape(N, H * Wd8, Cin))
        col_off.append((w0 + pad) // s)
    x_sp = jnp.stack(phases, axis=1)                              # (N, s, H*Wd8, Cin)
    col_off = tuple(col_off)

    # Padded-scratch geometry in quotient coordinates.
    Hq = max((k - 1) // s + Ho, (s - 1 + pad) // s + H // s)
    Wq = max((k - 1) // s + Wo, max(col_off) + Wd)

    # VMEM budget: pick the Cexp tile so the scratch + streamed weights fit.
    per_chan = s * s * Hq * Wq * 4 + 2 * (2 * Cin + 2 * Cout + 4 * k * k + 12)
    TCe = _pick_channel_tile(Cexp, per_chan, budget_bytes=16 * 2 ** 20)
    ncb = Cexp // TCe

    vmem_est = (2 * _padded_bytes((s, H * Wd8, Cin), 2)           # x block (dbl-buffered)
                + 2 * _padded_bytes((Ho * Wo, Cout), 4)           # resident output block
                + _padded_bytes((s, Hq, s, Wq, TCe), 4)           # padded h1 scratch
                + 2 * (_padded_bytes((Cin, TCe), 2)
                       + _padded_bytes((TCe, Cout), 2)
                       + _padded_bytes((k * k, TCe), 4)
                       + 4 * _padded_bytes((1, max(TCe, Cout)), 4))
                + 4 * _padded_bytes((max(Cout, Cin), Cout), 2))   # SE / shortcut weights
    vmem_limit = int(min(max(2 * vmem_est, 32 * 2 ** 20), 100 * 2 ** 20))

    inputs = [
        x_sp,
        w1.T.astype(mxu_dtype),                  # (Cin, Cexp)
        b1.reshape(1, Cexp),
        w2.reshape(Cexp, k * k).T,               # (k*k, Cexp) f32 (VPU)
        b2.reshape(1, Cexp),
        w3.T.astype(mxu_dtype),                  # (Cexp, Cout)
        b3.reshape(1, Cout),
    ]
    in_specs = [
        pl.BlockSpec((1, s, H * Wd8, Cin), lambda n, cb: (n, 0, 0, 0)),
        pl.BlockSpec((Cin, TCe), lambda n, cb: (0, cb)),
        pl.BlockSpec((1, TCe), lambda n, cb: (0, cb)),
        pl.BlockSpec((k * k, TCe), lambda n, cb: (0, cb)),
        pl.BlockSpec((1, TCe), lambda n, cb: (0, cb)),
        pl.BlockSpec((TCe, Cout), lambda n, cb: (cb, 0)),
        pl.BlockSpec((1, Cout), lambda n, cb: (0, 0)),
    ]
    if has_se:
        wse1, bse1 = _fold_bn(p["wse1"], p["bnse1"])   # (Cred, Cout)
        wse2, bse2 = _fold_bn(p["wse2"], p["bnse2"])   # (Cout, Cred)
        Cred = wse1.shape[0]
        inputs += [wse1.T.astype(mxu_dtype), bse1.reshape(1, Cred),
                   wse2.T.astype(mxu_dtype), bse2.reshape(1, Cout)]
        in_specs += [
            pl.BlockSpec((Cout, Cred), lambda n, cb: (0, 0)),
            pl.BlockSpec((1, Cred), lambda n, cb: (0, 0)),
            pl.BlockSpec((Cred, Cout), lambda n, cb: (0, 0)),
            pl.BlockSpec((1, Cout), lambda n, cb: (0, 0)),
        ]
    if sc_conv:
        wsc, bsc = _fold_bn(p["wsc"], p["bnsc"])       # (Cout, Cin)
        inputs += [wsc.T.astype(mxu_dtype), bsc.reshape(1, Cout)]
        in_specs += [
            pl.BlockSpec((Cin, Cout), lambda n, cb: (0, 0)),
            pl.BlockSpec((1, Cout), lambda n, cb: (0, 0)),
        ]

    kernel = functools.partial(
        _block_kernel, s=s, k=k, pad=pad, H=H, W=W, Wd=Wd, Wd8=Wd8, Ho=Ho, Wo=Wo,
        col_off=col_off, act=act, has_se=has_se, residual=residual,
        sc_conv=sc_conv, mxu_dtype=mxu_dtype)

    out = pl.pallas_call(
        kernel,
        out_shape=jax.ShapeDtypeStruct((N, Ho * Wo, Cout), jnp.float32),
        grid=(N, ncb),
        in_specs=in_specs,
        out_specs=pl.BlockSpec((1, Ho * Wo, Cout), lambda n, cb: (n, 0, 0)),
        scratch_shapes=[pltpu.VMEM((s, Hq, s, Wq, TCe), jnp.float32)],
        compiler_params=pltpu.CompilerParams(
            dimension_semantics=("parallel", "arbitrary"),
            vmem_limit_bytes=vmem_limit),
    )(*inputs)

    return jnp.transpose(out.reshape(N, Ho, Wo, Cout), (0, 3, 1, 2))


# ----------------------------------------------------------------------------
# Parameters + references for validation
# ----------------------------------------------------------------------------
def make_block_params(key, cin, cexp, cout, k, *, has_se, stride, se_reduction=4):
    def conv_w(kk, shape, fan_in):
        bound = 1.0 / (fan_in ** 0.5)
        return jax.random.uniform(kk, shape, jnp.float32, -bound, bound)

    def bn_params(kk, c):
        k1, k2, k3, k4 = jax.random.split(kk, 4)
        return dict(
            gamma=jax.random.uniform(k1, (c,), jnp.float32, 0.5, 1.5),
            beta=jax.random.uniform(k2, (c,), jnp.float32, -0.2, 0.2),
            mean=0.1 * jax.random.normal(k3, (c,), jnp.float32),
            var=jax.random.uniform(k4, (c,), jnp.float32, 0.5, 1.5),
        )

    keys = iter(jax.random.split(key, 16))
    p = dict(
        w1=conv_w(next(keys), (cexp, cin), cin), bn1=bn_params(next(keys), cexp),
        w2=conv_w(next(keys), (cexp, k, k), k * k), bn2=bn_params(next(keys), cexp),
        w3=conv_w(next(keys), (cout, cexp), cexp), bn3=bn_params(next(keys), cout),
    )
    if has_se:
        cred = max(cout // se_reduction, 1)
        p["wse1"] = conv_w(next(keys), (cred, cout), cout)
        p["bnse1"] = bn_params(next(keys), cred)
        p["wse2"] = conv_w(next(keys), (cout, cred), cred)
        p["bnse2"] = bn_params(next(keys), cout)
    if stride == 1 and cin != cout:
        p["wsc"] = conv_w(next(keys), (cout, cin), cin)
        p["bnsc"] = bn_params(next(keys), cout)
    return p


def _bn_ref(x, bn, eps=1e-5):
    g = bn["gamma"][None, :, None, None]
    b = bn["beta"][None, :, None, None]
    m = bn["mean"][None, :, None, None]
    v = bn["var"][None, :, None, None]
    return g * (x - m) * jax.lax.rsqrt(v + eps) + b


def block_reference(x, p, cfg):
    """Exact float32 reference (explicit BN, lax.conv)."""
    k, s, act = cfg["kernel_size"], cfg["stride"], cfg["act"]
    pad = k // 2
    h = jnp.einsum("oc,nchw->nohw", p["w1"], x)
    h = _apply_act(_bn_ref(h, p["bn1"]), act)
    h = jax.lax.conv_general_dilated(
        h, p["w2"][:, None, :, :], window_strides=(s, s),
        padding=[(pad, pad), (pad, pad)],
        dimension_numbers=("NCHW", "OIHW", "NCHW"),
        feature_group_count=h.shape[1])
    h = _apply_act(_bn_ref(h, p["bn2"]), act)
    out = _bn_ref(jnp.einsum("oc,nchw->nohw", p["w3"], h), p["bn3"])
    if cfg["has_se"]:
        m = jnp.mean(out, axis=(2, 3), keepdims=True)
        z = _bn_ref(jnp.einsum("rc,nchw->nrhw", p["wse1"], m), p["bnse1"])
        z = jnp.maximum(z, 0.0)
        g = _bn_ref(jnp.einsum("cr,nrhw->nchw", p["wse2"], z), p["bnse2"])
        out = out * _hsigmoid(g)
    if s == 1:
        sc = x
        if "wsc" in p:
            sc = _bn_ref(jnp.einsum("oc,nchw->nohw", p["wsc"], x), p["bnsc"])
        out = out + sc
    return out


def block_reference_folded(x, p, cfg, mxu_dtype=jnp.bfloat16):
    """Reference applying the SAME bf16 casts / BN folding as the kernel, so it
    agrees with the kernel to f32 accumulation-order noise (tight check)."""
    k, s, act = cfg["kernel_size"], cfg["stride"], cfg["act"]
    pad = k // 2
    w1, b1 = _fold_bn(p["w1"], p["bn1"])
    w2, b2 = _fold_bn(p["w2"], p["bn2"])
    w3, b3 = _fold_bn(p["w3"], p["bn3"])
    xc = jnp.transpose(x, (0, 2, 3, 1)).astype(mxu_dtype)
    h1 = jnp.einsum("nhwc,ec->nhwe", xc, w1.astype(mxu_dtype),
                    preferred_element_type=jnp.float32) + b1
    h1 = _apply_act(h1, act)
    N, H, W, Cexp = h1.shape
    Ho = (H + 2 * pad - k) // s + 1
    Wo = (W + 2 * pad - k) // s + 1
    h1p = jnp.pad(h1, ((0, 0), (pad, pad), (pad, pad), (0, 0)))
    h2 = jnp.zeros((N, Ho, Wo, Cexp), jnp.float32)
    for dy in range(k):
        for dx in range(k):
            tap = h1p[:, dy:dy + s * (Ho - 1) + 1:s, dx:dx + s * (Wo - 1) + 1:s, :]
            h2 = h2 + tap * w2[:, dy, dx]
    h2 = _apply_act(h2 + b2, act)
    t = jnp.einsum("nhwc,oc->nhwo", h2.astype(mxu_dtype), w3.astype(mxu_dtype),
                   preferred_element_type=jnp.float32) + b3
    if cfg["has_se"]:
        wse1, bse1 = _fold_bn(p["wse1"], p["bnse1"])
        wse2, bse2 = _fold_bn(p["wse2"], p["bnse2"])
        m = jnp.mean(t, axis=(1, 2), keepdims=True)
        z = jnp.maximum(
            jnp.einsum("nhwc,rc->nhwr", m.astype(mxu_dtype), wse1.astype(mxu_dtype),
                       preferred_element_type=jnp.float32) + bse1, 0.0)
        g = _hsigmoid(
            jnp.einsum("nhwr,or->nhwo", z.astype(mxu_dtype), wse2.astype(mxu_dtype),
                       preferred_element_type=jnp.float32) + bse2)
        t = t * g
    if s == 1:
        if "wsc" in p:
            wsc, bsc = _fold_bn(p["wsc"], p["bnsc"])
            sc = jnp.einsum("nhwc,oc->nhwo", xc, wsc.astype(mxu_dtype),
                            preferred_element_type=jnp.float32) + bsc
        else:
            sc = xc.astype(jnp.float32)
        t = t + sc
    return jnp.transpose(t, (0, 3, 1, 2))


# ----------------------------------------------------------------------------
# Demo / self-check
# ----------------------------------------------------------------------------
if __name__ == "__main__":
    key = jax.random.PRNGKey(0)

    configs = [
        # stride=1: SE, h-swish, 1x1-conv shortcut (cin != cout)
        dict(name="k3_s1_se_hswish", batch=2, cin=8, cexp=24, cout=12,
             kernel_size=3, stride=1, has_se=True, act="hswish", H=16, W=16),
        # stride=2: 5x5 depthwise with stride, ReLU, no SE, no shortcut
        dict(name="k5_s2_relu", batch=2, cin=12, cexp=36, cout=16,
             kernel_size=5, stride=2, has_se=False, act="relu", H=16, W=16),
    ]

    for cfg in configs:
        key, pkey, xkey = jax.random.split(key, 3)
        params = make_block_params(
            pkey, cfg["cin"], cfg["cexp"], cfg["cout"], cfg["kernel_size"],
            has_se=cfg["has_se"], stride=cfg["stride"])
        x = jax.random.normal(
            xkey, (cfg["batch"], cfg["cin"], cfg["H"], cfg["W"]), jnp.float32)

        out = block_forward(x, params, kernel_size=cfg["kernel_size"],
                            stride=cfg["stride"], act=cfg["act"])
        out = jax.block_until_ready(out)

        ref_f32 = block_reference(x, params, cfg)
        ref_bf16 = block_reference_folded(x, params, cfg)
        assert out.shape == ref_f32.shape, (cfg["name"], out.shape, ref_f32.shape)
        assert bool(jnp.all(jnp.isfinite(out))), cfg["name"]

        # Tight check vs a reference that applies the SAME bf16 MXU casts:
        # catches any formulation/fusion regression (differences should only be
        # f32 accumulation-order noise).
        err_matched = float(jnp.max(jnp.abs(out - ref_bf16)))
        assert err_matched < 2e-3, f"{cfg['name']}: matched-ref err {err_matched}"

        # Looser check vs the exact f32 reference: dominated by the intentional
        # bf16 rounding of MXU operands (~0.4% relative on O(1) activations).
        err_f32 = float(jnp.max(jnp.abs(out - ref_f32)))
        assert err_f32 < 7.5e-2, f"{cfg['name']}: f32-ref err {err_f32}"

    print("KERNEL_OK")
</pallas_src>

<mosaic_0001>
module attributes {stable_mosaic.version = 11 : i64} {
  func.func @_block_kernel(%arg0: i32, %arg1: i32, %arg2: memref<1x1x256x8xbf16, #tpu.memory_space<vmem>>, %arg3: memref<8x24xbf16, #tpu.memory_space<vmem>>, %arg4: memref<1x24xf32, #tpu.memory_space<vmem>>, %arg5: memref<9x24xf32, #tpu.memory_space<vmem>>, %arg6: memref<1x24xf32, #tpu.memory_space<vmem>>, %arg7: memref<24x12xbf16, #tpu.memory_space<vmem>>, %arg8: memref<1x12xf32, #tpu.memory_space<vmem>>, %arg9: memref<12x3xbf16, #tpu.memory_space<vmem>>, %arg10: memref<1x3xf32, #tpu.memory_space<vmem>>, %arg11: memref<3x12xbf16, #tpu.memory_space<vmem>>, %arg12: memref<1x12xf32, #tpu.memory_space<vmem>>, %arg13: memref<8x12xbf16, #tpu.memory_space<vmem>>, %arg14: memref<1x12xf32, #tpu.memory_space<vmem>>, %arg15: memref<1x256x12xf32, #tpu.memory_space<vmem>>, %arg16: memref<1x18x1x18x24xf32, #tpu.memory_space<vmem>>) attributes {dimension_semantics = [#tpu.dimension_semantics<parallel>, #tpu.dimension_semantics<arbitrary>], iteration_bounds = array<i64: 2, 1>, scalar_prefetch = 0 : i64, scratch_operands = 1 : i64, tpu.core_type = #tpu.core_type<tc>, window_params = [{transform_indices = @transform_0, window_bounds = array<i64: 1, 1, 256, 8>}, {transform_indices = @transform_1, window_bounds = array<i64: 8, 24>}, {transform_indices = @transform_2, window_bounds = array<i64: 1, 24>}, {transform_indices = @transform_3, window_bounds = array<i64: 9, 24>}, {transform_indices = @transform_4, window_bounds = array<i64: 1, 24>}, {transform_indices = @transform_5, window_bounds = array<i64: 24, 12>}, {pipeline_mode = #tpu.pipeline_mode<synchronous>, transform_indices = @transform_6, window_bounds = array<i64: 1, 12>}, {pipeline_mode = #tpu.pipeline_mode<synchronous>, transform_indices = @transform_7, window_bounds = array<i64: 12, 3>}, {pipeline_mode = #tpu.pipeline_mode<synchronous>, transform_indices = @transform_8, window_bounds = array<i64: 1, 3>}, {pipeline_mode = #tpu.pipeline_mode<synchronous>, transform_indices = @transform_9, window_bounds = array<i64: 3, 12>}, {pipeline_mode = #tpu.pipeline_mode<synchronous>, transform_indices = @transform_10, window_bounds = array<i64: 1, 12>}, {pipeline_mode = #tpu.pipeline_mode<synchronous>, transform_indices = @transform_11, window_bounds = array<i64: 8, 12>}, {pipeline_mode = #tpu.pipeline_mode<synchronous>, transform_indices = @transform_12, window_bounds = array<i64: 1, 12>}, {transform_indices = @transform_13, window_bounds = array<i64: 1, 256, 12>}]} {
    %c0_i32 = arith.constant 0 : i32
    %0 = arith.cmpi eq, %arg1, %c0_i32 : i32
    %1 = arith.extui %0 : i1 to i32
    %c0_i32_0 = arith.constant 0 : i32
    %2 = arith.cmpi ne, %1, %c0_i32_0 : i32
    scf.if %2 {
      %cst_87 = arith.constant 0.000000e+00 : f32
      %112 = vector.broadcast %cst_87 : f32 to vector<1x18x1x18x24xf32>
      %c0_88 = arith.constant 0 : index
      %c0_89 = arith.constant 0 : index
      %c0_90 = arith.constant 0 : index
      %c0_91 = arith.constant 0 : index
      %c0_92 = arith.constant 0 : index
      %113 = vector.load %arg16[%c0_88, %c0_89, %c0_90, %c0_91, %c0_92] : memref<1x18x1x18x24xf32, #tpu.memory_space<vmem>>, vector<1x18x1x18x24xf32>
      tpu.vector_store %arg16[%c0_88, %c0_89, %c0_90, %c0_91, %c0_92], %112 {strides = array<i32>} : memref<1x18x1x18x24xf32, #tpu.memory_space<vmem>>, vector<1x18x1x18x24xf32>,
    } else {
    }
    %c0 = arith.constant 0 : index
    %c0_1 = arith.constant 0 : index
    %c0_2 = arith.constant 0 : index
    %c0_3 = arith.constant 0 : index
    %3 = vector.load %arg2[%c0, %c0_1, %c0_2, %c0_3] : memref<1x1x256x8xbf16, #tpu.memory_space<vmem>>, vector<1x1x256x8xbf16>
    %4 = vector.shape_cast %3 : vector<1x1x256x8xbf16> to vector<256x8xbf16>
    %c0_4 = arith.constant 0 : index
    %c0_5 = arith.constant 0 : index
    %5 = vector.load %arg3[%c0_4, %c0_5] : memref<8x24xbf16, #tpu.memory_space<vmem>>, vector<8x24xbf16>
    %cst = arith.constant dense<0.000000e+00> : vector<256x24xf32>
    %6 = tpu.matmul %4, %5, %cst {dimension_numbers = #tpu.dot_dimension_numbers<[1], [0], [0], [1], [0, 0, 1, 1], [], []>} : vector<256x8xbf16>, vector<8x24xbf16>, vector<256x24xf32> -> vector<256x24xf32>
    %c0_6 = arith.constant 0 : index
    %c0_7 = arith.constant 0 : index
    %7 = vector.load %arg4[%c0_6, %c0_7] : memref<1x24xf32, #tpu.memory_space<vmem>>, vector<1x24xf32>
    %8 = vector.broadcast %7 : vector<1x24xf32> to vector<256x24xf32>
    %9 = arith.addf %6, %8 : vector<256x24xf32>
    %cst_8 = arith.constant 3.000000e+00 : f32
    %10 = vector.broadcast %cst_8 : f32 to vector<256x24xf32>
    %11 = arith.addf %9, %10 : vector<256x24xf32>
    %cst_9 = arith.constant 0.000000e+00 : f32
    %cst_10 = arith.constant 6.000000e+00 : f32
    %12 = vector.broadcast %cst_9 : f32 to vector<256x24xf32>
    %13 = arith.maximumf %12, %11 : vector<256x24xf32>
    %14 = vector.broadcast %cst_10 : f32 to vector<256x24xf32>
    %15 = arith.minimumf %14, %13 : vector<256x24xf32>
    %cst_11 = arith.constant 0.166666672 : f32
    %16 = vector.broadcast %cst_11 : f32 to vector<256x24xf32>
    %17 = arith.mulf %15, %16 : vector<256x24xf32>
    %18 = arith.mulf %9, %17 : vector<256x24xf32>
    %19 = vector.shape_cast %18 : vector<256x24xf32> to vector<16x1x16x24xf32>
    %20 = vector.shape_cast %19 : vector<16x1x16x24xf32> to vector<16x16x24xf32>
    %c0_12 = arith.constant 0 : index
    %c1 = arith.constant 1 : index
    %c0_13 = arith.constant 0 : index
    %c1_14 = arith.constant 1 : index
    %c0_15 = arith.constant 0 : index
    %21 = vector.load %arg16[%c0_12, %c1, %c0_13, %c1_14, %c0_15] : memref<1x18x1x18x24xf32, #tpu.memory_space<vmem>>, vector<1x16x1x16x24xf32>
    %22 = vector.shape_cast %21 : vector<1x16x1x16x24xf32> to vector<16x16x24xf32>
    %23 = vector.shape_cast %20 : vector<16x16x24xf32> to vector<1x16x1x16x24xf32>
    tpu.vector_store %arg16[%c0_12, %c1, %c0_13, %c1_14, %c0_15], %23 {strides = array<i32>} : memref<1x18x1x18x24xf32, #tpu.memory_space<vmem>>, vector<1x16x1x16x24xf32>,
    %c0_16 = arith.constant 0 : index
    %c0_17 = arith.constant 0 : index
    %c0_18 = arith.constant 0 : index
    %c0_19 = arith.constant 0 : index
    %c0_20 = arith.constant 0 : index
    %24 = vector.load %arg16[%c0_16, %c0_17, %c0_18, %c0_19, %c0_20] : memref<1x18x1x18x24xf32, #tpu.memory_space<vmem>>, vector<1x16x1x16x24xf32>
    %25 = vector.shape_cast %24 : vector<1x16x1x16x24xf32> to vector<16x16x24xf32>
    %c0_21 = arith.constant 0 : index
    %c0_22 = arith.constant 0 : index
    %26 = vector.load %arg5[%c0_21, %c0_22] : memref<9x24xf32, #tpu.memory_space<vmem>>, vector<1x24xf32>
    %27 = vector.shape_cast %26 : vector<1x24xf32> to vector<1x1x24xf32>
    %28 = vector.broadcast %27 : vector<1x1x24xf32> to vector<16x16x24xf32>
    %29 = arith.mulf %25, %28 : vector<16x16x24xf32>
    %c0_23 = arith.constant 0 : index
    %c0_24 = arith.constant 0 : index
    %c0_25 = arith.constant 0 : index
    %c1_26 = arith.constant 1 : index
    %c0_27 = arith.constant 0 : index
    %30 = vector.load %arg16[%c0_23, %c0_24, %c0_25, %c1_26, %c0_27] : memref<1x18x1x18x24xf32, #tpu.memory_space<vmem>>, vector<1x16x1x16x24xf32>
    %31 = vector.shape_cast %30 : vector<1x16x1x16x24xf32> to vector<16x16x24xf32>
    %c1_28 = arith.constant 1 : index
    %c0_29 = arith.constant 0 : index
    %32 = vector.load %arg5[%c1_28, %c0_29] : memref<9x24xf32, #tpu.memory_space<vmem>>, vector<1x24xf32>
    %33 = vector.shape_cast %32 : vector<1x24xf32> to vector<1x1x24xf32>
    %34 = vector.broadcast %33 : vector<1x1x24xf32> to vector<16x16x24xf32>
    %35 = arith.mulf %31, %34 : vector<16x16x24xf32>
    %36 = arith.addf %29, %35 : vector<16x16x24xf32>
    %c0_30 = arith.constant 0 : index
    %c0_31 = arith.constant 0 : index
    %c0_32 = arith.constant 0 : index
    %c2 = arith.constant 2 : index
    %c0_33 = arith.constant 0 : index
    %37 = vector.load %arg16[%c0_30, %c0_31, %c0_32, %c2, %c0_33] : memref<1x18x1x18x24xf32, #tpu.memory_space<vmem>>, vector<1x16x1x16x24xf32>
    %38 = vector.shape_cast %37 : vector<1x16x1x16x24xf32> to vector<16x16x24xf32>
    %c2_34 = arith.constant 2 : index
    %c0_35 = arith.constant 0 : index
    %39 = vector.load %arg5[%c2_34, %c0_35] : memref<9x24xf32, #tpu.memory_space<vmem>>, vector<1x24xf32>
    %40 = vector.shape_cast %39 : vector<1x24xf32> to vector<1x1x24xf32>
    %41 = vector.broadcast %40 : vector<1x1x24xf32> to vector<16x16x24xf32>
    %42 = arith.mulf %38, %41 : vector<16x16x24xf32>
    %43 = arith.addf %36, %42 : vector<16x16x24xf32>
    %c0_36 = arith.constant 0 : index
    %c1_37 = arith.constant 1 : index
    %c0_38 = arith.constant 0 : index
    %c0_39 = arith.constant 0 : index
    %c0_40 = arith.constant 0 : index
    %44 = vector.load %arg16[%c0_36, %c1_37, %c0_38, %c0_39, %c0_40] : memref<1x18x1x18x24xf32, #tpu.memory_space<vmem>>, vector<1x16x1x16x24xf32>
    %45 = vector.shape_cast %44 : vector<1x16x1x16x24xf32> to vector<16x16x24xf32>
    %c3 = arith.constant 3 : index
    %c0_41 = arith.constant 0 : index
    %46 = vector.load %arg5[%c3, %c0_41] : memref<9x24xf32, #tpu.memory_space<vmem>>, vector<1x24xf32>
    %47 = vector.shape_cast %46 : vector<1x24xf32> to vector<1x1x24xf32>
    %48 = vector.broadcast %47 : vector<1x1x24xf32> to vector<16x16x24xf32>
    %49 = arith.mulf %45, %48 : vector<16x16x24xf32>
    %50 = arith.addf %43, %49 : vector<16x16x24xf32>
    %c0_42 = arith.constant 0 : index
    %c1_43 = arith.constant 1 : index
    %c0_44 = arith.constant 0 : index
    %c1_45 = arith.constant 1 : index
    %c0_46 = arith.constant 0 : index
    %51 = vector.load %arg16[%c0_42, %c1_43, %c0_44, %c1_45, %c0_46] : memref<1x18x1x18x24xf32, #tpu.memory_space<vmem>>, vector<1x16x1x16x24xf32>
    %52 = vector.shape_cast %51 : vector<1x16x1x16x24xf32> to vector<16x16x24xf32>
    %c4 = arith.constant 4 : index
    %c0_47 = arith.constant 0 : index
    %53 = vector.load %arg5[%c4, %c0_47] : memref<9x24xf32, #tpu.memory_space<vmem>>, vector<1x24xf32>
    %54 = vector.shape_cast %53 : vector<1x24xf32> to vector<1x1x24xf32>
    %55 = vector.broadcast %54 : vector<1x1x24xf32> to vector<16x16x24xf32>
    %56 = arith.mulf %52, %55 : vector<16x16x24xf32>
    %57 = arith.addf %50, %56 : vector<16x16x24xf32>
    %c0_48 = arith.constant 0 : index
    %c1_49 = arith.constant 1 : index
    %c0_50 = arith.constant 0 : index
    %c2_51 = arith.constant 2 : index
    %c0_52 = arith.constant 0 : index
    %58 = vector.load %arg16[%c0_48, %c1_49, %c0_50, %c2_51, %c0_52] : memref<1x18x1x18x24xf32, #tpu.memory_space<vmem>>, vector<1x16x1x16x24xf32>
    %59 = vector.shape_cast %58 : vector<1x16x1x16x24xf32> to vector<16x16x24xf32>
    %c5 = arith.constant 5 : index
    %c0_53 = arith.constant 0 : index
    %60 = vector.load %arg5[%c5, %c0_53] : memref<9x24xf32, #tpu.memory_space<vmem>>, vector<1x24xf32>
    %61 = vector.shape_cast %60 : vector<1x24xf32> to vector<1x1x24xf32>
    %62 = vector.broadcast %61 : vector<1x1x24xf32> to vector<16x16x24xf32>
    %63 = arith.mulf %59, %62 : vector<16x16x24xf32>
    %64 = arith.addf %57, %63 : vector<16x16x24xf32>
    %c0_54 = arith.constant 0 : index
    %c2_55 = arith.constant 2 : index
    %c0_56 = arith.constant 0 : index
    %c0_57 = arith.constant 0 : index
    %c0_58 = arith.constant 0 : index
    %65 = vector.load %arg16[%c0_54, %c2_55, %c0_56, %c0_57, %c0_58] : memref<1x18x1x18x24xf32, #tpu.memory_space<vmem>>, vector<1x16x1x16x24xf32>
    %66 = vector.shape_cast %65 : vector<1x16x1x16x24xf32> to vector<16x16x24xf32>
    %c6 = arith.constant 6 : index
    %c0_59 = arith.constant 0 : index
    %67 = vector.load %arg5[%c6, %c0_59] : memref<9x24xf32, #tpu.memory_space<vmem>>, vector<1x24xf32>
    %68 = vector.shape_cast %67 : vector<1x24xf32> to vector<1x1x24xf32>
    %69 = vector.broadcast %68 : vector<1x1x24xf32> to vector<16x16x24xf32>
    %70 = arith.mulf %66, %69 : vector<16x16x24xf32>
    %71 = arith.addf %64, %70 : vector<16x16x24xf32>
    %c0_60 = arith.constant 0 : index
    %c2_61 = arith.constant 2 : index
    %c0_62 = arith.constant 0 : index
    %c1_63 = arith.constant 1 : index
    %c0_64 = arith.constant 0 : index
    %72 = vector.load %arg16[%c0_60, %c2_61, %c0_62, %c1_63, %c0_64] : memref<1x18x1x18x24xf32, #tpu.memory_space<vmem>>, vector<1x16x1x16x24xf32>
    %73 = vector.shape_cast %72 : vector<1x16x1x16x24xf32> to vector<16x16x24xf32>
    %c7 = arith.constant 7 : index
    %c0_65 = arith.constant 0 : index
    %74 = vector.load %arg5[%c7, %c0_65] : memref<9x24xf32, #tpu.memory_space<vmem>>, vector<1x24xf32>
    %75 = vector.shape_cast %74 : vector<1x24xf32> to vector<1x1x24xf32>
    %76 = vector.broadcast %75 : vector<1x1x24xf32> to vector<16x16x24xf32>
    %77 = arith.mulf %73, %76 : vector<16x16x24xf32>
    %78 = arith.addf %71, %77 : vector<16x16x24xf32>
    %c0_66 = arith.constant 0 : index
    %c2_67 = arith.constant 2 : index
    %c0_68 = arith.constant 0 : index
    %c2_69 = arith.constant 2 : index
    %c0_70 = arith.constant 0 : index
    %79 = vector.load %arg16[%c0_66, %c2_67, %c0_68, %c2_69, %c0_70] : memref<1x18x1x18x24xf32, #tpu.memory_space<vmem>>, vector<1x16x1x16x24xf32>
    %80 = vector.shape_cast %79 : vector<1x16x1x16x24xf32> to vector<16x16x24xf32>
    %c8 = arith.constant 8 : index
    %c0_71 = arith.constant 0 : index
    %81 = vector.load %arg5[%c8, %c0_71] : memref<9x24xf32, #tpu.memory_space<vmem>>, vector<1x24xf32>
    %82 = vector.shape_cast %81 : vector<1x24xf32> to vector<1x1x24xf32>
    %83 = vector.broadcast %82 : vector<1x1x24xf32> to vector<16x16x24xf32>
    %84 = arith.mulf %80, %83 : vector<16x16x24xf32>
    %85 = arith.addf %78, %84 : vector<16x16x24xf32>
    %c0_72 = arith.constant 0 : index
    %c0_73 = arith.constant 0 : index
    %86 = vector.load %arg6[%c0_72, %c0_73] : memref<1x24xf32, #tpu.memory_space<vmem>>, vector<1x24xf32>
    %87 = vector.shape_cast %86 : vector<1x24xf32> to vector<1x1x24xf32>
    %88 = vector.broadcast %87 : vector<1x1x24xf32> to vector<16x16x24xf32>
    %89 = arith.addf %85, %88 : vector<16x16x24xf32>
    %cst_74 = arith.constant 3.000000e+00 : f32
    %90 = vector.broadcast %cst_74 : f32 to vector<16x16x24xf32>
    %91 = arith.addf %89, %90 : vector<16x16x24xf32>
    %cst_75 = arith.constant 0.000000e+00 : f32
    %cst_76 = arith.constant 6.000000e+00 : f32
    %92 = vector.broadcast %cst_75 : f32 to vector<16x16x24xf32>
    %93 = arith.maximumf %92, %91 : vector<16x16x24xf32>
    %94 = vector.broadcast %cst_76 : f32 to vector<16x16x24xf32>
    %95 = arith.minimumf %94, %93 : vector<16x16x24xf32>
    %cst_77 = arith.constant 0.166666672 : f32
    %96 = vector.broadcast %cst_77 : f32 to vector<16x16x24xf32>
    %97 = arith.mulf %95, %96 : vector<16x16x24xf32>
    %98 = arith.mulf %89, %97 : vector<16x16x24xf32>
    %99 = vector.shape_cast %98 : vector<16x16x24xf32> to vector<256x24xf32>
    %100 = arith.truncf %99 : vector<256x24xf32> to vector<256x24xbf16>
    %c0_78 = arith.constant 0 : index
    %c0_79 = arith.constant 0 : index
    %101 = vector.load %arg7[%c0_78, %c0_79] : memref<24x12xbf16, #tpu.memory_space<vmem>>, vector<24x12xbf16>
    %cst_80 = arith.constant dense<0.000000e+00> : vector<256x12xf32>
    %102 = tpu.matmul %100, %101, %cst_80 {dimension_numbers = #tpu.dot_dimension_numbers<[1], [0], [0], [1], [0, 0, 1, 1], [], []>} : vector<256x24xbf16>, vector<24x12xbf16>, vector<256x12xf32> -> vector<256x12xf32>
    %c0_i32_81 = arith.constant 0 : i32
    %103 = arith.cmpi eq, %arg1, %c0_i32_81 : i32
    %104 = arith.extui %103 : i1 to i32
    %c0_i32_82 = arith.constant 0 : i32
    %105 = arith.cmpi ne, %104, %c0_i32_82 : i32
    scf.if %105 {
      %c0_87 = arith.constant 0 : index
      %c0_88 = arith.constant 0 : index
      %112 = vector.load %arg8[%c0_87, %c0_88] : memref<1x12xf32, #tpu.memory_space<vmem>>, vector<1x12xf32>
      %113 = vector.broadcast %112 : vector<1x12xf32> to vector<256x12xf32>
      %114 = arith.addf %102, %113 : vector<256x12xf32>
      %c0_89 = arith.constant 0 : index
      %c0_90 = arith.constant 0 : index
      %c0_91 = arith.constant 0 : index
      %115 = vector.load %arg15[%c0_89, %c0_90, %c0_91] : memref<1x256x12xf32, #tpu.memory_space<vmem>>, vector<1x256x12xf32>
      %116 = vector.shape_cast %115 : vector<1x256x12xf32> to vector<256x12xf32>
      %117 = vector.shape_cast %114 : vector<256x12xf32> to vector<1x256x12xf32>
      tpu.vector_store %arg15[%c0_89, %c0_90, %c0_91], %117 {strides = array<i32>} : memref<1x256x12xf32, #tpu.memory_space<vmem>>, vector<1x256x12xf32>,
    } else {
    }
    %c0_i32_83 = arith.constant 0 : i32
    %106 = arith.cmpi sgt, %arg1, %c0_i32_83 : i32
    %107 = arith.extui %106 : i1 to i32
    %c0_i32_84 = arith.constant 0 : i32
    %108 = arith.cmpi ne, %107, %c0_i32_84 : i32
    scf.if %108 {
      %c0_87 = arith.constant 0 : index
      %c0_88 = arith.constant 0 : index
      %c0_89 = arith.constant 0 : index
      %112 = vector.load %arg15[%c0_87, %c0_88, %c0_89] : memref<1x256x12xf32, #tpu.memory_space<vmem>>, vector<1x256x12xf32>
      %113 = vector.shape_cast %112 : vector<1x256x12xf32> to vector<256x12xf32>
      %114 = arith.addf %113, %102 : vector<256x12xf32>
      %c0_90 = arith.constant 0 : index
      %c0_91 = arith.constant 0 : index
      %c0_92 = arith.constant 0 : index
      %115 = vector.load %arg15[%c0_90, %c0_91, %c0_92] : memref<1x256x12xf32, #tpu.memory_space<vmem>>, vector<1x256x12xf32>
      %116 = vector.shape_cast %115 : vector<1x256x12xf32> to vector<256x12xf32>
      %117 = vector.shape_cast %114 : vector<256x12xf32> to vector<1x256x12xf32>
      tpu.vector_store %arg15[%c0_90, %c0_91, %c0_92], %117 {strides = array<i32>} : memref<1x256x12xf32, #tpu.memory_space<vmem>>, vector<1x256x12xf32>,
    } else {
    }
    %c0_i32_85 = arith.constant 0 : i32
    %109 = arith.cmpi eq, %arg1, %c0_i32_85 : i32
    %110 = arith.extui %109 : i1 to i32
    %c0_i32_86 = arith.constant 0 : i32
    %111 = arith.cmpi ne, %110, %c0_i32_86 : i32
    scf.if %111 {
      %c0_87 = arith.constant 0 : index
      %c0_88 = arith.constant 0 : index
      %c0_89 = arith.constant 0 : index
      %112 = vector.load %arg15[%c0_87, %c0_88, %c0_89] : memref<1x256x12xf32, #tpu.memory_space<vmem>>, vector<1x256x12xf32>
      %113 = vector.shape_cast %112 : vector<1x256x12xf32> to vector<256x12xf32>
      %cst_90 = arith.constant dense<0.000000e+00> : vector<12xf32>
      %114 = vector.multi_reduction <add>, %113, %cst_90 [0] : vector<256x12xf32> to vector<12xf32>
      %115 = vector.shape_cast %114 : vector<12xf32> to vector<1x12xf32>
      %cst_91 = arith.constant 2.560000e+02 : f32
      %116 = vector.broadcast %cst_91 : f32 to vector<1x12xf32>
      %117 = arith.divf %115, %116 : vector<1x12xf32>
      %118 = arith.truncf %117 : vector<1x12xf32> to vector<1x12xbf16>
      %c0_92 = arith.constant 0 : index
      %c0_93 = arith.constant 0 : index
      %119 = vector.load %arg9[%c0_92, %c0_93] : memref<12x3xbf16, #tpu.memory_space<vmem>>, vector<12x3xbf16>
      %cst_94 = arith.constant dense<0.000000e+00> : vector<1x3xf32>
      %120 = tpu.matmul %118, %119, %cst_94 {dimension_numbers = #tpu.dot_dimension_numbers<[1], [0], [0], [1], [0, 0, 1, 1], [], []>} : vector<1x12xbf16>, vector<12x3xbf16>, vector<1x3xf32> -> vector<1x3xf32>
      %c0_95 = arith.constant 0 : index
      %c0_96 = arith.constant 0 : index
      %121 = vector.load %arg10[%c0_95, %c0_96] : memref<1x3xf32, #tpu.memory_space<vmem>>, vector<1x3xf32>
      %122 = arith.addf %120, %121 : vector<1x3xf32>
      %cst_97 = arith.constant 0.000000e+00 : f32
      %123 = vector.broadcast %cst_97 : f32 to vector<1x3xf32>
      %124 = arith.maximumf %122, %123 : vector<1x3xf32>
      %125 = arith.truncf %124 : vector<1x3xf32> to vector<1x3xbf16>
      %c0_98 = arith.constant 0 : index
      %c0_99 = arith.constant 0 : index
      %126 = vector.load %arg11[%c0_98, %c0_99] : memref<3x12xbf16, #tpu.memory_space<vmem>>, vector<3x12xbf16>
      %cst_100 = arith.constant dense<0.000000e+00> : vector<1x12xf32>
      %127 = tpu.matmul %125, %126, %cst_100 {dimension_numbers = #tpu.dot_dimension_numbers<[1], [0], [0], [1], [0, 0, 1, 1], [], []>} : vector<1x3xbf16>, vector<3x12xbf16>, vector<1x12xf32> -> vector<1x12xf32>
      %c0_101 = arith.constant 0 : index
      %c0_102 = arith.constant 0 : index
      %128 = vector.load %arg12[%c0_101, %c0_102] : memref<1x12xf32, #tpu.memory_space<vmem>>, vector<1x12xf32>
      %129 = arith.addf %127, %128 : vector<1x12xf32>
      %cst_103 = arith.constant 3.000000e+00 : f32
      %130 = vector.broadcast %cst_103 : f32 to vector<1x12xf32>
      %131 = arith.addf %129, %130 : vector<1x12xf32>
      %cst_104 = arith.constant 0.000000e+00 : f32
      %cst_105 = arith.constant 6.000000e+00 : f32
      %132 = vector.broadcast %cst_104 : f32 to vector<1x12xf32>
      %133 = arith.maximumf %132, %131 : vector<1x12xf32>
      %134 = vector.broadcast %cst_105 : f32 to vector<1x12xf32>
      %135 = arith.minimumf %134, %133 : vector<1x12xf32>
      %cst_106 = arith.constant 0.166666672 : f32
      %136 = vector.broadcast %cst_106 : f32 to vector<1x12xf32>
      %137 = arith.mulf %135, %136 : vector<1x12xf32>
      %138 = vector.broadcast %137 : vector<1x12xf32> to vector<256x12xf32>
      %139 = arith.mulf %113, %138 : vector<256x12xf32>
      %c0_107 = arith.constant 0 : index
      %c0_108 = arith.constant 0 : index
      %c0_109 = arith.constant 0 : index
      %c0_110 = arith.constant 0 : index
      %140 = vector.load %arg2[%c0_107, %c0_108, %c0_109, %c0_110] : memref<1x1x256x8xbf16, #tpu.memory_space<vmem>>, vector<1x1x256x8xbf16>
      %141 = vector.shape_cast %140 : vector<1x1x256x8xbf16> to vector<256x8xbf16>
      %c0_111 = arith.constant 0 : index
      %c0_112 = arith.constant 0 : index
      %142 = vector.load %arg13[%c0_111, %c0_112] : memref<8x12xbf16, #tpu.memory_space<vmem>>, vector<8x12xbf16>
      %cst_113 = arith.constant dense<0.000000e+00> : vector<256x12xf32>
      %143 = tpu.matmul %141, %142, %cst_113 {dimension_numbers = #tpu.dot_dimension_numbers<[1], [0], [0], [1], [0, 0, 1, 1], [], []>} : vector<256x8xbf16>, vector<8x12xbf16>, vector<256x12xf32> -> vector<256x12xf32>
      %c0_114 = arith.constant 0 : index
      %c0_115 = arith.constant 0 : index
      %144 = vector.load %arg14[%c0_114, %c0_115] : memref<1x12xf32, #tpu.memory_space<vmem>>, vector<1x12xf32>
      %145 = vector.broadcast %144 : vector<1x12xf32> to vector<256x12xf32>
      %146 = arith.addf %143, %145 : vector<256x12xf32>
      %147 = arith.addf %139, %146 : vector<256x12xf32>
      %c0_116 = arith.constant 0 : index
      %c0_117 = arith.constant 0 : index
      %c0_118 = arith.constant 0 : index
      %148 = vector.load %arg15[%c0_116, %c0_117, %c0_118] : memref<1x256x12xf32, #tpu.memory_space<vmem>>, vector<1x256x12xf32>
      %149 = vector.shape_cast %148 : vector<1x256x12xf32> to vector<256x12xf32>
      %150 = vector.shape_cast %147 : vector<256x12xf32> to vector<1x256x12xf32>
      tpu.vector_store %arg15[%c0_116, %c0_117, %c0_118], %150 {strides = array<i32>} : memref<1x256x12xf32, #tpu.memory_space<vmem>>, vector<1x256x12xf32>,
    } else {
    }
    return
  }
  func.func @transform_0(%arg0: i32, %arg1: i32) -> (i32, i32, i32, i32) {
    %c0_i32 = arith.constant 0 : i32
    %c0_i32_0 = arith.constant 0 : i32
    %c0_i32_1 = arith.constant 0 : i32
    %c0_i32_2 = arith.constant 0 : i32
    return %arg0, %c0_i32, %c0_i32_0, %c0_i32_1 : i32, i32, i32, i32
  }
  func.func @transform_1(%arg0: i32, %arg1: i32) -> (i32, i32) {
    %c0_i32 = arith.constant 0 : i32
    %c0_i32_0 = arith.constant 0 : i32
    return %c0_i32, %arg1 : i32, i32
  }
  func.func @transform_2(%arg0: i32, %arg1: i32) -> (i32, i32) {
    %c0_i32 = arith.constant 0 : i32
    %c0_i32_0 = arith.constant 0 : i32
    return %c0_i32, %arg1 : i32, i32
  }
  func.func @transform_3(%arg0: i32, %arg1: i32) -> (i32, i32) {
    %c0_i32 = arith.constant 0 : i32
    %c0_i32_0 = arith.constant 0 : i32
    return %c0_i32, %arg1 : i32, i32
  }
  func.func @transform_4(%arg0: i32, %arg1: i32) -> (i32, i32) {
    %c0_i32 = arith.constant 0 : i32
    %c0_i32_0 = arith.constant 0 : i32
    return %c0_i32, %arg1 : i32, i32
  }
  func.func @transform_5(%arg0: i32, %arg1: i32) -> (i32, i32) {
    %c0_i32 = arith.constant 0 : i32
    %c0_i32_0 = arith.constant 0 : i32
    return %arg1, %c0_i32 : i32, i32
  }
  func.func @transform_6(%arg0: i32, %arg1: i32) -> (i32, i32) {
    %c0_i32 = arith.constant 0 : i32
    %c0_i32_0 = arith.constant 0 : i32
    %c0_i32_1 = arith.constant 0 : i32
    return %c0_i32, %c0_i32_0 : i32, i32
  }
  func.func @transform_7(%arg0: i32, %arg1: i32) -> (i32, i32) {
    %c0_i32 = arith.constant 0 : i32
    %c0_i32_0 = arith.constant 0 : i32
    %c0_i32_1 = arith.constant 0 : i32
    return %c0_i32, %c0_i32_0 : i32, i32
  }
  func.func @transform_8(%arg0: i32, %arg1: i32) -> (i32, i32) {
    %c0_i32 = arith.constant 0 : i32
    %c0_i32_0 = arith.constant 0 : i32
    %c0_i32_1 = arith.constant 0 : i32
    return %c0_i32, %c0_i32_0 : i32, i32
  }
  func.func @transform_9(%arg0: i32, %arg1: i32) -> (i32, i32) {
    %c0_i32 = arith.constant 0 : i32
    %c0_i32_0 = arith.constant 0 : i32
    %c0_i32_1 = arith.constant 0 : i32
    return %c0_i32, %c0_i32_0 : i32, i32
  }
  func.func @transform_10(%arg0: i32, %arg1: i32) -> (i32, i32) {
    %c0_i32 = arith.constant 0 : i32
    %c0_i32_0 = arith.constant 0 : i32
    %c0_i32_1 = arith.constant 0 : i32
    return %c0_i32, %c0_i32_0 : i32, i32
  }
  func.func @transform_11(%arg0: i32, %arg1: i32) -> (i32, i32) {
    %c0_i32 = arith.constant 0 : i32
    %c0_i32_0 = arith.constant 0 : i32
    %c0_i32_1 = arith.constant 0 : i32
    return %c0_i32, %c0_i32_0 : i32, i32
  }
  func.func @transform_12(%arg0: i32, %arg1: i32) -> (i32, i32) {
    %c0_i32 = arith.constant 0 : i32
    %c0_i32_0 = arith.constant 0 : i32
    %c0_i32_1 = arith.constant 0 : i32
    return %c0_i32, %c0_i32_0 : i32, i32
  }
  func.func @transform_13(%arg0: i32, %arg1: i32) -> (i32, i32, i32) {
    %c0_i32 = arith.constant 0 : i32
    %c0_i32_0 = arith.constant 0 : i32
    %c0_i32_1 = arith.constant 0 : i32
    return %arg0, %c0_i32, %c0_i32_0 : i32, i32, i32
  }
}

</mosaic_0001>

<llo_original>
// kernel: tpu_custom_call.1
$region0: #{tpu_custom_call.1}
  #allocation0 [shape = 'u32[]', space=smem, size = 0x4, offset = 0x4, fixed_abs, tag = 'smem constant byte address 0x4 - core index']
  #allocation1 [shape = 'u32[72,128]{1,0:T(1,128)}', space=vmem, size = 0x9000, scoped, tag = 'internal scratch']
  #allocation2 [shape = 'f32[1,18,1,18,24]{4,3,2,1,0:T(8,128)}', space=vmem, size = 0x36000, scoped, tag = 'scratch operand']
  %s0 = inlined_call_operand.vmem [shape: bf16[2,1,256,8], index: 0, kind: input, shape index: {}]
  %s1 = inlined_call_operand.vmem [shape: bf16[8,24], index: 1, kind: input, shape index: {}]
  %s2 = inlined_call_operand.vmem [shape: f32[1,24], index: 2, kind: input, shape index: {}]
  %s3 = inlined_call_operand.vmem [shape: f32[9,24], index: 3, kind: input, shape index: {}]
  %s4 = inlined_call_operand.vmem [shape: f32[1,24], index: 4, kind: input, shape index: {}]
  %s5 = inlined_call_operand.vmem [shape: bf16[24,12], index: 5, kind: input, shape index: {}]
  %s6 = inlined_call_operand.vmem [shape: f32[1,12], index: 6, kind: input, shape index: {}]
  %s7 = inlined_call_operand.vmem [shape: bf16[12,3], index: 7, kind: input, shape index: {}]
  %s8 = inlined_call_operand.vmem [shape: f32[1,3], index: 8, kind: input, shape index: {}]
  %s9 = inlined_call_operand.vmem [shape: bf16[3,12], index: 9, kind: input, shape index: {}]
  %s10 = inlined_call_operand.vmem [shape: f32[1,12], index: 10, kind: input, shape index: {}]
  %s11 = inlined_call_operand.vmem [shape: bf16[8,12], index: 11, kind: input, shape index: {}]
  %s12 = inlined_call_operand.vmem [shape: f32[1,12], index: 12, kind: input, shape index: {}]
  %s13 = inlined_call_operand.vmem [shape: f32[2,256,12], index: 13, kind: output, shape index: {}]
  %s14 = sld [smem:[#allocation0]]
  $region101: #{tpu_custom_call.1} parent=0
    _
  %s16 = ssub.s32 1, %s14
  %s17 = scalar_select 0, %s16, %s14
  loop: start=0, step=1, limit=4
  $region2: #{tpu_custom_call.1} parent=0 // loop_pre_header
    _
  $region3: #{tpu_custom_call.1} parent=0 // loop_header
    %s19 = sphi 0, %s23
    %p20 = scmp.ge.s32.totalorder %s19, 4
    %s26 = sphi 0, %s38
    %s27 = sphi 0, %s34
    %s28 = sphi 0, %s26
    %s29 = sphi 0, %s27
    %s30 = sphi 0, %s28
    %s31 = sphi 0, %s29
    %s41 = sphi 0, %s43
    %s44 = sphi 0, %s41
    %s45 = sphi 0, %s44
    %s61 = sphi 0, %s45
    %s67 = sphi 0, %s69
    %s70 = sphi 0, %s67
    %s71 = sphi 0, %s70
    %s87 = sphi 0, %s71
    %s93 = sphi 0, %s95
    %s96 = sphi 0, %s93
    %s97 = sphi 0, %s96
    %s113 = sphi 0, %s97
    %s119 = sphi 0, %s121
    %s122 = sphi 0, %s119
    %s123 = sphi 0, %s122
    %s139 = sphi 0, %s123
    %s145 = sphi 0, %s147
    %s148 = sphi 0, %s145
    %s149 = sphi 0, %s148
    %s165 = sphi 0, %s149
    %s171 = sphi 0, %s173
    %s174 = sphi 0, %s171
    %s175 = sphi 0, %s174
    %s191 = sphi 0, %s175
    %s195 = sphi 0, %s195
    %s197 = sphi 0, %s195
    %s198 = sphi 0, %s197
    %s212 = sphi 0, %s198
    %s216 = sphi 0, %s216
    %s218 = sphi 0, %s216
    %s219 = sphi 0, %s218
    %s233 = sphi 0, %s219
    %s237 = sphi 0, %s237
    %s239 = sphi 0, %s237
    %s240 = sphi 0, %s239
    %s254 = sphi 0, %s240
    %s258 = sphi 0, %s258
    %s260 = sphi 0, %s258
    %s261 = sphi 0, %s260
    %s275 = sphi 0, %s261
    %s279 = sphi 0, %s279
    %s281 = sphi 0, %s279
    %s282 = sphi 0, %s281
    %s296 = sphi 0, %s282
    %s300 = sphi 0, %s300
    %s302 = sphi 0, %s300
    %s303 = sphi 0, %s302
    %s317 = sphi 0, %s303
    %s321 = sphi 0, %s321
    %s323 = sphi 0, %s321
    %s324 = sphi 0, %s323
    %s338 = sphi 0, %s324
    %s344 = sphi 0, %s346
    %s347 = sphi 0, %s344
    %s348 = sphi 0, %s347
    %s364 = sphi 0, %s348
  $region4: #{tpu_custom_call.1} parent=0 // loop_header_branch
    %22 = sbr.rel (%p20) target = $region8
  $region5: #{tpu_custom_call.1} parent=0 // loop_body
    %s24 = ssub.s32 %s19, 1
    %s25 = ssub.s32 %s19, 2
    %s32 = sadd.s32 1, %s27
    %p33 = scmp.ge.s32.totalorder %s32, 1
    %s34 = scalar_select %p33, 0, %s32
    %s35 = sadd.s32 1, %s26
    %s36 = scalar_select %p33, %s35, %s26
    %p37 = scmp.ge.s32.totalorder %s36, 2
    %s38 = scalar_select %p37, 0, %s36
    %s39 = ssub.s32 %s26, %s38
    %p40 = scmp.eq.s32.totalorder %s39, 0
    %s42 = sadd.s32 %s41, 1
    %s43 = scalar_select %p40, %s41, %s42
    %p46 = pneg %p40
    %p47 = scmp.eq.s32.totalorder %s19, 1
    %p48 = por %p46, %p47
    %p49 = scmp.ne.s32.totalorder %s41, %s44
    %p50 = scmp.eq.s32.totalorder %s19, 0
    %p51 = por %p49, %p50
    %p52 = scmp.ne.s32.totalorder %s41, %s44
    %p53 = scmp.eq.s32.totalorder %s24, 1
    %p54 = por %p52, %p53
    %p55 = scmp.ne.s32.totalorder %s44, %s45
    %p56 = scmp.eq.s32.totalorder %s24, 0
    %p57 = por %p55, %p56
    %p58 = scmp.ne.s32.totalorder %s44, %s45
    %p59 = scmp.eq.s32.totalorder %s25, 1
    %p60 = por %p58, %p59
    %p62 = scmp.ne.s32.totalorder %s45, %s61
    %p63 = scmp.eq.s32.totalorder %s25, 0
    %p64 = por %p62, %p63
    %s65 = ssub.s32 %s27, %s34
    %p66 = scmp.eq.s32.totalorder %s65, 0
    %s68 = sadd.s32 %s67, 1
    %s69 = scalar_select %p66, %s67, %s68
    %p72 = pneg %p66
    %p73 = scmp.eq.s32.totalorder %s19, 1
    %p74 = por %p72, %p73
    %p75 = scmp.ne.s32.totalorder %s67, %s70
    %p76 = scmp.eq.s32.totalorder %s19, 0
    %p77 = por %p75, %p76
    %p78 = scmp.ne.s32.totalorder %s67, %s70
    %p79 = scmp.eq.s32.totalorder %s24, 1
    %p80 = por %p78, %p79
    %p81 = scmp.ne.s32.totalorder %s70, %s71
    %p82 = scmp.eq.s32.totalorder %s24, 0
    %p83 = por %p81, %p82
    %p84 = scmp.ne.s32.totalorder %s70, %s71
    %p85 = scmp.eq.s32.totalorder %s25, 1
    %p86 = por %p84, %p85
    %p88 = scmp.ne.s32.totalorder %s71, %s87
    %p89 = scmp.eq.s32.totalorder %s25, 0
    %p90 = por %p88, %p89
    %s91 = ssub.s32 %s27, %s34
    %p92 = scmp.eq.s32.totalorder %s91, 0
    %s94 = sadd.s32 %s93, 1
    %s95 = scalar_select %p92, %s93, %s94
    %p98 = pneg %p92
    %p99 = scmp.eq.s32.totalorder %s19, 1
    %p100 = por %p98, %p99
    %p101 = scmp.ne.s32.totalorder %s93, %s96
    %p102 = scmp.eq.s32.totalorder %s19, 0
    %p103 = por %p101, %p102
    %p104 = scmp.ne.s32.totalorder %s93, %s96
    %p105 = scmp.eq.s32.totalorder %s24, 1
    %p106 = por %p104, %p105
    %p107 = scmp.ne.s32.totalorder %s96, %s97
    %p108 = scmp.eq.s32.totalorder %s24, 0
    %p109 = por %p107, %p108
    %p110 = scmp.ne.s32.totalorder %s96, %s97
    %p111 = scmp.eq.s32.totalorder %s25, 1
    %p112 = por %p110, %p111
    %p114 = scmp.ne.s32.totalorder %s97, %s113
    %p115 = scmp.eq.s32.totalorder %s25, 0
    %p116 = por %p114, %p115
    %s117 = ssub.s32 %s27, %s34
    %p118 = scmp.eq.s32.totalorder %s117, 0
    %s120 = sadd.s32 %s119, 1
    %s121 = scalar_select %p118, %s119, %s120
    %p124 = pneg %p118
    %p125 = scmp.eq.s32.totalorder %s19, 1
    %p126 = por %p124, %p125
    %p127 = scmp.ne.s32.totalorder %s119, %s122
    %p128 = scmp.eq.s32.totalorder %s19, 0
    %p129 = por %p127, %p128
    %p130 = scmp.ne.s32.totalorder %s119, %s122
    %p131 = scmp.eq.s32.totalorder %s24, 1
    %p132 = por %p130, %p131
    %p133 = scmp.ne.s32.totalorder %s122, %s123
    %p134 = scmp.eq.s32.totalorder %s24, 0
    %p135 = por %p133, %p134
    %p136 = scmp.ne.s32.totalorder %s122, %s123
    %p137 = scmp.eq.s32.totalorder %s25, 1
    %p138 = por %p136, %p137
    %p140 = scmp.ne.s32.totalorder %s123, %s139
    %p141 = scmp.eq.s32.totalorder %s25, 0
    %p142 = por %p140, %p141
    %s143 = ssub.s32 %s27, %s34
    %p144 = scmp.eq.s32.totalorder %s143, 0
    %s146 = sadd.s32 %s145, 1
    %s147 = scalar_select %p144, %s145, %s146
    %p150 = pneg %p144
    %p151 = scmp.eq.s32.totalorder %s19, 1
    %p152 = por %p150, %p151
    %p153 = scmp.ne.s32.totalorder %s145, %s148
    %p154 = scmp.eq.s32.totalorder %s19, 0
    %p155 = por %p153, %p154
    %p156 = scmp.ne.s32.totalorder %s145, %s148
    %p157 = scmp.eq.s32.totalorder %s24, 1
    %p158 = por %p156, %p157
    %p159 = scmp.ne.s32.totalorder %s148, %s149
    %p160 = scmp.eq.s32.totalorder %s24, 0
    %p161 = por %p159, %p160
    %p162 = scmp.ne.s32.totalorder %s148, %s149
    %p163 = scmp.eq.s32.totalorder %s25, 1
    %p164 = por %p162, %p163
    %p166 = scmp.ne.s32.totalorder %s149, %s165
    %p167 = scmp.eq.s32.totalorder %s25, 0
    %p168 = por %p166, %p167
    %s169 = ssub.s32 %s27, %s34
    %p170 = scmp.eq.s32.totalorder %s169, 0
    %s172 = sadd.s32 %s171, 1
    %s173 = scalar_select %p170, %s171, %s172
    %p176 = pneg %p170
    %p177 = scmp.eq.s32.totalorder %s19, 1
    %p178 = por %p176, %p177
    %p179 = scmp.ne.s32.totalorder %s171, %s174
    %p180 = scmp.eq.s32.totalorder %s19, 0
    %p181 = por %p179, %p180
    %p182 = scmp.ne.s32.totalorder %s171, %s174
    %p183 = scmp.eq.s32.totalorder %s24, 1
    %p184 = por %p182, %p183
    %p185 = scmp.ne.s32.totalorder %s174, %s175
    %p186 = scmp.eq.s32.totalorder %s24, 0
    %p187 = por %p185, %p186
    %p188 = scmp.ne.s32.totalorder %s174, %s175
    %p189 = scmp.eq.s32.totalorder %s25, 1
    %p190 = por %p188, %p189
    %p192 = scmp.ne.s32.totalorder %s175, %s191
    %p193 = scmp.eq.s32.totalorder %s25, 0
    %p194 = por %p192, %p193
    %s196 = sadd.s32 %s195, 1
    %p199 = scmp.eq.s32.totalorder %s19, 1
    %p200 = scmp.ne.s32.totalorder %s195, %s197
    %p201 = scmp.eq.s32.totalorder %s19, 0
    %p202 = por %p200, %p201
    %p203 = scmp.ne.s32.totalorder %s195, %s197
    %p204 = scmp.eq.s32.totalorder %s24, 1
    %p205 = por %p203, %p204
    %p206 = scmp.ne.s32.totalorder %s197, %s198
    %p207 = scmp.eq.s32.totalorder %s24, 0
    %p208 = por %p206, %p207
    %p209 = scmp.ne.s32.totalorder %s197, %s198
    %p210 = scmp.eq.s32.totalorder %s25, 1
    %p211 = por %p209, %p210
    %p213 = scmp.ne.s32.totalorder %s198, %s212
    %p214 = scmp.eq.s32.totalorder %s25, 0
    %p215 = por %p213, %p214
    %s217 = sadd.s32 %s216, 1
    %p220 = scmp.eq.s32.totalorder %s19, 1
    %p221 = scmp.ne.s32.totalorder %s216, %s218
    %p222 = scmp.eq.s32.totalorder %s19, 0
    %p223 = por %p221, %p222
    %p224 = scmp.ne.s32.totalorder %s216, %s218
    %p225 = scmp.eq.s32.totalorder %s24, 1
    %p226 = por %p224, %p225
    %p227 = scmp.ne.s32.totalorder %s218, %s219
    %p228 = scmp.eq.s32.totalorder %s24, 0
    %p229 = por %p227, %p228
    %p230 = scmp.ne.s32.totalorder %s218, %s219
    %p231 = scmp.eq.s32.totalorder %s25, 1
    %p232 = por %p230, %p231
    %p234 = scmp.ne.s32.totalorder %s219, %s233
    %p235 = scmp.eq.s32.totalorder %s25, 0
    %p236 = por %p234, %p235
    %s238 = sadd.s32 %s237, 1
    %p241 = scmp.eq.s32.totalorder %s19, 1
    %p242 = scmp.ne.s32.totalorder %s237, %s239
    %p243 = scmp.eq.s32.totalorder %s19, 0
    %p244 = por %p242, %p243
    %p245 = scmp.ne.s32.totalorder %s237, %s239
    %p246 = scmp.eq.s32.totalorder %s24, 1
    %p247 = por %p245, %p246
    %p248 = scmp.ne.s32.totalorder %s239, %s240
    %p249 = scmp.eq.s32.totalorder %s24, 0
    %p250 = por %p248, %p249
    %p251 = scmp.ne.s32.totalorder %s239, %s240
    %p252 = scmp.eq.s32.totalorder %s25, 1
    %p253 = por %p251, %p252
    %p255 = scmp.ne.s32.totalorder %s240, %s254
    %p256 = scmp.eq.s32.totalorder %s25, 0
    %p257 = por %p255, %p256
    %s259 = sadd.s32 %s258, 1
    %p262 = scmp.eq.s32.totalorder %s19, 1
    %p263 = scmp.ne.s32.totalorder %s258, %s260
    %p264 = scmp.eq.s32.totalorder %s19, 0
    %p265 = por %p263, %p264
    %p266 = scmp.ne.s32.totalorder %s258, %s260
    %p267 = scmp.eq.s32.totalorder %s24, 1
    %p268 = por %p266, %p267
    %p269 = scmp.ne.s32.totalorder %s260, %s261
    %p270 = scmp.eq.s32.totalorder %s24, 0
    %p271 = por %p269, %p270
    %p272 = scmp.ne.s32.totalorder %s260, %s261
    %p273 = scmp.eq.s32.totalorder %s25, 1
    %p274 = por %p272, %p273
    %p276 = scmp.ne.s32.totalorder %s261, %s275
    %p277 = scmp.eq.s32.totalorder %s25, 0
    %p278 = por %p276, %p277
    %s280 = sadd.s32 %s279, 1
    %p283 = scmp.eq.s32.totalorder %s19, 1
    %p284 = scmp.ne.s32.totalorder %s279, %s281
    %p285 = scmp.eq.s32.totalorder %s19, 0
    %p286 = por %p284, %p285
    %p287 = scmp.ne.s32.totalorder %s279, %s281
    %p288 = scmp.eq.s32.totalorder %s24, 1
    %p289 = por %p287, %p288
    %p290 = scmp.ne.s32.totalorder %s281, %s282
    %p291 = scmp.eq.s32.totalorder %s24, 0
    %p292 = por %p290, %p291
    %p293 = scmp.ne.s32.totalorder %s281, %s282
    %p294 = scmp.eq.s32.totalorder %s25, 1
    %p295 = por %p293, %p294
    %p297 = scmp.ne.s32.totalorder %s282, %s296
    %p298 = scmp.eq.s32.totalorder %s25, 0
    %p299 = por %p297, %p298
    %s301 = sadd.s32 %s300, 1
    %p304 = scmp.eq.s32.totalorder %s19, 1
    %p305 = scmp.ne.s32.totalorder %s300, %s302
    %p306 = scmp.eq.s32.totalorder %s19, 0
    %p307 = por %p305, %p306
    %p308 = scmp.ne.s32.totalorder %s300, %s302
    %p309 = scmp.eq.s32.totalorder %s24, 1
    %p310 = por %p308, %p309
    %p311 = scmp.ne.s32.totalorder %s302, %s303
    %p312 = scmp.eq.s32.totalorder %s24, 0
    %p313 = por %p311, %p312
    %p314 = scmp.ne.s32.totalorder %s302, %s303
    %p315 = scmp.eq.s32.totalorder %s25, 1
    %p316 = por %p314, %p315
    %p318 = scmp.ne.s32.totalorder %s303, %s317
    %p319 = scmp.eq.s32.totalorder %s25, 0
    %p320 = por %p318, %p319
    %s322 = sadd.s32 %s321, 1
    %p325 = scmp.eq.s32.totalorder %s19, 1
    %p326 = scmp.ne.s32.totalorder %s321, %s323
    %p327 = scmp.eq.s32.totalorder %s19, 0
    %p328 = por %p326, %p327
    %p329 = scmp.ne.s32.totalorder %s321, %s323
    %p330 = scmp.eq.s32.totalorder %s24, 1
    %p331 = por %p329, %p330
    %p332 = scmp.ne.s32.totalorder %s323, %s324
    %p333 = scmp.eq.s32.totalorder %s24, 0
    %p334 = por %p332, %p333
    %p335 = scmp.ne.s32.totalorder %s323, %s324
    %p336 = scmp.eq.s32.totalorder %s25, 1
    %p337 = por %p335, %p336
    %p339 = scmp.ne.s32.totalorder %s324, %s338
    %p340 = scmp.eq.s32.totalorder %s25, 0
    %p341 = por %p339, %p340
    %s342 = ssub.s32 %s26, %s38
    %p343 = scmp.eq.s32.totalorder %s342, 0
    %s345 = sadd.s32 %s344, 1
    %s346 = scalar_select %p343, %s344, %s345
    %p349 = pneg %p343
    %p350 = scmp.eq.s32.totalorder %s19, 1
    %p351 = por %p349, %p350
    %p352 = scmp.ne.s32.totalorder %s344, %s347
    %p353 = scmp.eq.s32.totalorder %s19, 0
    %p354 = por %p352, %p353
    %p355 = scmp.ne.s32.totalorder %s344, %s347
    %p356 = scmp.eq.s32.totalorder %s24, 1
    %p357 = por %p355, %p356
    %p358 = scmp.ne.s32.totalorder %s347, %s348
    %p359 = scmp.eq.s32.totalorder %s24, 0
    %p360 = por %p358, %p359
    %p361 = scmp.ne.s32.totalorder %s347, %s348
    %p362 = scmp.eq.s32.totalorder %s25, 1
    %p363 = por %p361, %p362
    %p365 = scmp.ne.s32.totalorder %s348, %s364
    %p366 = scmp.eq.s32.totalorder %s25, 0
    %p367 = por %p365, %p366
    %p368 = scmp.le.s32.totalorder 1, %s19
    %p369 = scmp.lt.s32.totalorder %s19, 3
    %p370 = pnand %p368, %p369
    %p371 = pneg %p370
    // Predicated region
    $region9: #{tpu_custom_call.1} parent=5 // pred_check
      _
    $region10: #{tpu_custom_call.1} parent=5 // pred_check_branch
      %373 = sbr.rel (%p370) target = $region12
    $region11: #{tpu_custom_call.1} parent=5 // pred_region
      %s374 = ssub.s32 %s19, 1
      // Predicated region
      $region13: #{tpu_custom_call.1} parent=11 // pred_check
        %p375 = pneg %p83
      $region14: #{tpu_custom_call.1} parent=11 // pred_check_branch
        %377 = sbr.rel (%p375) target = $region16
      $region15: #{tpu_custom_call.1} parent=11 // pred_region
        %p378 = scmp.lt.s32.totalorder %s29, 0
        %s379 = scalar_select %p378, %s29, 0
        %s380 = smul.addr %s379, 4
        %s381 = scalar_lea.vmem %s1, %s380
      $region16: #{tpu_custom_call.1} parent=11 // pred_fallthru
        _
      // Predicated region
      $region17: #{tpu_custom_call.1} parent=11 // pred_check
        %p382 = pneg %p109
      $region18: #{tpu_custom_call.1} parent=11 // pred_check_branch
        %384 = sbr.rel (%p382) target = $region20
      $region19: #{tpu_custom_call.1} parent=11 // pred_region
        %p385 = scmp.lt.s32.totalorder %s29, 0
        %s386 = scalar_select %p385, %s29, 0
        %s387 = scalar_lea.vmem %s2, %s386
      $region20: #{tpu_custom_call.1} parent=11 // pred_fallthru
        _
      // Predicated region
      $region21: #{tpu_custom_call.1} parent=11 // pred_check
        %p388 = pneg %p135
      $region22: #{tpu_custom_call.1} parent=11 // pred_check_branch
        %390 = sbr.rel (%p388) target = $region24
      $region23: #{tpu_custom_call.1} parent=11 // pred_region
        %p391 = scmp.lt.s32.totalorder %s29, 0
        %s392 = scalar_select %p391, %s29, 0
        %s393 = smul.addr %s392, 8
        %s394 = scalar_lea.vmem %s3, %s393
      $region24: #{tpu_custom_call.1} parent=11 // pred_fallthru
        _
      // Predicated region
      $region25: #{tpu_custom_call.1} parent=11 // pred_check
        %p395 = pneg %p161
      $region26: #{tpu_custom_call.1} parent=11 // pred_check_branch
        %397 = sbr.rel (%p395) target = $region28
      $region27: #{tpu_custom_call.1} parent=11 // pred_region
        %p398 = scmp.lt.s32.totalorder %s29, 0
        %s399 = scalar_select %p398, %s29, 0
        %s400 = scalar_lea.vmem %s4, %s399
      $region28: #{tpu_custom_call.1} parent=11 // pred_fallthru
        _
      // Predicated region
      $region29: #{tpu_custom_call.1} parent=11 // pred_check
        %p401 = pneg %p187
      $region30: #{tpu_custom_call.1} parent=11 // pred_check_branch
        %403 = sbr.rel (%p401) target = $region32
      $region31: #{tpu_custom_call.1} parent=11 // pred_region
        %s404 = smul.u32 3, %s29
        %p405 = scmp.lt.s32.totalorder %s404, 2
        %s406 = scalar_select %p405, %s404, 2
        %s407 = smul.addr %s406, 4
        %s408 = scalar_lea.vmem %s5, %s407
        %s409 = smul.u32 3, %s29
      $region32: #{tpu_custom_call.1} parent=11 // pred_fallthru
        _
      // Predicated region
      $region33: #{tpu_custom_call.1} parent=11 // pred_check
        %p410 = pneg %p208
      $region34: #{tpu_custom_call.1} parent=11 // pred_check_branch
        %412 = sbr.rel (%p410) target = $region36
      $region35: #{tpu_custom_call.1} parent=11 // pred_region
        _
      $region36: #{tpu_custom_call.1} parent=11 // pred_fallthru
        _
      // Predicated region
      $region37: #{tpu_custom_call.1} parent=11 // pred_check
        %p413 = pneg %p229
      $region38: #{tpu_custom_call.1} parent=11 // pred_check_branch
        %415 = sbr.rel (%p413) target = $region40
      $region39: #{tpu_custom_call.1} parent=11 // pred_region
        _
      $region40: #{tpu_custom_call.1} parent=11 // pred_fallthru
        _
      // Predicated region
      $region41: #{tpu_custom_call.1} parent=11 // pred_check
        %p416 = pneg %p250
      $region42: #{tpu_custom_call.1} parent=11 // pred_check_branch
        %418 = sbr.rel (%p416) target = $region44
      $region43: #{tpu_custom_call.1} parent=11 // pred_region
        _
      $region44: #{tpu_custom_call.1} parent=11 // pred_fallthru
        _
      // Predicated region
      $region45: #{tpu_custom_call.1} parent=11 // pred_check
        %p419 = pneg %p271
      $region46: #{tpu_custom_call.1} parent=11 // pred_check_branch
        %421 = sbr.rel (%p419) target = $region48
      $region47: #{tpu_custom_call.1} parent=11 // pred_region
        _
      $region48: #{tpu_custom_call.1} parent=11 // pred_fallthru
        _
      // Predicated region
      $region49: #{tpu_custom_call.1} parent=11 // pred_check
        %p422 = pneg %p292
      $region50: #{tpu_custom_call.1} parent=11 // pred_check_branch
        %424 = sbr.rel (%p422) target = $region52
      $region51: #{tpu_custom_call.1} parent=11 // pred_region
        _
      $region52: #{tpu_custom_call.1} parent=11 // pred_fallthru
        _
      // Predicated region
      $region53: #{tpu_custom_call.1} parent=11 // pred_check
        %p425 = pneg %p313
      $region54: #{tpu_custom_call.1} parent=11 // pred_check_branch
        %427 = sbr.rel (%p425) target = $region56
      $region55: #{tpu_custom_call.1} parent=11 // pred_region
        _
      $region56: #{tpu_custom_call.1} parent=11 // pred_fallthru
        _
      // Predicated region
      $region57: #{tpu_custom_call.1} parent=11 // pred_check
        %p428 = pneg %p334
      $region58: #{tpu_custom_call.1} parent=11 // pred_check_branch
        %430 = sbr.rel (%p428) target = $region60
      $region59: #{tpu_custom_call.1} parent=11 // pred_region
        _
      $region60: #{tpu_custom_call.1} parent=11 // pred_fallthru
        _
    $region12: #{tpu_custom_call.1} parent=5 // pred_fallthru
      _
    %p431 = scmp.lt.s32.totalorder %s19, 2
    // Predicated region
    $region61: #{tpu_custom_call.1} parent=5 // pred_check
      %p432 = pneg %p431
    $region62: #{tpu_custom_call.1} parent=5 // pred_check_branch
      %434 = sbr.rel (%p432) target = $region64
    $region63: #{tpu_custom_call.1} parent=5 // pred_region
      // Predicated region
      $region65: #{tpu_custom_call.1} parent=63 // pred_check
        %p435 = pneg %p51
      $region66: #{tpu_custom_call.1} parent=63 // pred_check_branch
        %437 = sbr.rel (%p435) target = $region68
      $region67: #{tpu_custom_call.1} parent=63 // pred_region
        %p438 = scmp.lt.s32.totalorder %s26, 1
        %s439 = scalar_select %p438, %s26, 1
        %s440 = smul.addr %s439, 32
        %s441 = smul.addr %s440, 4
        %s442 = scalar_lea.vmem %s0, %s441
      $region68: #{tpu_custom_call.1} parent=63 // pred_fallthru
        _
    $region64: #{tpu_custom_call.1} parent=5 // pred_fallthru
      _
    %p443 = scmp.le.s32.totalorder 1, %s19
    %p444 = scmp.lt.s32.totalorder %s19, 3
    %p445 = pnand %p443, %p444
    %p446 = pneg %p445
    // Predicated region
    $region69: #{tpu_custom_call.1} parent=5 // pred_check
      _
    $region70: #{tpu_custom_call.1} parent=5 // pred_check_branch
      %448 = sbr.rel (%p445) target = $region72
    $region71: #{tpu_custom_call.1} parent=5 // pred_region
      %s449 = ssub.s32 %s19, 1
      %p450 = scmp.lt.s32.totalorder %s28, 1
      %s451 = scalar_select %p450, %s28, 1
      %s452 = smul.addr %s451, 32
      %s453 = smul.addr %s452, 4
      %s454 = scalar_lea.vmem %s0, %s453
      %p455 = pneg %p57
      %p456 = pneg %p54
      %p457 = scmp.lt.s32.totalorder %s29, 0
      %s458 = scalar_select %p457, %s29, 0
      %s459 = smul.addr %s458, 4
      %s460 = scalar_lea.vmem %s1, %s459
      %p461 = pneg %p83
      %p462 = pneg %p80
      %p463 = scmp.lt.s32.totalorder %s29, 0
      %s464 = scalar_select %p463, %s29, 0
      %s465 = scalar_lea.vmem %s2, %s464
      %p466 = pneg %p109
      %p467 = pneg %p106
      %p468 = scmp.lt.s32.totalorder %s29, 0
      %s469 = scalar_select %p468, %s29, 0
      %s470 = smul.addr %s469, 8
      %s471 = scalar_lea.vmem %s3, %s470
      %p472 = pneg %p135
      %p473 = pneg %p132
      %p474 = scmp.lt.s32.totalorder %s29, 0
      %s475 = scalar_select %p474, %s29, 0
      %s476 = scalar_lea.vmem %s4, %s475
      %p477 = pneg %p161
      %p478 = pneg %p158
      %s479 = smul.u32 3, %s29
      %p480 = scmp.lt.s32.totalorder %s479, 2
      %s481 = scalar_select %p480, %s479, 2
      %s482 = smul.addr %s481, 4
      %s483 = scalar_lea.vmem %s5, %s482
      %p484 = pneg %p187
      %p485 = pneg %p184
      %p486 = pneg %p208
      %p487 = pneg %p205
      %p488 = pneg %p229
      %p489 = pneg %p226
      %p490 = pneg %p250
      %p491 = pneg %p247
      %p492 = pneg %p271
      %p493 = pneg %p268
      %p494 = pneg %p292
      %p495 = pneg %p289
      %p496 = pneg %p313
      %p497 = pneg %p310
      %p498 = pneg %p334
      %p499 = pneg %p331
      %p500 = pneg %p360
      %p501 = pneg %p357
      %p502 = scmp.lt.s32.totalorder %s28, 1
      %s503 = scalar_select %p502, %s28, 1
      %s504 = smul.addr %s503, 32
      %s505 = smul.addr %s504, 8
      %s506 = scalar_lea.vmem %s13, %s505
      %p507 = scmp.lt.s32.totalorder %s28, 1
      %s508 = scalar_select %p507, %s28, 1
      %s509 = smul.addr %s508, 32
      %s510 = smul.addr %s509, 4
      %s511 = scalar_lea.vmem %s0, %s510
      %p512 = scmp.lt.s32.totalorder %s29, 0
      %s513 = scalar_select %p512, %s29, 0
      %s514 = smul.addr %s513, 4
      %s515 = scalar_lea.vmem %s1, %s514
      %p516 = scmp.lt.s32.totalorder %s29, 0
      %s517 = scalar_select %p516, %s29, 0
      %s518 = scalar_lea.vmem %s2, %s517
      %p519 = scmp.lt.s32.totalorder %s29, 0
      %s520 = scalar_select %p519, %s29, 0
      %s521 = smul.addr %s520, 8
      %s522 = scalar_lea.vmem %s3, %s521
      %p523 = scmp.lt.s32.totalorder %s29, 0
      %s524 = scalar_select %p523, %s29, 0
      %s525 = scalar_lea.vmem %s4, %s524
      %s526 = smul.u32 3, %s29
      %p527 = scmp.lt.s32.totalorder %s526, 2
      %s528 = scalar_select %p527, %s526, 2
      %s529 = smul.addr %s528, 4
      %s530 = scalar_lea.vmem %s5, %s529
      %s531 = smul.u32 3, %s29
      %p532 = scmp.lt.s32.totalorder %s28, 1
      %s533 = scalar_select %p532, %s28, 1
      %s534 = smul.addr %s533, 32
      %s535 = smul.addr %s534, 8
      %s536 = scalar_lea.vmem %s13, %s535
      %p538 = scmp.eq.s32.totalorder %s29, 0
      // Predicated region
      $region73: #{tpu_custom_call.1} parent=71 // pred_check
        %p539 = pneg %p538
      $region74: #{tpu_custom_call.1} parent=71 // pred_check_branch
        %541 = sbr.rel (%p539) target = $region76
      $region75: #{tpu_custom_call.1} parent=71 // pred_region
        %vm542 = vcmask 195584
        %543 = vst.msk [vmem:[#allocation2] sm:$0xff] %vm542, 0.0
        %544 = vst.msk [vmem:[#allocation2 + $0x8] sm:$0xff] %vm542, 0.0
        %vm545 = vcmask 189440
        %546 = vst.msk [vmem:[#allocation2 + $0x10] sm:$0x3] %vm545, 0.0
        %547 = vst.msk [vmem:[#allocation2 + $0x18] sm:$0xff] %vm542, 0.0
        %548 = vst.msk [vmem:[#allocation2 + $0x20] sm:$0xff] %vm542, 0.0
        %549 = vst.msk [vmem:[#allocation2 + $0x28] sm:$0x3] %vm545, 0.0
        %550 = vst.msk [vmem:[#allocation2 + $0x30] sm:$0xff] %vm542, 0.0
        %551 = vst.msk [vmem:[#allocation2 + $0x38] sm:$0xff] %vm542, 0.0
        %552 = vst.msk [vmem:[#allocation2 + $0x40] sm:$0x3] %vm545, 0.0
        %553 = vst.msk [vmem:[#allocation2 + $0x48] sm:$0xff] %vm542, 0.0
        %554 = vst.msk [vmem:[#allocation2 + $0x50] sm:$0xff] %vm542, 0.0
        %555 = vst.msk [vmem:[#allocation2 + $0x58] sm:$0x3] %vm545, 0.0
        %556 = vst.msk [vmem:[#allocation2 + $0x60] sm:$0xff] %vm542, 0.0
        %557 = vst.msk [vmem:[#allocation2 + $0x68] sm:$0xff] %vm542, 0.0
        %558 = vst.msk [vmem:[#allocation2 + $0x70] sm:$0x3] %vm545, 0.0
        %559 = vst.msk [vmem:[#allocation2 + $0x78] sm:$0xff] %vm542, 0.0
        %560 = vst.msk [vmem:[#allocation2 + $0x80] sm:$0xff] %vm542, 0.0
        %561 = vst.msk [vmem:[#allocation2 + $0x88] sm:$0x3] %vm545, 0.0
        %562 = vst.msk [vmem:[#allocation2 + $0x90] sm:$0xff] %vm542, 0.0
        %563 = vst.msk [vmem:[#allocation2 + $0x98] sm:$0xff] %vm542, 0.0
        %564 = vst.msk [vmem:[#allocation2 + $0xa0] sm:$0x3] %vm545, 0.0
        %565 = vst.msk [vmem:[#allocation2 + $0xa8] sm:$0xff] %vm542, 0.0
        %566 = vst.msk [vmem:[#allocation2 + $0xb0] sm:$0xff] %vm542, 0.0
        %567 = vst.msk [vmem:[#allocation2 + $0xb8] sm:$0x3] %vm545, 0.0
        %568 = vst.msk [vmem:[#allocation2 + $0xc0] sm:$0xff] %vm542, 0.0
        %569 = vst.msk [vmem:[#allocation2 + $0xc8] sm:$0xff] %vm542, 0.0
        %570 = vst.msk [vmem:[#allocation2 + $0xd0] sm:$0x3] %vm545, 0.0
        %571 = vst.msk [vmem:[#allocation2 + $0xd8] sm:$0xff] %vm542, 0.0
        %572 = vst.msk [vmem:[#allocation2 + $0xe0] sm:$0xff] %vm542, 0.0
        %573 = vst.msk [vmem:[#allocation2 + $0xe8] sm:$0x3] %vm545, 0.0
        %574 = vst.msk [vmem:[#allocation2 + $0xf0] sm:$0xff] %vm542, 0.0
        %575 = vst.msk [vmem:[#allocation2 + $0xf8] sm:$0xff] %vm542, 0.0
        %576 = vst.msk [vmem:[#allocation2 + $0x100] sm:$0x3] %vm545, 0.0
        %577 = vst.msk [vmem:[#allocation2 + $0x108] sm:$0xff] %vm542, 0.0
        %578 = vst.msk [vmem:[#allocation2 + $0x110] sm:$0xff] %vm542, 0.0
        %579 = vst.msk [vmem:[#allocation2 + $0x118] sm:$0x3] %vm545, 0.0
        %580 = vst.msk [vmem:[#allocation2 + $0x120] sm:$0xff] %vm542, 0.0
        %581 = vst.msk [vmem:[#allocation2 + $0x128] sm:$0xff] %vm542, 0.0
        %582 = vst.msk [vmem:[#allocation2 + $0x130] sm:$0x3] %vm545, 0.0
        %583 = vst.msk [vmem:[#allocation2 + $0x138] sm:$0xff] %vm542, 0.0
        %584 = vst.msk [vmem:[#allocation2 + $0x140] sm:$0xff] %vm542, 0.0
        %585 = vst.msk [vmem:[#allocation2 + $0x148] sm:$0x3] %vm545, 0.0
        %586 = vst.msk [vmem:[#allocation2 + $0x150] sm:$0xff] %vm542, 0.0
        %587 = vst.msk [vmem:[#allocation2 + $0x158] sm:$0xff] %vm542, 0.0
        %588 = vst.msk [vmem:[#allocation2 + $0x160] sm:$0x3] %vm545, 0.0
        %589 = vst.msk [vmem:[#allocation2 + $0x168] sm:$0xff] %vm542, 0.0
        %590 = vst.msk [vmem:[#allocation2 + $0x170] sm:$0xff] %vm542, 0.0
        %591 = vst.msk [vmem:[#allocation2 + $0x178] sm:$0x3] %vm545, 0.0
        %592 = vst.msk [vmem:[#allocation2 + $0x180] sm:$0xff] %vm542, 0.0
        %593 = vst.msk [vmem:[#allocation2 + $0x188] sm:$0xff] %vm542, 0.0
        %594 = vst.msk [vmem:[#allocation2 + $0x190] sm:$0x3] %vm545, 0.0
        %595 = vst.msk [vmem:[#allocation2 + $0x198] sm:$0xff] %vm542, 0.0
        %596 = vst.msk [vmem:[#allocation2 + $0x1a0] sm:$0xff] %vm542, 0.0
        %597 = vst.msk [vmem:[#allocation2 + $0x1a8] sm:$0x3] %vm545, 0.0
      $region76: #{tpu_custom_call.1} parent=71 // pred_fallthru
        _
      %v598 = vld [vmem:[%s511] sm:$0xf]
      %v599 = vld [vmem:[%s511 + $0x4] sm:$0xf]
      %v600 = vld [vmem:[%s511 + $0x8] sm:$0xf]
      %v601 = vld [vmem:[%s511 + $0xc] sm:$0xf]
      %v602 = vld [vmem:[%s511 + $0x10] sm:$0xf]
      %v603 = vld [vmem:[%s511 + $0x14] sm:$0xf]
      %v604 = vld [vmem:[%s511 + $0x18] sm:$0xf]
      %v605 = vld [vmem:[%s511 + $0x1c] sm:$0xf]
      %v606 = vld [vmem:[%s511 + $0x20] sm:$0xf]
      %v607 = vld [vmem:[%s511 + $0x24] sm:$0xf]
      %v608 = vld [vmem:[%s511 + $0x28] sm:$0xf]
      %v609 = vld [vmem:[%s511 + $0x2c] sm:$0xf]
      %v610 = vld [vmem:[%s511 + $0x30] sm:$0xf]
      %v611 = vld [vmem:[%s511 + $0x34] sm:$0xf]
      %v612 = vld [vmem:[%s511 + $0x38] sm:$0xf]
      %v613 = vld [vmem:[%s511 + $0x3c] sm:$0xf]
      %v614 = vld [vmem:[%s511 + $0x40] sm:$0xf]
      %v615 = vld [vmem:[%s511 + $0x44] sm:$0xf]
      %v616 = vld [vmem:[%s511 + $0x48] sm:$0xf]
      %v617 = vld [vmem:[%s511 + $0x4c] sm:$0xf]
      %v618 = vld [vmem:[%s511 + $0x50] sm:$0xf]
      %v619 = vld [vmem:[%s511 + $0x54] sm:$0xf]
      %v620 = vld [vmem:[%s511 + $0x58] sm:$0xf]
      %v621 = vld [vmem:[%s511 + $0x5c] sm:$0xf]
      %v622 = vld [vmem:[%s511 + $0x60] sm:$0xf]
      %v623 = vld [vmem:[%s511 + $0x64] sm:$0xf]
      %v624 = vld [vmem:[%s511 + $0x68] sm:$0xf]
      %v625 = vld [vmem:[%s511 + $0x6c] sm:$0xf]
      %v626 = vld [vmem:[%s511 + $0x70] sm:$0xf]
      %v627 = vld [vmem:[%s511 + $0x74] sm:$0xf]
      %v628 = vld [vmem:[%s511 + $0x78] sm:$0xf]
      %v629 = vld [vmem:[%s511 + $0x7c] sm:$0xf]
      %v630 = vld [vmem:[%s515] sm:$0xf]
      %v631 = vld [vmem:[%s518] sm:$0x1]
      %v633 = vperm.slane %v631, 0
      %v667 = vunpack.c.l.b16 %v598
      %v668 = vunpack.c.l.b16 %v599
      %v669 = vunpack.c.l.b16 %v600
      %v670 = vunpack.c.l.b16 %v601
      %v671 = vunpack.c.l.b16 %v602
      %v672 = vunpack.c.l.b16 %v603
      %v673 = vunpack.c.l.b16 %v604
      %v674 = vunpack.c.l.b16 %v605
      %v675 = vunpack.c.l.b16 %v606
      %v676 = vunpack.c.l.b16 %v607
      %v677 = vunpack.c.l.b16 %v608
      %v678 = vunpack.c.l.b16 %v609
      %v679 = vunpack.c.l.b16 %v610
      %v680 = vunpack.c.l.b16 %v611
      %v681 = vunpack.c.l.b16 %v612
      %v682 = vunpack.c.l.b16 %v613
      %v683 = vunpack.c.l.b16 %v614
      %v684 = vunpack.c.l.b16 %v615
      %v685 = vunpack.c.l.b16 %v616
      %v686 = vunpack.c.l.b16 %v617
      %v687 = vunpack.c.l.b16 %v618
      %v688 = vunpack.c.l.b16 %v619
      %v689 = vunpack.c.l.b16 %v620
      %v690 = vunpack.c.l.b16 %v621
      %v691 = vunpack.c.l.b16 %v622
      %v692 = vunpack.c.l.b16 %v623
      %v693 = vunpack.c.l.b16 %v624
      %v694 = vunpack.c.l.b16 %v625
      %v695 = vunpack.c.l.b16 %v626
      %v696 = vunpack.c.l.b16 %v627
      %v697 = vunpack.c.l.b16 %v628
      %v698 = vunpack.c.l.b16 %v629
      %v699 = vpack.c.b16 %v668, %v667
      %v700 = vpack.c.b16 %v670, %v669
      %v701 = vpack.c.b16 %v672, %v671
      %v702 = vpack.c.b16 %v674, %v673
      %v703 = vpack.c.b16 %v676, %v675
      %v704 = vpack.c.b16 %v678, %v677
      %v705 = vpack.c.b16 %v680, %v679
      %v706 = vpack.c.b16 %v682, %v681
      %v707 = vpack.c.b16 %v684, %v683
      %v708 = vpack.c.b16 %v686, %v685
      %v709 = vpack.c.b16 %v688, %v687
      %v710 = vpack.c.b16 %v690, %v689
      %v711 = vpack.c.b16 %v692, %v691
      %v712 = vpack.c.b16 %v694, %v693
      %v713 = vpack.c.b16 %v696, %v695
      %v714 = vpack.c.b16 %v698, %v697
      %vm715 = vcmask 64512
      %v717 = vsel %vm715, %v699, 0
      %v720 = vsel %vm715, %v700, 0
      %v723 = vsel %vm715, %v701, 0
      %v726 = vsel %vm715, %v702, 0
      %v729 = vsel %vm715, %v703, 0
      %v732 = vsel %vm715, %v704, 0
      %v735 = vsel %vm715, %v705, 0
      %v738 = vsel %vm715, %v706, 0
      %v741 = vsel %vm715, %v707, 0
      %v744 = vsel %vm715, %v708, 0
      %v747 = vsel %vm715, %v709, 0
      %v750 = vsel %vm715, %v710, 0
      %v753 = vsel %vm715, %v711, 0
      %v756 = vsel %vm715, %v712, 0
      %v759 = vsel %vm715, %v713, 0
      %v762 = vsel %vm715, %v714, 0
      %vm764 = vcmask 1043456
      %v766 = vsel %vm764, %v630, 0
      %768 = vmatpush.bf16.msra.mxu0 0
      %769 = vmatpush.bf16.msra.mxu0 0
      %770 = vmatpush.bf16.msra.mxu0 0
      %771 = vmatpush.bf16.msra.mxu0 0
      %772 = vmatpush.bf16.msra.mxu0 0
      %773 = vmatpush.bf16.msra.mxu0 0
      %774 = vmatpush.bf16.msra.mxu0 0
      %775 = vmatpush.bf16.msra.mxu0 %v766
      %776 = vmatmul.bf16.gmra.mxu0 %v717
      %v777 = vpop.f32.mrf.mxu0
      %v778 = vadd.f32 %v633, %v777
      %v779 = vpop.f32.mrf.mxu0
      %v780 = vadd.f32 %v633, %v779
      %781 = vmatmul.bf16.gmra.mxu0 %v720
      %v782 = vpop.f32.mrf.mxu0
      %v783 = vadd.f32 %v633, %v782
      %v784 = vpop.f32.mrf.mxu0
      %v785 = vadd.f32 %v633, %v784
      %786 = vmatmul.bf16.gmra.mxu0 %v723
      %v787 = vpop.f32.mrf.mxu0
      %v788 = vadd.f32 %v633, %v787
      %v789 = vpop.f32.mrf.mxu0
      %v790 = vadd.f32 %v633, %v789
      %791 = vmatmul.bf16.gmra.mxu0 %v726
      %v792 = vpop.f32.mrf.mxu0
      %v793 = vadd.f32 %v633, %v792
      %v794 = vpop.f32.mrf.mxu0
      %v795 = vadd.f32 %v633, %v794
      %796 = vmatmul.bf16.gmra.mxu0 %v729
      %v797 = vpop.f32.mrf.mxu0
      %v798 = vadd.f32 %v633, %v797
      %v799 = vpop.f32.mrf.mxu0
      %v800 = vadd.f32 %v633, %v799
      %801 = vmatmul.bf16.gmra.mxu0 %v732
      %v802 = vpop.f32.mrf.mxu0
      %v803 = vadd.f32 %v633, %v802
      %v804 = vpop.f32.mrf.mxu0
      %v805 = vadd.f32 %v633, %v804
      %806 = vmatmul.bf16.gmra.mxu0 %v735
      %v807 = vpop.f32.mrf.mxu0
      %v808 = vadd.f32 %v633, %v807
      %v809 = vpop.f32.mrf.mxu0
      %v810 = vadd.f32 %v633, %v809
      %811 = vmatmul.bf16.gmra.mxu0 %v738
      %v812 = vpop.f32.mrf.mxu0
      %v813 = vadd.f32 %v633, %v812
      %v814 = vpop.f32.mrf.mxu0
      %v815 = vadd.f32 %v633, %v814
      %816 = vmatmul.bf16.gmra.mxu0 %v741
      %v817 = vpop.f32.mrf.mxu0
      %v818 = vadd.f32 %v633, %v817
      %v819 = vpop.f32.mrf.mxu0
      %v820 = vadd.f32 %v633, %v819
      %821 = vmatmul.bf16.gmra.mxu0 %v744
      %v822 = vpop.f32.mrf.mxu0
      %v823 = vadd.f32 %v633, %v822
      %v824 = vpop.f32.mrf.mxu0
      %v825 = vadd.f32 %v633, %v824
      %826 = vmatmul.bf16.gmra.mxu0 %v747
      %v827 = vpop.f32.mrf.mxu0
      %v828 = vadd.f32 %v633, %v827
      %v829 = vpop.f32.mrf.mxu0
      %v830 = vadd.f32 %v633, %v829
      %831 = vmatmul.bf16.gmra.mxu0 %v750
      %v832 = vpop.f32.mrf.mxu0
      %v833 = vadd.f32 %v633, %v832
      %v834 = vpop.f32.mrf.mxu0
      %v835 = vadd.f32 %v633, %v834
      %836 = vmatmul.bf16.gmra.mxu0 %v753
      %v837 = vpop.f32.mrf.mxu0
      %v838 = vadd.f32 %v633, %v837
      %v839 = vpop.f32.mrf.mxu0
      %v840 = vadd.f32 %v633, %v839
      %841 = vmatmul.bf16.gmra.mxu0 %v756
      %v842 = vpop.f32.mrf.mxu0
      %v843 = vadd.f32 %v633, %v842
      %v844 = vpop.f32.mrf.mxu0
      %v845 = vadd.f32 %v633, %v844
      %846 = vmatmul.bf16.gmra.mxu0 %v759
      %v847 = vpop.f32.mrf.mxu0
      %v848 = vadd.f32 %v633, %v847
      %v849 = vpop.f32.mrf.mxu0
      %v850 = vadd.f32 %v633, %v849
      %851 = vmatmul.bf16.gmra.mxu0 %v762
      %v852 = vpop.f32.mrf.mxu0
      %v853 = vadd.f32 %v633, %v852
      %v854 = vpop.f32.mrf.mxu0
      %v855 = vadd.f32 %v633, %v854
      %856 = vdwg.mxu0
      %v857 = vadd.f32 %v778, 3.0
      %v858 = vadd.f32 %v780, 3.0
      %v859 = vadd.f32 %v783, 3.0
      %v860 = vadd.f32 %v785, 3.0
      %v861 = vadd.f32 %v788, 3.0
      %v862 = vadd.f32 %v790, 3.0
      %v863 = vadd.f32 %v793, 3.0
      %v864 = vadd.f32 %v795, 3.0
      %v865 = vadd.f32 %v798, 3.0
      %v866 = vadd.f32 %v800, 3.0
      %v867 = vadd.f32 %v803, 3.0
      %v868 = vadd.f32 %v805, 3.0
      %v869 = vadd.f32 %v808, 3.0
      %v870 = vadd.f32 %v810, 3.0
      %v871 = vadd.f32 %v813, 3.0
      %v872 = vadd.f32 %v815, 3.0
      %v873 = vadd.f32 %v818, 3.0
      %v874 = vadd.f32 %v820, 3.0
      %v875 = vadd.f32 %v823, 3.0
      %v876 = vadd.f32 %v825, 3.0
      %v877 = vadd.f32 %v828, 3.0
      %v878 = vadd.f32 %v830, 3.0
      %v879 = vadd.f32 %v833, 3.0
      %v880 = vadd.f32 %v835, 3.0
      %v881 = vadd.f32 %v838, 3.0
      %v882 = vadd.f32 %v840, 3.0
      %v883 = vadd.f32 %v843, 3.0
      %v884 = vadd.f32 %v845, 3.0
      %v885 = vadd.f32 %v848, 3.0
      %v886 = vadd.f32 %v850, 3.0
      %v887 = vadd.f32 %v853, 3.0
      %v888 = vadd.f32 %v855, 3.0
      %v889 = vmax.f32 %v857, 0.0
      %v890 = vmax.f32 %v858, 0.0
      %v891 = vmax.f32 %v859, 0.0
      %v892 = vmax.f32 %v860, 0.0
      %v893 = vmax.f32 %v861, 0.0
      %v894 = vmax.f32 %v862, 0.0
      %v895 = vmax.f32 %v863, 0.0
      %v896 = vmax.f32 %v864, 0.0
      %v897 = vmax.f32 %v865, 0.0
      %v898 = vmax.f32 %v866, 0.0
      %v899 = vmax.f32 %v867, 0.0
      %v900 = vmax.f32 %v868, 0.0
      %v901 = vmax.f32 %v869, 0.0
      %v902 = vmax.f32 %v870, 0.0
      %v903 = vmax.f32 %v871, 0.0
      %v904 = vmax.f32 %v872, 0.0
      %v905 = vmax.f32 %v873, 0.0
      %v906 = vmax.f32 %v874, 0.0
      %v907 = vmax.f32 %v875, 0.0
      %v908 = vmax.f32 %v876, 0.0
      %v909 = vmax.f32 %v877, 0.0
      %v910 = vmax.f32 %v878, 0.0
      %v911 = vmax.f32 %v879, 0.0
      %v912 = vmax.f32 %v880, 0.0
      %v913 = vmax.f32 %v881, 0.0
      %v914 = vmax.f32 %v882, 0.0
      %v915 = vmax.f32 %v883, 0.0
      %v916 = vmax.f32 %v884, 0.0
      %v917 = vmax.f32 %v885, 0.0
      %v918 = vmax.f32 %v886, 0.0
      %v919 = vmax.f32 %v887, 0.0
      %v920 = vmax.f32 %v888, 0.0
      %v921 = vmin.f32 %v889, 6.0
      %v922 = vmin.f32 %v890, 6.0
      %v923 = vmin.f32 %v891, 6.0
      %v924 = vmin.f32 %v892, 6.0
      %v925 = vmin.f32 %v893, 6.0
      %v926 = vmin.f32 %v894, 6.0
      %v927 = vmin.f32 %v895, 6.0
      %v928 = vmin.f32 %v896, 6.0
      %v929 = vmin.f32 %v897, 6.0
      %v930 = vmin.f32 %v898, 6.0
      %v931 = vmin.f32 %v899, 6.0
      %v932 = vmin.f32 %v900, 6.0
      %v933 = vmin.f32 %v901, 6.0
      %v934 = vmin.f32 %v902, 6.0
      %v935 = vmin.f32 %v903, 6.0
      %v936 = vmin.f32 %v904, 6.0
      %v937 = vmin.f32 %v905, 6.0
      %v938 = vmin.f32 %v906, 6.0
      %v939 = vmin.f32 %v907, 6.0
      %v940 = vmin.f32 %v908, 6.0
      %v941 = vmin.f32 %v909, 6.0
      %v942 = vmin.f32 %v910, 6.0
      %v943 = vmin.f32 %v911, 6.0
      %v944 = vmin.f32 %v912, 6.0
      %v945 = vmin.f32 %v913, 6.0
      %v946 = vmin.f32 %v914, 6.0
      %v947 = vmin.f32 %v915, 6.0
      %v948 = vmin.f32 %v916, 6.0
      %v949 = vmin.f32 %v917, 6.0
      %v950 = vmin.f32 %v918, 6.0
      %v951 = vmin.f32 %v919, 6.0
      %v952 = vmin.f32 %v920, 6.0
      %v953 = vmul.f32 %v921, 0.16666667
      %v954 = vmul.f32 %v922, 0.16666667
      %v955 = vmul.f32 %v923, 0.16666667
      %v956 = vmul.f32 %v924, 0.16666667
      %v957 = vmul.f32 %v925, 0.16666667
      %v958 = vmul.f32 %v926, 0.16666667
      %v959 = vmul.f32 %v927, 0.16666667
      %v960 = vmul.f32 %v928, 0.16666667
      %v961 = vmul.f32 %v929, 0.16666667
      %v962 = vmul.f32 %v930, 0.16666667
      %v963 = vmul.f32 %v931, 0.16666667
      %v964 = vmul.f32 %v932, 0.16666667
      %v965 = vmul.f32 %v933, 0.16666667
      %v966 = vmul.f32 %v934, 0.16666667
      %v967 = vmul.f32 %v935, 0.16666667
      %v968 = vmul.f32 %v936, 0.16666667
      %v969 = vmul.f32 %v937, 0.16666667
      %v970 = vmul.f32 %v938, 0.16666667
      %v971 = vmul.f32 %v939, 0.16666667
      %v972 = vmul.f32 %v940, 0.16666667
      %v973 = vmul.f32 %v941, 0.16666667
      %v974 = vmul.f32 %v942, 0.16666667
      %v975 = vmul.f32 %v943, 0.16666667
      %v976 = vmul.f32 %v944, 0.16666667
      %v977 = vmul.f32 %v945, 0.16666667
      %v978 = vmul.f32 %v946, 0.16666667
      %v979 = vmul.f32 %v947, 0.16666667
      %v980 = vmul.f32 %v948, 0.16666667
      %v981 = vmul.f32 %v949, 0.16666667
      %v982 = vmul.f32 %v950, 0.16666667
      %v983 = vmul.f32 %v951, 0.16666667
      %v984 = vmul.f32 %v952, 0.16666667
      %v985 = vmul.f32 %v778, %v953
      %v986 = vmul.f32 %v780, %v954
      %v987 = vmul.f32 %v783, %v955
      %v988 = vmul.f32 %v785, %v956
      %v989 = vmul.f32 %v788, %v957
      %v990 = vmul.f32 %v790, %v958
      %v991 = vmul.f32 %v793, %v959
      %v992 = vmul.f32 %v795, %v960
      %v993 = vmul.f32 %v798, %v961
      %v994 = vmul.f32 %v800, %v962
      %v995 = vmul.f32 %v803, %v963
      %v996 = vmul.f32 %v805, %v964
      %v997 = vmul.f32 %v808, %v965
      %v998 = vmul.f32 %v810, %v966
      %v999 = vmul.f32 %v813, %v967
      %v1000 = vmul.f32 %v815, %v968
      %v1001 = vmul.f32 %v818, %v969
      %v1002 = vmul.f32 %v820, %v970
      %v1003 = vmul.f32 %v823, %v971
      %v1004 = vmul.f32 %v825, %v972
      %v1005 = vmul.f32 %v828, %v973
      %v1006 = vmul.f32 %v830, %v974
      %v1007 = vmul.f32 %v833, %v975
      %v1008 = vmul.f32 %v835, %v976
      %v1009 = vmul.f32 %v838, %v977
      %v1010 = vmul.f32 %v840, %v978
      %v1011 = vmul.f32 %v843, %v979
      %v1012 = vmul.f32 %v845, %v980
      %v1013 = vmul.f32 %v848, %v981
      %v1014 = vmul.f32 %v850, %v982
      %v1015 = vmul.f32 %v853, %v983
      %v1016 = vmul.f32 %v855, %v984
      %s1017 = scalar_lea.vmem [#allocation2], 24
      %vm1018 = vcmask 195584
      %1019 = vst.msk [vmem:[%s1017 + $0x1] sm:$0xff] %vm1018, %v985
      %1020 = vst.msk [vmem:[%s1017 + $0x9] sm:$0xff] %vm1018, %v986
      %1021 = vst.msk [vmem:[%s1017 + $0x19] sm:$0xff] %vm1018, %v987
      %1022 = vst.msk [vmem:[%s1017 + $0x21] sm:$0xff] %vm1018, %v988
      %1023 = vst.msk [vmem:[%s1017 + $0x31] sm:$0xff] %vm1018, %v989
      %1024 = vst.msk [vmem:[%s1017 + $0x39] sm:$0xff] %vm1018, %v990
      %1025 = vst.msk [vmem:[%s1017 + $0x49] sm:$0xff] %vm1018, %v991
      %1026 = vst.msk [vmem:[%s1017 + $0x51] sm:$0xff] %vm1018, %v992
      %1027 = vst.msk [vmem:[%s1017 + $0x61] sm:$0xff] %vm1018, %v993
      %1028 = vst.msk [vmem:[%s1017 + $0x69] sm:$0xff] %vm1018, %v994
      %1029 = vst.msk [vmem:[%s1017 + $0x79] sm:$0xff] %vm1018, %v995
      %1030 = vst.msk [vmem:[%s1017 + $0x81] sm:$0xff] %vm1018, %v996
      %1031 = vst.msk [vmem:[%s1017 + $0x91] sm:$0xff] %vm1018, %v997
      %1032 = vst.msk [vmem:[%s1017 + $0x99] sm:$0xff] %vm1018, %v998
      %1033 = vst.msk [vmem:[%s1017 + $0xa9] sm:$0xff] %vm1018, %v999
      %1034 = vst.msk [vmem:[%s1017 + $0xb1] sm:$0xff] %vm1018, %v1000
      %1035 = vst.msk [vmem:[%s1017 + $0xc1] sm:$0xff] %vm1018, %v1001
      %1036 = vst.msk [vmem:[%s1017 + $0xc9] sm:$0xff] %vm1018, %v1002
      %1037 = vst.msk [vmem:[%s1017 + $0xd9] sm:$0xff] %vm1018, %v1003
      %1038 = vst.msk [vmem:[%s1017 + $0xe1] sm:$0xff] %vm1018, %v1004
      %1039 = vst.msk [vmem:[%s1017 + $0xf1] sm:$0xff] %vm1018, %v1005
      %1040 = vst.msk [vmem:[%s1017 + $0xf9] sm:$0xff] %vm1018, %v1006
      %1041 = vst.msk [vmem:[%s1017 + $0x109] sm:$0xff] %vm1018, %v1007
      %1042 = vst.msk [vmem:[%s1017 + $0x111] sm:$0xff] %vm1018, %v1008
      %1043 = vst.msk [vmem:[%s1017 + $0x121] sm:$0xff] %vm1018, %v1009
      %1044 = vst.msk [vmem:[%s1017 + $0x129] sm:$0xff] %vm1018, %v1010
      %1045 = vst.msk [vmem:[%s1017 + $0x139] sm:$0xff] %vm1018, %v1011
      %1046 = vst.msk [vmem:[%s1017 + $0x141] sm:$0xff] %vm1018, %v1012
      %1047 = vst.msk [vmem:[%s1017 + $0x151] sm:$0xff] %vm1018, %v1013
      %1048 = vst.msk [vmem:[%s1017 + $0x159] sm:$0xff] %vm1018, %v1014
      %1049 = vst.msk [vmem:[%s1017 + $0x169] sm:$0xff] %vm1018, %v1015
      %1050 = vst.msk [vmem:[%s1017 + $0x171] sm:$0xff] %vm1018, %v1016
      %v1051 = vld [vmem:[#allocation2] sm:$0xff]
      %v1052 = vld [vmem:[#allocation2 + $0x8] sm:$0xff]
      %v1053 = vld [vmem:[#allocation2 + $0x18] sm:$0xff]
      %v1054 = vld [vmem:[#allocation2 + $0x20] sm:$0xff]
      %v1055 = vld [vmem:[#allocation2 + $0x30] sm:$0xff]
      %v1056 = vld [vmem:[#allocation2 + $0x38] sm:$0xff]
      %v1057 = vld [vmem:[#allocation2 + $0x48] sm:$0xff]
      %v1058 = vld [vmem:[#allocation2 + $0x50] sm:$0xff]
      %v1059 = vld [vmem:[#allocation2 + $0x60] sm:$0xff]
      %v1060 = vld [vmem:[#allocation2 + $0x68] sm:$0xff]
      %v1061 = vld [vmem:[#allocation2 + $0x78] sm:$0xff]
      %v1062 = vld [vmem:[#allocation2 + $0x80] sm:$0xff]
      %v1063 = vld [vmem:[#allocation2 + $0x90] sm:$0xff]
      %v1064 = vld [vmem:[#allocation2 + $0x98] sm:$0xff]
      %v1065 = vld [vmem:[#allocation2 + $0xa8] sm:$0xff]
      %v1066 = vld [vmem:[#allocation2 + $0xb0] sm:$0xff]
      %v1067 = vld [vmem:[#allocation2 + $0xc0] sm:$0xff]
      %v1068 = vld [vmem:[#allocation2 + $0xc8] sm:$0xff]
      %v1069 = vld [vmem:[#allocation2 + $0xd8] sm:$0xff]
      %v1070 = vld [vmem:[#allocation2 + $0xe0] sm:$0xff]
      %v1071 = vld [vmem:[#allocation2 + $0xf0] sm:$0xff]
      %v1072 = vld [vmem:[#allocation2 + $0xf8] sm:$0xff]
      %v1073 = vld [vmem:[#allocation2 + $0x108] sm:$0xff]
      %v1074 = vld [vmem:[#allocation2 + $0x110] sm:$0xff]
      %v1075 = vld [vmem:[#allocation2 + $0x120] sm:$0xff]
      %v1076 = vld [vmem:[#allocation2 + $0x128] sm:$0xff]
      %v1077 = vld [vmem:[#allocation2 + $0x138] sm:$0xff]
      %v1078 = vld [vmem:[#allocation2 + $0x140] sm:$0xff]
      %v1079 = vld [vmem:[#allocation2 + $0x150] sm:$0xff]
      %v1080 = vld [vmem:[#allocation2 + $0x158] sm:$0xff]
      %v1081 = vld [vmem:[#allocation2 + $0x168] sm:$0xff]
      %v1082 = vld [vmem:[#allocation2 + $0x170] sm:$0xff]
      %v1083 = vld [vmem:[%s522] sm:$0x1]
      %v1084 = vperm.slane %v1083, 0
      %v1085 = vmul.f32 %v1051, %v1084
      %v1086 = vmul.f32 %v1052, %v1084
      %v1087 = vmul.f32 %v1053, %v1084
      %v1088 = vmul.f32 %v1054, %v1084
      %v1089 = vmul.f32 %v1055, %v1084
      %v1090 = vmul.f32 %v1056, %v1084
      %v1091 = vmul.f32 %v1057, %v1084
      %v1092 = vmul.f32 %v1058, %v1084
      %v1093 = vmul.f32 %v1059, %v1084
      %v1094 = vmul.f32 %v1060, %v1084
      %v1095 = vmul.f32 %v1061, %v1084
      %v1096 = vmul.f32 %v1062, %v1084
      %v1097 = vmul.f32 %v1063, %v1084
      %v1098 = vmul.f32 %v1064, %v1084
      %v1099 = vmul.f32 %v1065, %v1084
      %v1100 = vmul.f32 %v1066, %v1084
      %v1101 = vmul.f32 %v1067, %v1084
      %v1102 = vmul.f32 %v1068, %v1084
      %v1103 = vmul.f32 %v1069, %v1084
      %v1104 = vmul.f32 %v1070, %v1084
      %v1105 = vmul.f32 %v1071, %v1084
      %v1106 = vmul.f32 %v1072, %v1084
      %v1107 = vmul.f32 %v1073, %v1084
      %v1108 = vmul.f32 %v1074, %v1084
      %v1109 = vmul.f32 %v1075, %v1084
      %v1110 = vmul.f32 %v1076, %v1084
      %v1111 = vmul.f32 %v1077, %v1084
      %v1112 = vmul.f32 %v1078, %v1084
      %v1113 = vmul.f32 %v1079, %v1084
      %v1114 = vmul.f32 %v1080, %v1084
      %v1115 = vmul.f32 %v1081, %v1084
      %v1116 = vmul.f32 %v1082, %v1084
      %v1117 = vld [vmem:[#allocation2 + $0x1] sm:$0xff]
      %v1118 = vld [vmem:[#allocation2 + $0x9] sm:$0xff]
      %v1119 = vld [vmem:[#allocation2 + $0x19] sm:$0xff]
      %v1120 = vld [vmem:[#allocation2 + $0x21] sm:$0xff]
      %v1121 = vld [vmem:[#allocation2 + $0x31] sm:$0xff]
      %v1122 = vld [vmem:[#allocation2 + $0x39] sm:$0xff]
      %v1123 = vld [vmem:[#allocation2 + $0x49] sm:$0xff]
      %v1124 = vld [vmem:[#allocation2 + $0x51] sm:$0xff]
      %v1125 = vld [vmem:[#allocation2 + $0x61] sm:$0xff]
      %v1126 = vld [vmem:[#allocation2 + $0x69] sm:$0xff]
      %v1127 = vld [vmem:[#allocation2 + $0x79] sm:$0xff]
      %v1128 = vld [vmem:[#allocation2 + $0x81] sm:$0xff]
      %v1129 = vld [vmem:[#allocation2 + $0x91] sm:$0xff]
      %v1130 = vld [vmem:[#allocation2 + $0x99] sm:$0xff]
      %v1131 = vld [vmem:[#allocation2 + $0xa9] sm:$0xff]
      %v1132 = vld [vmem:[#allocation2 + $0xb1] sm:$0xff]
      %v1133 = vld [vmem:[#allocation2 + $0xc1] sm:$0xff]
      %v1134 = vld [vmem:[#allocation2 + $0xc9] sm:$0xff]
      %v1135 = vld [vmem:[#allocation2 + $0xd9] sm:$0xff]
      %v1136 = vld [vmem:[#allocation2 + $0xe1] sm:$0xff]
      %v1137 = vld [vmem:[#allocation2 + $0xf1] sm:$0xff]
      %v1138 = vld [vmem:[#allocation2 + $0xf9] sm:$0xff]
      %v1139 = vld [vmem:[#allocation2 + $0x109] sm:$0xff]
      %v1140 = vld [vmem:[#allocation2 + $0x111] sm:$0xff]
      %v1141 = vld [vmem:[#allocation2 + $0x121] sm:$0xff]
      %v1142 = vld [vmem:[#allocation2 + $0x129] sm:$0xff]
      %v1143 = vld [vmem:[#allocation2 + $0x139] sm:$0xff]
      %v1144 = vld [vmem:[#allocation2 + $0x141] sm:$0xff]
      %v1145 = vld [vmem:[#allocation2 + $0x151] sm:$0xff]
      %v1146 = vld [vmem:[#allocation2 + $0x159] sm:$0xff]
      %v1147 = vld [vmem:[#allocation2 + $0x169] sm:$0xff]
      %v1148 = vld [vmem:[#allocation2 + $0x171] sm:$0xff]
      %v1149 = vld [vmem:[%s522 + $0x1] sm:$0x1]
      %v1150 = vperm.slane %v1149, 0
      %v1151 = vmul.f32 %v1117, %v1150
      %v1152 = vmul.f32 %v1118, %v1150
      %v1153 = vmul.f32 %v1119, %v1150
      %v1154 = vmul.f32 %v1120, %v1150
      %v1155 = vmul.f32 %v1121, %v1150
      %v1156 = vmul.f32 %v1122, %v1150
      %v1157 = vmul.f32 %v1123, %v1150
      %v1158 = vmul.f32 %v1124, %v1150
      %v1159 = vmul.f32 %v1125, %v1150
      %v1160 = vmul.f32 %v1126, %v1150
      %v1161 = vmul.f32 %v1127, %v1150
      %v1162 = vmul.f32 %v1128, %v1150
      %v1163 = vmul.f32 %v1129, %v1150
      %v1164 = vmul.f32 %v1130, %v1150
      %v1165 = vmul.f32 %v1131, %v1150
      %v1166 = vmul.f32 %v1132, %v1150
      %v1167 = vmul.f32 %v1133, %v1150
      %v1168 = vmul.f32 %v1134, %v1150
      %v1169 = vmul.f32 %v1135, %v1150
      %v1170 = vmul.f32 %v1136, %v1150
      %v1171 = vmul.f32 %v1137, %v1150
      %v1172 = vmul.f32 %v1138, %v1150
      %v1173 = vmul.f32 %v1139, %v1150
      %v1174 = vmul.f32 %v1140, %v1150
      %v1175 = vmul.f32 %v1141, %v1150
      %v1176 = vmul.f32 %v1142, %v1150
      %v1177 = vmul.f32 %v1143, %v1150
      %v1178 = vmul.f32 %v1144, %v1150
      %v1179 = vmul.f32 %v1145, %v1150
      %v1180 = vmul.f32 %v1146, %v1150
      %v1181 = vmul.f32 %v1147, %v1150
      %v1182 = vmul.f32 %v1148, %v1150
      %v1183 = vadd.f32 %v1085, %v1151
      %v1184 = vadd.f32 %v1086, %v1152
      %v1185 = vadd.f32 %v1087, %v1153
      %v1186 = vadd.f32 %v1088, %v1154
      %v1187 = vadd.f32 %v1089, %v1155
      %v1188 = vadd.f32 %v1090, %v1156
      %v1189 = vadd.f32 %v1091, %v1157
      %v1190 = vadd.f32 %v1092, %v1158
      %v1191 = vadd.f32 %v1093, %v1159
      %v1192 = vadd.f32 %v1094, %v1160
      %v1193 = vadd.f32 %v1095, %v1161
      %v1194 = vadd.f32 %v1096, %v1162
      %v1195 = vadd.f32 %v1097, %v1163
      %v1196 = vadd.f32 %v1098, %v1164
      %v1197 = vadd.f32 %v1099, %v1165
      %v1198 = vadd.f32 %v1100, %v1166
      %v1199 = vadd.f32 %v1101, %v1167
      %v1200 = vadd.f32 %v1102, %v1168
      %v1201 = vadd.f32 %v1103, %v1169
      %v1202 = vadd.f32 %v1104, %v1170
      %v1203 = vadd.f32 %v1105, %v1171
      %v1204 = vadd.f32 %v1106, %v1172
      %v1205 = vadd.f32 %v1107, %v1173
      %v1206 = vadd.f32 %v1108, %v1174
      %v1207 = vadd.f32 %v1109, %v1175
      %v1208 = vadd.f32 %v1110, %v1176
      %v1209 = vadd.f32 %v1111, %v1177
      %v1210 = vadd.f32 %v1112, %v1178
      %v1211 = vadd.f32 %v1113, %v1179
      %v1212 = vadd.f32 %v1114, %v1180
      %v1213 = vadd.f32 %v1115, %v1181
      %v1214 = vadd.f32 %v1116, %v1182
      %v1215 = vld [vmem:[#allocation2 + $0x2] sm:$0xff]
      %v1216 = vld [vmem:[#allocation2 + $0xa] sm:$0xff]
      %v1217 = vld [vmem:[#allocation2 + $0x1a] sm:$0xff]
      %v1218 = vld [vmem:[#allocation2 + $0x22] sm:$0xff]
      %v1219 = vld [vmem:[#allocation2 + $0x32] sm:$0xff]
      %v1220 = vld [vmem:[#allocation2 + $0x3a] sm:$0xff]
      %v1221 = vld [vmem:[#allocation2 + $0x4a] sm:$0xff]
      %v1222 = vld [vmem:[#allocation2 + $0x52] sm:$0xff]
      %v1223 = vld [vmem:[#allocation2 + $0x62] sm:$0xff]
      %v1224 = vld [vmem:[#allocation2 + $0x6a] sm:$0xff]
      %v1225 = vld [vmem:[#allocation2 + $0x7a] sm:$0xff]
      %v1226 = vld [vmem:[#allocation2 + $0x82] sm:$0xff]
      %v1227 = vld [vmem:[#allocation2 + $0x92] sm:$0xff]
      %v1228 = vld [vmem:[#allocation2 + $0x9a] sm:$0xff]
      %v1229 = vld [vmem:[#allocation2 + $0xaa] sm:$0xff]
      %v1230 = vld [vmem:[#allocation2 + $0xb2] sm:$0xff]
      %v1231 = vld [vmem:[#allocation2 + $0xc2] sm:$0xff]
      %v1232 = vld [vmem:[#allocation2 + $0xca] sm:$0xff]
      %v1233 = vld [vmem:[#allocation2 + $0xda] sm:$0xff]
      %v1234 = vld [vmem:[#allocation2 + $0xe2] sm:$0xff]
      %v1235 = vld [vmem:[#allocation2 + $0xf2] sm:$0xff]
      %v1236 = vld [vmem:[#allocation2 + $0xfa] sm:$0xff]
      %v1237 = vld [vmem:[#allocation2 + $0x10a] sm:$0xff]
      %v1238 = vld [vmem:[#allocation2 + $0x112] sm:$0xff]
      %v1239 = vld [vmem:[#allocation2 + $0x122] sm:$0xff]
      %v1240 = vld [vmem:[#allocation2 + $0x12a] sm:$0xff]
      %v1241 = vld [vmem:[#allocation2 + $0x13a] sm:$0xff]
      %v1242 = vld [vmem:[#allocation2 + $0x142] sm:$0xff]
      %v1243 = vld [vmem:[#allocation2 + $0x152] sm:$0xff]
      %v1244 = vld [vmem:[#allocation2 + $0x15a] sm:$0xff]
      %v1245 = vld [vmem:[#allocation2 + $0x16a] sm:$0xff]
      %v1246 = vld [vmem:[#allocation2 + $0x172] sm:$0xff]
      %v1247 = vld [vmem:[%s522 + $0x2] sm:$0x1]
      %v1248 = vperm.slane %v1247, 0
      %v1249 = vmul.f32 %v1215, %v1248
      %v1250 = vmul.f32 %v1216, %v1248
      %v1251 = vmul.f32 %v1217, %v1248
      %v1252 = vmul.f32 %v1218, %v1248
      %v1253 = vmul.f32 %v1219, %v1248
      %v1254 = vmul.f32 %v1220, %v1248
      %v1255 = vmul.f32 %v1221, %v1248
      %v1256 = vmul.f32 %v1222, %v1248
      %v1257 = vmul.f32 %v1223, %v1248
      %v1258 = vmul.f32 %v1224, %v1248
      %v1259 = vmul.f32 %v1225, %v1248
      %v1260 = vmul.f32 %v1226, %v1248
      %v1261 = vmul.f32 %v1227, %v1248
      %v1262 = vmul.f32 %v1228, %v1248
      %v1263 = vmul.f32 %v1229, %v1248
      %v1264 = vmul.f32 %v1230, %v1248
      %v1265 = vmul.f32 %v1231, %v1248
      %v1266 = vmul.f32 %v1232, %v1248
      %v1267 = vmul.f32 %v1233, %v1248
      %v1268 = vmul.f32 %v1234, %v1248
      %v1269 = vmul.f32 %v1235, %v1248
      %v1270 = vmul.f32 %v1236, %v1248
      %v1271 = vmul.f32 %v1237, %v1248
      %v1272 = vmul.f32 %v1238, %v1248
      %v1273 = vmul.f32 %v1239, %v1248
      %v1274 = vmul.f32 %v1240, %v1248
      %v1275 = vmul.f32 %v1241, %v1248
      %v1276 = vmul.f32 %v1242, %v1248
      %v1277 = vmul.f32 %v1243, %v1248
      %v1278 = vmul.f32 %v1244, %v1248
      %v1279 = vmul.f32 %v1245, %v1248
      %v1280 = vmul.f32 %v1246, %v1248
      %v1281 = vadd.f32 %v1183, %v1249
      %v1282 = vadd.f32 %v1184, %v1250
      %v1283 = vadd.f32 %v1185, %v1251
      %v1284 = vadd.f32 %v1186, %v1252
      %v1285 = vadd.f32 %v1187, %v1253
      %v1286 = vadd.f32 %v1188, %v1254
      %v1287 = vadd.f32 %v1189, %v1255
      %v1288 = vadd.f32 %v1190, %v1256
      %v1289 = vadd.f32 %v1191, %v1257
      %v1290 = vadd.f32 %v1192, %v1258
      %v1291 = vadd.f32 %v1193, %v1259
      %v1292 = vadd.f32 %v1194, %v1260
      %v1293 = vadd.f32 %v1195, %v1261
      %v1294 = vadd.f32 %v1196, %v1262
      %v1295 = vadd.f32 %v1197, %v1263
      %v1296 = vadd.f32 %v1198, %v1264
      %v1297 = vadd.f32 %v1199, %v1265
      %v1298 = vadd.f32 %v1200, %v1266
      %v1299 = vadd.f32 %v1201, %v1267
      %v1300 = vadd.f32 %v1202, %v1268
      %v1301 = vadd.f32 %v1203, %v1269
      %v1302 = vadd.f32 %v1204, %v1270
      %v1303 = vadd.f32 %v1205, %v1271
      %v1304 = vadd.f32 %v1206, %v1272
      %v1305 = vadd.f32 %v1207, %v1273
      %v1306 = vadd.f32 %v1208, %v1274
      %v1307 = vadd.f32 %v1209, %v1275
      %v1308 = vadd.f32 %v1210, %v1276
      %v1309 = vadd.f32 %v1211, %v1277
      %v1310 = vadd.f32 %v1212, %v1278
      %v1311 = vadd.f32 %v1213, %v1279
      %v1312 = vadd.f32 %v1214, %v1280
      %v1313 = vld [vmem:[%s1017] sm:$0xff]
      %v1314 = vld [vmem:[%s1017 + $0x8] sm:$0xff]
      %v1315 = vld [vmem:[%s1017 + $0x18] sm:$0xff]
      %v1316 = vld [vmem:[%s1017 + $0x20] sm:$0xff]
      %v1317 = vld [vmem:[%s1017 + $0x30] sm:$0xff]
      %v1318 = vld [vmem:[%s1017 + $0x38] sm:$0xff]
      %v1319 = vld [vmem:[%s1017 + $0x48] sm:$0xff]
      %v1320 = vld [vmem:[%s1017 + $0x50] sm:$0xff]
      %v1321 = vld [vmem:[%s1017 + $0x60] sm:$0xff]
      %v1322 = vld [vmem:[%s1017 + $0x68] sm:$0xff]
      %v1323 = vld [vmem:[%s1017 + $0x78] sm:$0xff]
      %v1324 = vld [vmem:[%s1017 + $0x80] sm:$0xff]
      %v1325 = vld [vmem:[%s1017 + $0x90] sm:$0xff]
      %v1326 = vld [vmem:[%s1017 + $0x98] sm:$0xff]
      %v1327 = vld [vmem:[%s1017 + $0xa8] sm:$0xff]
      %v1328 = vld [vmem:[%s1017 + $0xb0] sm:$0xff]
      %v1329 = vld [vmem:[%s1017 + $0xc0] sm:$0xff]
      %v1330 = vld [vmem:[%s1017 + $0xc8] sm:$0xff]
      %v1331 = vld [vmem:[%s1017 + $0xd8] sm:$0xff]
      %v1332 = vld [vmem:[%s1017 + $0xe0] sm:$0xff]
      %v1333 = vld [vmem:[%s1017 + $0xf0] sm:$0xff]
      %v1334 = vld [vmem:[%s1017 + $0xf8] sm:$0xff]
      %v1335 = vld [vmem:[%s1017 + $0x108] sm:$0xff]
      %v1336 = vld [vmem:[%s1017 + $0x110] sm:$0xff]
      %v1337 = vld [vmem:[%s1017 + $0x120] sm:$0xff]
      %v1338 = vld [vmem:[%s1017 + $0x128] sm:$0xff]
      %v1339 = vld [vmem:[%s1017 + $0x138] sm:$0xff]
      %v1340 = vld [vmem:[%s1017 + $0x140] sm:$0xff]
      %v1341 = vld [vmem:[%s1017 + $0x150] sm:$0xff]
      %v1342 = vld [vmem:[%s1017 + $0x158] sm:$0xff]
      %v1343 = vld [vmem:[%s1017 + $0x168] sm:$0xff]
      %v1344 = vld [vmem:[%s1017 + $0x170] sm:$0xff]
      %v1345 = vld [vmem:[%s522 + $0x3] sm:$0x1]
      %v1346 = vperm.slane %v1345, 0
      %v1347 = vmul.f32 %v1313, %v1346
      %v1348 = vmul.f32 %v1314, %v1346
      %v1349 = vmul.f32 %v1315, %v1346
      %v1350 = vmul.f32 %v1316, %v1346
      %v1351 = vmul.f32 %v1317, %v1346
      %v1352 = vmul.f32 %v1318, %v1346
      %v1353 = vmul.f32 %v1319, %v1346
      %v1354 = vmul.f32 %v1320, %v1346
      %v1355 = vmul.f32 %v1321, %v1346
      %v1356 = vmul.f32 %v1322, %v1346
      %v1357 = vmul.f32 %v1323, %v1346
      %v1358 = vmul.f32 %v1324, %v1346
      %v1359 = vmul.f32 %v1325, %v1346
      %v1360 = vmul.f32 %v1326, %v1346
      %v1361 = vmul.f32 %v1327, %v1346
      %v1362 = vmul.f32 %v1328, %v1346
      %v1363 = vmul.f32 %v1329, %v1346
      %v1364 = vmul.f32 %v1330, %v1346
      %v1365 = vmul.f32 %v1331, %v1346
      %v1366 = vmul.f32 %v1332, %v1346
      %v1367 = vmul.f32 %v1333, %v1346
      %v1368 = vmul.f32 %v1334, %v1346
      %v1369 = vmul.f32 %v1335, %v1346
      %v1370 = vmul.f32 %v1336, %v1346
      %v1371 = vmul.f32 %v1337, %v1346
      %v1372 = vmul.f32 %v1338, %v1346
      %v1373 = vmul.f32 %v1339, %v1346
      %v1374 = vmul.f32 %v1340, %v1346
      %v1375 = vmul.f32 %v1341, %v1346
      %v1376 = vmul.f32 %v1342, %v1346
      %v1377 = vmul.f32 %v1343, %v1346
      %v1378 = vmul.f32 %v1344, %v1346
      %v1379 = vadd.f32 %v1281, %v1347
      %v1380 = vadd.f32 %v1282, %v1348
      %v1381 = vadd.f32 %v1283, %v1349
      %v1382 = vadd.f32 %v1284, %v1350
      %v1383 = vadd.f32 %v1285, %v1351
      %v1384 = vadd.f32 %v1286, %v1352
      %v1385 = vadd.f32 %v1287, %v1353
      %v1386 = vadd.f32 %v1288, %v1354
      %v1387 = vadd.f32 %v1289, %v1355
      %v1388 = vadd.f32 %v1290, %v1356
      %v1389 = vadd.f32 %v1291, %v1357
      %v1390 = vadd.f32 %v1292, %v1358
      %v1391 = vadd.f32 %v1293, %v1359
      %v1392 = vadd.f32 %v1294, %v1360
      %v1393 = vadd.f32 %v1295, %v1361
      %v1394 = vadd.f32 %v1296, %v1362
      %v1395 = vadd.f32 %v1297, %v1363
      %v1396 = vadd.f32 %v1298, %v1364
      %v1397 = vadd.f32 %v1299, %v1365
      %v1398 = vadd.f32 %v1300, %v1366
      %v1399 = vadd.f32 %v1301, %v1367
      %v1400 = vadd.f32 %v1302, %v1368
      %v1401 = vadd.f32 %v1303, %v1369
      %v1402 = vadd.f32 %v1304, %v1370
      %v1403 = vadd.f32 %v1305, %v1371
      %v1404 = vadd.f32 %v1306, %v1372
      %v1405 = vadd.f32 %v1307, %v1373
      %v1406 = vadd.f32 %v1308, %v1374
      %v1407 = vadd.f32 %v1309, %v1375
      %v1408 = vadd.f32 %v1310, %v1376
      %v1409 = vadd.f32 %v1311, %v1377
      %v1410 = vadd.f32 %v1312, %v1378
      %v1411 = vld [vmem:[%s1017 + $0x1] sm:$0xff]
      %v1412 = vld [vmem:[%s1017 + $0x9] sm:$0xff]
      %v1413 = vld [vmem:[%s1017 + $0x19] sm:$0xff]
      %v1414 = vld [vmem:[%s1017 + $0x21] sm:$0xff]
      %v1415 = vld [vmem:[%s1017 + $0x31] sm:$0xff]
      %v1416 = vld [vmem:[%s1017 + $0x39] sm:$0xff]
      %v1417 = vld [vmem:[%s1017 + $0x49] sm:$0xff]
      %v1418 = vld [vmem:[%s1017 + $0x51] sm:$0xff]
      %v1419 = vld [vmem:[%s1017 + $0x61] sm:$0xff]
      %v1420 = vld [vmem:[%s1017 + $0x69] sm:$0xff]
      %v1421 = vld [vmem:[%s1017 + $0x79] sm:$0xff]
      %v1422 = vld [vmem:[%s1017 + $0x81] sm:$0xff]
      %v1423 = vld [vmem:[%s1017 + $0x91] sm:$0xff]
      %v1424 = vld [vmem:[%s1017 + $0x99] sm:$0xff]
      %v1425 = vld [vmem:[%s1017 + $0xa9] sm:$0xff]
      %v1426 = vld [vmem:[%s1017 + $0xb1] sm:$0xff]
      %v1427 = vld [vmem:[%s1017 + $0xc1] sm:$0xff]
      %v1428 = vld [vmem:[%s1017 + $0xc9] sm:$0xff]
      %v1429 = vld [vmem:[%s1017 + $0xd9] sm:$0xff]
      %v1430 = vld [vmem:[%s1017 + $0xe1] sm:$0xff]
      %v1431 = vld [vmem:[%s1017 + $0xf1] sm:$0xff]
      %v1432 = vld [vmem:[%s1017 + $0xf9] sm:$0xff]
      %v1433 = vld [vmem:[%s1017 + $0x109] sm:$0xff]
      %v1434 = vld [vmem:[%s1017 + $0x111] sm:$0xff]
      %v1435 = vld [vmem:[%s1017 + $0x121] sm:$0xff]
      %v1436 = vld [vmem:[%s1017 + $0x129] sm:$0xff]
      %v1437 = vld [vmem:[%s1017 + $0x139] sm:$0xff]
      %v1438 = vld [vmem:[%s1017 + $0x141] sm:$0xff]
      %v1439 = vld [vmem:[%s1017 + $0x151] sm:$0xff]
      %v1440 = vld [vmem:[%s1017 + $0x159] sm:$0xff]
      %v1441 = vld [vmem:[%s1017 + $0x169] sm:$0xff]
      %v1442 = vld [vmem:[%s1017 + $0x171] sm:$0xff]
      %v1443 = vld [vmem:[%s522 + $0x4] sm:$0x1]
      %v1444 = vperm.slane %v1443, 0
      %v1445 = vmul.f32 %v1411, %v1444
      %v1446 = vmul.f32 %v1412, %v1444
      %v1447 = vmul.f32 %v1413, %v1444
      %v1448 = vmul.f32 %v1414, %v1444
      %v1449 = vmul.f32 %v1415, %v1444
      %v1450 = vmul.f32 %v1416, %v1444
      %v1451 = vmul.f32 %v1417, %v1444
      %v1452 = vmul.f32 %v1418, %v1444
      %v1453 = vmul.f32 %v1419, %v1444
      %v1454 = vmul.f32 %v1420, %v1444
      %v1455 = vmul.f32 %v1421, %v1444
      %v1456 = vmul.f32 %v1422, %v1444
      %v1457 = vmul.f32 %v1423, %v1444
      %v1458 = vmul.f32 %v1424, %v1444
      %v1459 = vmul.f32 %v1425, %v1444
      %v1460 = vmul.f32 %v1426, %v1444
      %v1461 = vmul.f32 %v1427, %v1444
      %v1462 = vmul.f32 %v1428, %v1444
      %v1463 = vmul.f32 %v1429, %v1444
      %v1464 = vmul.f32 %v1430, %v1444
      %v1465 = vmul.f32 %v1431, %v1444
      %v1466 = vmul.f32 %v1432, %v1444
      %v1467 = vmul.f32 %v1433, %v1444
      %v1468 = vmul.f32 %v1434, %v1444
      %v1469 = vmul.f32 %v1435, %v1444
      %v1470 = vmul.f32 %v1436, %v1444
      %v1471 = vmul.f32 %v1437, %v1444
      %v1472 = vmul.f32 %v1438, %v1444
      %v1473 = vmul.f32 %v1439, %v1444
      %v1474 = vmul.f32 %v1440, %v1444
      %v1475 = vmul.f32 %v1441, %v1444
      %v1476 = vmul.f32 %v1442, %v1444
      %v1477 = vadd.f32 %v1379, %v1445
      %v1478 = vadd.f32 %v1380, %v1446
      %v1479 = vadd.f32 %v1381, %v1447
      %v1480 = vadd.f32 %v1382, %v1448
      %v1481 = vadd.f32 %v1383, %v1449
      %v1482 = vadd.f32 %v1384, %v1450
      %v1483 = vadd.f32 %v1385, %v1451
      %v1484 = vadd.f32 %v1386, %v1452
      %v1485 = vadd.f32 %v1387, %v1453
      %v1486 = vadd.f32 %v1388, %v1454
      %v1487 = vadd.f32 %v1389, %v1455
      %v1488 = vadd.f32 %v1390, %v1456
      %v1489 = vadd.f32 %v1391, %v1457
      %v1490 = vadd.f32 %v1392, %v1458
      %v1491 = vadd.f32 %v1393, %v1459
      %v1492 = vadd.f32 %v1394, %v1460
      %v1493 = vadd.f32 %v1395, %v1461
      %v1494 = vadd.f32 %v1396, %v1462
      %v1495 = vadd.f32 %v1397, %v1463
      %v1496 = vadd.f32 %v1398, %v1464
      %v1497 = vadd.f32 %v1399, %v1465
      %v1498 = vadd.f32 %v1400, %v1466
      %v1499 = vadd.f32 %v1401, %v1467
      %v1500 = vadd.f32 %v1402, %v1468
      %v1501 = vadd.f32 %v1403, %v1469
      %v1502 = vadd.f32 %v1404, %v1470
      %v1503 = vadd.f32 %v1405, %v1471
      %v1504 = vadd.f32 %v1406, %v1472
      %v1505 = vadd.f32 %v1407, %v1473
      %v1506 = vadd.f32 %v1408, %v1474
      %v1507 = vadd.f32 %v1409, %v1475
      %v1508 = vadd.f32 %v1410, %v1476
      %v1509 = vld [vmem:[%s1017 + $0x2] sm:$0xff]
      %v1510 = vld [vmem:[%s1017 + $0xa] sm:$0xff]
      %v1511 = vld [vmem:[%s1017 + $0x1a] sm:$0xff]
      %v1512 = vld [vmem:[%s1017 + $0x22] sm:$0xff]
      %v1513 = vld [vmem:[%s1017 + $0x32] sm:$0xff]
      %v1514 = vld [vmem:[%s1017 + $0x3a] sm:$0xff]
      %v1515 = vld [vmem:[%s1017 + $0x4a] sm:$0xff]
      %v1516 = vld [vmem:[%s1017 + $0x52] sm:$0xff]
      %v1517 = vld [vmem:[%s1017 + $0x62] sm:$0xff]
      %v1518 = vld [vmem:[%s1017 + $0x6a] sm:$0xff]
      %v1519 = vld [vmem:[%s1017 + $0x7a] sm:$0xff]
      %v1520 = vld [vmem:[%s1017 + $0x82] sm:$0xff]
      %v1521 = vld [vmem:[%s1017 + $0x92] sm:$0xff]
      %v1522 = vld [vmem:[%s1017 + $0x9a] sm:$0xff]
      %v1523 = vld [vmem:[%s1017 + $0xaa] sm:$0xff]
      %v1524 = vld [vmem:[%s1017 + $0xb2] sm:$0xff]
      %v1525 = vld [vmem:[%s1017 + $0xc2] sm:$0xff]
      %v1526 = vld [vmem:[%s1017 + $0xca] sm:$0xff]
      %v1527 = vld [vmem:[%s1017 + $0xda] sm:$0xff]
      %v1528 = vld [vmem:[%s1017 + $0xe2] sm:$0xff]
      %v1529 = vld [vmem:[%s1017 + $0xf2] sm:$0xff]
      %v1530 = vld [vmem:[%s1017 + $0xfa] sm:$0xff]
      %v1531 = vld [vmem:[%s1017 + $0x10a] sm:$0xff]
      %v1532 = vld [vmem:[%s1017 + $0x112] sm:$0xff]
      %v1533 = vld [vmem:[%s1017 + $0x122] sm:$0xff]
      %v1534 = vld [vmem:[%s1017 + $0x12a] sm:$0xff]
      %v1535 = vld [vmem:[%s1017 + $0x13a] sm:$0xff]
      %v1536 = vld [vmem:[%s1017 + $0x142] sm:$0xff]
      %v1537 = vld [vmem:[%s1017 + $0x152] sm:$0xff]
      %v1538 = vld [vmem:[%s1017 + $0x15a] sm:$0xff]
      %v1539 = vld [vmem:[%s1017 + $0x16a] sm:$0xff]
      %v1540 = vld [vmem:[%s1017 + $0x172] sm:$0xff]
      %v1541 = vld [vmem:[%s522 + $0x5] sm:$0x1]
      %v1542 = vperm.slane %v1541, 0
      %v1543 = vmul.f32 %v1509, %v1542
      %v1544 = vmul.f32 %v1510, %v1542
      %v1545 = vmul.f32 %v1511, %v1542
      %v1546 = vmul.f32 %v1512, %v1542
      %v1547 = vmul.f32 %v1513, %v1542
      %v1548 = vmul.f32 %v1514, %v1542
      %v1549 = vmul.f32 %v1515, %v1542
      %v1550 = vmul.f32 %v1516, %v1542
      %v1551 = vmul.f32 %v1517, %v1542
      %v1552 = vmul.f32 %v1518, %v1542
      %v1553 = vmul.f32 %v1519, %v1542
      %v1554 = vmul.f32 %v1520, %v1542
      %v1555 = vmul.f32 %v1521, %v1542
      %v1556 = vmul.f32 %v1522, %v1542
      %v1557 = vmul.f32 %v1523, %v1542
      %v1558 = vmul.f32 %v1524, %v1542
      %v1559 = vmul.f32 %v1525, %v1542
      %v1560 = vmul.f32 %v1526, %v1542
      %v1561 = vmul.f32 %v1527, %v1542
      %v1562 = vmul.f32 %v1528, %v1542
      %v1563 = vmul.f32 %v1529, %v1542
      %v1564 = vmul.f32 %v1530, %v1542
      %v1565 = vmul.f32 %v1531, %v1542
      %v1566 = vmul.f32 %v1532, %v1542
      %v1567 = vmul.f32 %v1533, %v1542
      %v1568 = vmul.f32 %v1534, %v1542
      %v1569 = vmul.f32 %v1535, %v1542
      %v1570 = vmul.f32 %v1536, %v1542
      %v1571 = vmul.f32 %v1537, %v1542
      %v1572 = vmul.f32 %v1538, %v1542
      %v1573 = vmul.f32 %v1539, %v1542
      %v1574 = vmul.f32 %v1540, %v1542
      %v1575 = vadd.f32 %v1477, %v1543
      %v1576 = vadd.f32 %v1478, %v1544
      %v1577 = vadd.f32 %v1479, %v1545
      %v1578 = vadd.f32 %v1480, %v1546
      %v1579 = vadd.f32 %v1481, %v1547
      %v1580 = vadd.f32 %v1482, %v1548
      %v1581 = vadd.f32 %v1483, %v1549
      %v1582 = vadd.f32 %v1484, %v1550
      %v1583 = vadd.f32 %v1485, %v1551
      %v1584 = vadd.f32 %v1486, %v1552
      %v1585 = vadd.f32 %v1487, %v1553
      %v1586 = vadd.f32 %v1488, %v1554
      %v1587 = vadd.f32 %v1489, %v1555
      %v1588 = vadd.f32 %v1490, %v1556
      %v1589 = vadd.f32 %v1491, %v1557
      %v1590 = vadd.f32 %v1492, %v1558
      %v1591 = vadd.f32 %v1493, %v1559
      %v1592 = vadd.f32 %v1494, %v1560
      %v1593 = vadd.f32 %v1495, %v1561
      %v1594 = vadd.f32 %v1496, %v1562
      %v1595 = vadd.f32 %v1497, %v1563
      %v1596 = vadd.f32 %v1498, %v1564
      %v1597 = vadd.f32 %v1499, %v1565
      %v1598 = vadd.f32 %v1500, %v1566
      %v1599 = vadd.f32 %v1501, %v1567
      %v1600 = vadd.f32 %v1502, %v1568
      %v1601 = vadd.f32 %v1503, %v1569
      %v1602 = vadd.f32 %v1504, %v1570
      %v1603 = vadd.f32 %v1505, %v1571
      %v1604 = vadd.f32 %v1506, %v1572
      %v1605 = vadd.f32 %v1507, %v1573
      %v1606 = vadd.f32 %v1508, %v1574
      %s1607 = scalar_lea.vmem [#allocation2], 48
      %v1608 = vld [vmem:[%s1607] sm:$0xff]
      %v1609 = vld [vmem:[%s1607 + $0x8] sm:$0xff]
      %v1610 = vld [vmem:[%s1607 + $0x18] sm:$0xff]
      %v1611 = vld [vmem:[%s1607 + $0x20] sm:$0xff]
      %v1612 = vld [vmem:[%s1607 + $0x30] sm:$0xff]
      %v1613 = vld [vmem:[%s1607 + $0x38] sm:$0xff]
      %v1614 = vld [vmem:[%s1607 + $0x48] sm:$0xff]
      %v1615 = vld [vmem:[%s1607 + $0x50] sm:$0xff]
      %v1616 = vld [vmem:[%s1607 + $0x60] sm:$0xff]
      %v1617 = vld [vmem:[%s1607 + $0x68] sm:$0xff]
      %v1618 = vld [vmem:[%s1607 + $0x78] sm:$0xff]
      %v1619 = vld [vmem:[%s1607 + $0x80] sm:$0xff]
      %v1620 = vld [vmem:[%s1607 + $0x90] sm:$0xff]
      %v1621 = vld [vmem:[%s1607 + $0x98] sm:$0xff]
      %v1622 = vld [vmem:[%s1607 + $0xa8] sm:$0xff]
      %v1623 = vld [vmem:[%s1607 + $0xb0] sm:$0xff]
      %v1624 = vld [vmem:[%s1607 + $0xc0] sm:$0xff]
      %v1625 = vld [vmem:[%s1607 + $0xc8] sm:$0xff]
      %v1626 = vld [vmem:[%s1607 + $0xd8] sm:$0xff]
      %v1627 = vld [vmem:[%s1607 + $0xe0] sm:$0xff]
      %v1628 = vld [vmem:[%s1607 + $0xf0] sm:$0xff]
      %v1629 = vld [vmem:[%s1607 + $0xf8] sm:$0xff]
      %v1630 = vld [vmem:[%s1607 + $0x108] sm:$0xff]
      %v1631 = vld [vmem:[%s1607 + $0x110] sm:$0xff]
      %v1632 = vld [vmem:[%s1607 + $0x120] sm:$0xff]
      %v1633 = vld [vmem:[%s1607 + $0x128] sm:$0xff]
      %v1634 = vld [vmem:[%s1607 + $0x138] sm:$0xff]
      %v1635 = vld [vmem:[%s1607 + $0x140] sm:$0xff]
      %v1636 = vld [vmem:[%s1607 + $0x150] sm:$0xff]
      %v1637 = vld [vmem:[%s1607 + $0x158] sm:$0xff]
      %v1638 = vld [vmem:[%s1607 + $0x168] sm:$0xff]
      %v1639 = vld [vmem:[%s1607 + $0x170] sm:$0xff]
      %v1640 = vld [vmem:[%s522 + $0x6] sm:$0x1]
      %v1641 = vperm.slane %v1640, 0
      %v1642 = vmul.f32 %v1608, %v1641
      %v1643 = vmul.f32 %v1609, %v1641
      %v1644 = vmul.f32 %v1610, %v1641
      %v1645 = vmul.f32 %v1611, %v1641
      %v1646 = vmul.f32 %v1612, %v1641
      %v1647 = vmul.f32 %v1613, %v1641
      %v1648 = vmul.f32 %v1614, %v1641
      %v1649 = vmul.f32 %v1615, %v1641
      %v1650 = vmul.f32 %v1616, %v1641
      %v1651 = vmul.f32 %v1617, %v1641
      %v1652 = vmul.f32 %v1618, %v1641
      %v1653 = vmul.f32 %v1619, %v1641
      %v1654 = vmul.f32 %v1620, %v1641
      %v1655 = vmul.f32 %v1621, %v1641
      %v1656 = vmul.f32 %v1622, %v1641
      %v1657 = vmul.f32 %v1623, %v1641
      %v1658 = vmul.f32 %v1624, %v1641
      %v1659 = vmul.f32 %v1625, %v1641
      %v1660 = vmul.f32 %v1626, %v1641
      %v1661 = vmul.f32 %v1627, %v1641
      %v1662 = vmul.f32 %v1628, %v1641
      %v1663 = vmul.f32 %v1629, %v1641
      %v1664 = vmul.f32 %v1630, %v1641
      %v1665 = vmul.f32 %v1631, %v1641
      %v1666 = vmul.f32 %v1632, %v1641
      %v1667 = vmul.f32 %v1633, %v1641
      %v1668 = vmul.f32 %v1634, %v1641
      %v1669 = vmul.f32 %v1635, %v1641
      %v1670 = vmul.f32 %v1636, %v1641
      %v1671 = vmul.f32 %v1637, %v1641
      %v1672 = vmul.f32 %v1638, %v1641
      %v1673 = vmul.f32 %v1639, %v1641
      %v1674 = vadd.f32 %v1575, %v1642
      %v1675 = vadd.f32 %v1576, %v1643
      %v1676 = vadd.f32 %v1577, %v1644
      %v1677 = vadd.f32 %v1578, %v1645
      %v1678 = vadd.f32 %v1579, %v1646
      %v1679 = vadd.f32 %v1580, %v1647
      %v1680 = vadd.f32 %v1581, %v1648
      %v1681 = vadd.f32 %v1582, %v1649
      %v1682 = vadd.f32 %v1583, %v1650
      %v1683 = vadd.f32 %v1584, %v1651
      %v1684 = vadd.f32 %v1585, %v1652
      %v1685 = vadd.f32 %v1586, %v1653
      %v1686 = vadd.f32 %v1587, %v1654
      %v1687 = vadd.f32 %v1588, %v1655
      %v1688 = vadd.f32 %v1589, %v1656
      %v1689 = vadd.f32 %v1590, %v1657
      %v1690 = vadd.f32 %v1591, %v1658
      %v1691 = vadd.f32 %v1592, %v1659
      %v1692 = vadd.f32 %v1593, %v1660
      %v1693 = vadd.f32 %v1594, %v1661
      %v1694 = vadd.f32 %v1595, %v1662
      %v1695 = vadd.f32 %v1596, %v1663
      %v1696 = vadd.f32 %v1597, %v1664
      %v1697 = vadd.f32 %v1598, %v1665
      %v1698 = vadd.f32 %v1599, %v1666
      %v1699 = vadd.f32 %v1600, %v1667
      %v1700 = vadd.f32 %v1601, %v1668
      %v1701 = vadd.f32 %v1602, %v1669
      %v1702 = vadd.f32 %v1603, %v1670
      %v1703 = vadd.f32 %v1604, %v1671
      %v1704 = vadd.f32 %v1605, %v1672
      %v1705 = vadd.f32 %v1606, %v1673
      %v1706 = vld [vmem:[%s1607 + $0x1] sm:$0xff]
      %v1707 = vld [vmem:[%s1607 + $0x9] sm:$0xff]
      %v1708 = vld [vmem:[%s1607 + $0x19] sm:$0xff]
      %v1709 = vld [vmem:[%s1607 + $0x21] sm:$0xff]
      %v1710 = vld [vmem:[%s1607 + $0x31] sm:$0xff]
      %v1711 = vld [vmem:[%s1607 + $0x39] sm:$0xff]
      %v1712 = vld [vmem:[%s1607 + $0x49] sm:$0xff]
      %v1713 = vld [vmem:[%s1607 + $0x51] sm:$0xff]
      %v1714 = vld [vmem:[%s1607 + $0x61] sm:$0xff]
      %v1715 = vld [vmem:[%s1607 + $0x69] sm:$0xff]
      %v1716 = vld [vmem:[%s1607 + $0x79] sm:$0xff]
      %v1717 = vld [vmem:[%s1607 + $0x81] sm:$0xff]
      %v1718 = vld [vmem:[%s1607 + $0x91] sm:$0xff]
      %v1719 = vld [vmem:[%s1607 + $0x99] sm:$0xff]
      %v1720 = vld [vmem:[%s1607 + $0xa9] sm:$0xff]
      %v1721 = vld [vmem:[%s1607 + $0xb1] sm:$0xff]
      %v1722 = vld [vmem:[%s1607 + $0xc1] sm:$0xff]
      %v1723 = vld [vmem:[%s1607 + $0xc9] sm:$0xff]
      %v1724 = vld [vmem:[%s1607 + $0xd9] sm:$0xff]
      %v1725 = vld [vmem:[%s1607 + $0xe1] sm:$0xff]
      %v1726 = vld [vmem:[%s1607 + $0xf1] sm:$0xff]
      %v1727 = vld [vmem:[%s1607 + $0xf9] sm:$0xff]
      %v1728 = vld [vmem:[%s1607 + $0x109] sm:$0xff]
      %v1729 = vld [vmem:[%s1607 + $0x111] sm:$0xff]
      %v1730 = vld [vmem:[%s1607 + $0x121] sm:$0xff]
      %v1731 = vld [vmem:[%s1607 + $0x129] sm:$0xff]
      %v1732 = vld [vmem:[%s1607 + $0x139] sm:$0xff]
      %v1733 = vld [vmem:[%s1607 + $0x141] sm:$0xff]
      %v1734 = vld [vmem:[%s1607 + $0x151] sm:$0xff]
      %v1735 = vld [vmem:[%s1607 + $0x159] sm:$0xff]
      %v1736 = vld [vmem:[%s1607 + $0x169] sm:$0xff]
      %v1737 = vld [vmem:[%s1607 + $0x171] sm:$0xff]
      %v1738 = vld [vmem:[%s522 + $0x7] sm:$0x1]
      %v1739 = vperm.slane %v1738, 0
      %v1740 = vmul.f32 %v1706, %v1739
      %v1741 = vmul.f32 %v1707, %v1739
      %v1742 = vmul.f32 %v1708, %v1739
      %v1743 = vmul.f32 %v1709, %v1739
      %v1744 = vmul.f32 %v1710, %v1739
      %v1745 = vmul.f32 %v1711, %v1739
      %v1746 = vmul.f32 %v1712, %v1739
      %v1747 = vmul.f32 %v1713, %v1739
      %v1748 = vmul.f32 %v1714, %v1739
      %v1749 = vmul.f32 %v1715, %v1739
      %v1750 = vmul.f32 %v1716, %v1739
      %v1751 = vmul.f32 %v1717, %v1739
      %v1752 = vmul.f32 %v1718, %v1739
      %v1753 = vmul.f32 %v1719, %v1739
      %v1754 = vmul.f32 %v1720, %v1739
      %v1755 = vmul.f32 %v1721, %v1739
      %v1756 = vmul.f32 %v1722, %v1739
      %v1757 = vmul.f32 %v1723, %v1739
      %v1758 = vmul.f32 %v1724, %v1739
      %v1759 = vmul.f32 %v1725, %v1739
      %v1760 = vmul.f32 %v1726, %v1739
      %v1761 = vmul.f32 %v1727, %v1739
      %v1762 = vmul.f32 %v1728, %v1739
      %v1763 = vmul.f32 %v1729, %v1739
      %v1764 = vmul.f32 %v1730, %v1739
      %v1765 = vmul.f32 %v1731, %v1739
      %v1766 = vmul.f32 %v1732, %v1739
      %v1767 = vmul.f32 %v1733, %v1739
      %v1768 = vmul.f32 %v1734, %v1739
      %v1769 = vmul.f32 %v1735, %v1739
      %v1770 = vmul.f32 %v1736, %v1739
      %v1771 = vmul.f32 %v1737, %v1739
      %v1772 = vadd.f32 %v1674, %v1740
      %v1773 = vadd.f32 %v1675, %v1741
      %v1774 = vadd.f32 %v1676, %v1742
      %v1775 = vadd.f32 %v1677, %v1743
      %v1776 = vadd.f32 %v1678, %v1744
      %v1777 = vadd.f32 %v1679, %v1745
      %v1778 = vadd.f32 %v1680, %v1746
      %v1779 = vadd.f32 %v1681, %v1747
      %v1780 = vadd.f32 %v1682, %v1748
      %v1781 = vadd.f32 %v1683, %v1749
      %v1782 = vadd.f32 %v1684, %v1750
      %v1783 = vadd.f32 %v1685, %v1751
      %v1784 = vadd.f32 %v1686, %v1752
      %v1785 = vadd.f32 %v1687, %v1753
      %v1786 = vadd.f32 %v1688, %v1754
      %v1787 = vadd.f32 %v1689, %v1755
      %v1788 = vadd.f32 %v1690, %v1756
      %v1789 = vadd.f32 %v1691, %v1757
      %v1790 = vadd.f32 %v1692, %v1758
      %v1791 = vadd.f32 %v1693, %v1759
      %v1792 = vadd.f32 %v1694, %v1760
      %v1793 = vadd.f32 %v1695, %v1761
      %v1794 = vadd.f32 %v1696, %v1762
      %v1795 = vadd.f32 %v1697, %v1763
      %v1796 = vadd.f32 %v1698, %v1764
      %v1797 = vadd.f32 %v1699, %v1765
      %v1798 = vadd.f32 %v1700, %v1766
      %v1799 = vadd.f32 %v1701, %v1767
      %v1800 = vadd.f32 %v1702, %v1768
      %v1801 = vadd.f32 %v1703, %v1769
      %v1802 = vadd.f32 %v1704, %v1770
      %v1803 = vadd.f32 %v1705, %v1771
      %v1804 = vld [vmem:[%s1607 + $0x2] sm:$0xff]
      %v1805 = vld [vmem:[%s1607 + $0xa] sm:$0xff]
      %v1806 = vld [vmem:[%s1607 + $0x1a] sm:$0xff]
      %v1807 = vld [vmem:[%s1607 + $0x22] sm:$0xff]
      %v1808 = vld [vmem:[%s1607 + $0x32] sm:$0xff]
      %v1809 = vld [vmem:[%s1607 + $0x3a] sm:$0xff]
      %v1810 = vld [vmem:[%s1607 + $0x4a] sm:$0xff]
      %v1811 = vld [vmem:[%s1607 + $0x52] sm:$0xff]
      %v1812 = vld [vmem:[%s1607 + $0x62] sm:$0xff]
      %v1813 = vld [vmem:[%s1607 + $0x6a] sm:$0xff]
      %v1814 = vld [vmem:[%s1607 + $0x7a] sm:$0xff]
      %v1815 = vld [vmem:[%s1607 + $0x82] sm:$0xff]
      %v1816 = vld [vmem:[%s1607 + $0x92] sm:$0xff]
      %v1817 = vld [vmem:[%s1607 + $0x9a] sm:$0xff]
      %v1818 = vld [vmem:[%s1607 + $0xaa] sm:$0xff]
      %v1819 = vld [vmem:[%s1607 + $0xb2] sm:$0xff]
      %v1820 = vld [vmem:[%s1607 + $0xc2] sm:$0xff]
      %v1821 = vld [vmem:[%s1607 + $0xca] sm:$0xff]
      %v1822 = vld [vmem:[%s1607 + $0xda] sm:$0xff]
      %v1823 = vld [vmem:[%s1607 + $0xe2] sm:$0xff]
      %v1824 = vld [vmem:[%s1607 + $0xf2] sm:$0xff]
      %v1825 = vld [vmem:[%s1607 + $0xfa] sm:$0xff]
      %v1826 = vld [vmem:[%s1607 + $0x10a] sm:$0xff]
      %v1827 = vld [vmem:[%s1607 + $0x112] sm:$0xff]
      %v1828 = vld [vmem:[%s1607 + $0x122] sm:$0xff]
      %v1829 = vld [vmem:[%s1607 + $0x12a] sm:$0xff]
      %v1830 = vld [vmem:[%s1607 + $0x13a] sm:$0xff]
      %v1831 = vld [vmem:[%s1607 + $0x142] sm:$0xff]
      %v1832 = vld [vmem:[%s1607 + $0x152] sm:$0xff]
      %v1833 = vld [vmem:[%s1607 + $0x15a] sm:$0xff]
      %v1834 = vld [vmem:[%s1607 + $0x16a] sm:$0xff]
      %v1835 = vld [vmem:[%s1607 + $0x172] sm:$0xff]
      %v1836 = vld [vmem:[%s522 + $0x8] sm:$0x1]
      %v1837 = vperm.slane %v1836, 0
      %v1838 = vmul.f32 %v1804, %v1837
      %v1839 = vmul.f32 %v1805, %v1837
      %v1840 = vmul.f32 %v1806, %v1837
      %v1841 = vmul.f32 %v1807, %v1837
      %v1842 = vmul.f32 %v1808, %v1837
      %v1843 = vmul.f32 %v1809, %v1837
      %v1844 = vmul.f32 %v1810, %v1837
      %v1845 = vmul.f32 %v1811, %v1837
      %v1846 = vmul.f32 %v1812, %v1837
      %v1847 = vmul.f32 %v1813, %v1837
      %v1848 = vmul.f32 %v1814, %v1837
      %v1849 = vmul.f32 %v1815, %v1837
      %v1850 = vmul.f32 %v1816, %v1837
      %v1851 = vmul.f32 %v1817, %v1837
      %v1852 = vmul.f32 %v1818, %v1837
      %v1853 = vmul.f32 %v1819, %v1837
      %v1854 = vmul.f32 %v1820, %v1837
      %v1855 = vmul.f32 %v1821, %v1837
      %v1856 = vmul.f32 %v1822, %v1837
      %v1857 = vmul.f32 %v1823, %v1837
      %v1858 = vmul.f32 %v1824, %v1837
      %v1859 = vmul.f32 %v1825, %v1837
      %v1860 = vmul.f32 %v1826, %v1837
      %v1861 = vmul.f32 %v1827, %v1837
      %v1862 = vmul.f32 %v1828, %v1837
      %v1863 = vmul.f32 %v1829, %v1837
      %v1864 = vmul.f32 %v1830, %v1837
      %v1865 = vmul.f32 %v1831, %v1837
      %v1866 = vmul.f32 %v1832, %v1837
      %v1867 = vmul.f32 %v1833, %v1837
      %v1868 = vmul.f32 %v1834, %v1837
      %v1869 = vmul.f32 %v1835, %v1837
      %v1870 = vadd.f32 %v1772, %v1838
      %v1871 = vadd.f32 %v1773, %v1839
      %v1872 = vadd.f32 %v1774, %v1840
      %v1873 = vadd.f32 %v1775, %v1841
      %v1874 = vadd.f32 %v1776, %v1842
      %v1875 = vadd.f32 %v1777, %v1843
      %v1876 = vadd.f32 %v1778, %v1844
      %v1877 = vadd.f32 %v1779, %v1845
      %v1878 = vadd.f32 %v1780, %v1846
      %v1879 = vadd.f32 %v1781, %v1847
      %v1880 = vadd.f32 %v1782, %v1848
      %v1881 = vadd.f32 %v1783, %v1849
      %v1882 = vadd.f32 %v1784, %v1850
      %v1883 = vadd.f32 %v1785, %v1851
      %v1884 = vadd.f32 %v1786, %v1852
      %v1885 = vadd.f32 %v1787, %v1853
      %v1886 = vadd.f32 %v1788, %v1854
      %v1887 = vadd.f32 %v1789, %v1855
      %v1888 = vadd.f32 %v1790, %v1856
      %v1889 = vadd.f32 %v1791, %v1857
      %v1890 = vadd.f32 %v1792, %v1858
      %v1891 = vadd.f32 %v1793, %v1859
      %v1892 = vadd.f32 %v1794, %v1860
      %v1893 = vadd.f32 %v1795, %v1861
      %v1894 = vadd.f32 %v1796, %v1862
      %v1895 = vadd.f32 %v1797, %v1863
      %v1896 = vadd.f32 %v1798, %v1864
      %v1897 = vadd.f32 %v1799, %v1865
      %v1898 = vadd.f32 %v1800, %v1866
      %v1899 = vadd.f32 %v1801, %v1867
      %v1900 = vadd.f32 %v1802, %v1868
      %v1901 = vadd.f32 %v1803, %v1869
      %v1902 = vld [vmem:[%s525] sm:$0x1]
      %v1904 = vperm.slane %v1902, 0
      %v1906 = vadd.f32 %v1870, %v1904
      %v1907 = vadd.f32 %v1871, %v1904
      %v1908 = vadd.f32 %v1872, %v1904
      %v1909 = vadd.f32 %v1873, %v1904
      %v1910 = vadd.f32 %v1874, %v1904
      %v1911 = vadd.f32 %v1875, %v1904
      %v1912 = vadd.f32 %v1876, %v1904
      %v1913 = vadd.f32 %v1877, %v1904
      %v1914 = vadd.f32 %v1878, %v1904
      %v1915 = vadd.f32 %v1879, %v1904
      %v1916 = vadd.f32 %v1880, %v1904
      %v1917 = vadd.f32 %v1881, %v1904
      %v1918 = vadd.f32 %v1882, %v1904
      %v1919 = vadd.f32 %v1883, %v1904
      %v1920 = vadd.f32 %v1884, %v1904
      %v1921 = vadd.f32 %v1885, %v1904
      %v1922 = vadd.f32 %v1886, %v1904
      %v1923 = vadd.f32 %v1887, %v1904
      %v1924 = vadd.f32 %v1888, %v1904
      %v1925 = vadd.f32 %v1889, %v1904
      %v1926 = vadd.f32 %v1890, %v1904
      %v1927 = vadd.f32 %v1891, %v1904
      %v1928 = vadd.f32 %v1892, %v1904
      %v1929 = vadd.f32 %v1893, %v1904
      %v1930 = vadd.f32 %v1894, %v1904
      %v1931 = vadd.f32 %v1895, %v1904
      %v1932 = vadd.f32 %v1896, %v1904
      %v1933 = vadd.f32 %v1897, %v1904
      %v1934 = vadd.f32 %v1898, %v1904
      %v1935 = vadd.f32 %v1899, %v1904
      %v1936 = vadd.f32 %v1900, %v1904
      %v1937 = vadd.f32 %v1901, %v1904
      %v1938 = vadd.f32 %v1906, 3.0
      %v1939 = vadd.f32 %v1907, 3.0
      %v1940 = vadd.f32 %v1908, 3.0
      %v1941 = vadd.f32 %v1909, 3.0
      %v1942 = vadd.f32 %v1910, 3.0
      %v1943 = vadd.f32 %v1911, 3.0
      %v1944 = vadd.f32 %v1912, 3.0
      %v1945 = vadd.f32 %v1913, 3.0
      %v1946 = vadd.f32 %v1914, 3.0
      %v1947 = vadd.f32 %v1915, 3.0
      %v1948 = vadd.f32 %v1916, 3.0
      %v1949 = vadd.f32 %v1917, 3.0
      %v1950 = vadd.f32 %v1918, 3.0
      %v1951 = vadd.f32 %v1919, 3.0
      %v1952 = vadd.f32 %v1920, 3.0
      %v1953 = vadd.f32 %v1921, 3.0
      %v1954 = vadd.f32 %v1922, 3.0
      %v1955 = vadd.f32 %v1923, 3.0
      %v1956 = vadd.f32 %v1924, 3.0
      %v1957 = vadd.f32 %v1925, 3.0
      %v1958 = vadd.f32 %v1926, 3.0
      %v1959 = vadd.f32 %v1927, 3.0
      %v1960 = vadd.f32 %v1928, 3.0
      %v1961 = vadd.f32 %v1929, 3.0
      %v1962 = vadd.f32 %v1930, 3.0
      %v1963 = vadd.f32 %v1931, 3.0
      %v1964 = vadd.f32 %v1932, 3.0
      %v1965 = vadd.f32 %v1933, 3.0
      %v1966 = vadd.f32 %v1934, 3.0
      %v1967 = vadd.f32 %v1935, 3.0
      %v1968 = vadd.f32 %v1936, 3.0
      %v1969 = vadd.f32 %v1937, 3.0
      %v1970 = vmax.f32 %v1938, 0.0
      %v1971 = vmax.f32 %v1939, 0.0
      %v1972 = vmax.f32 %v1940, 0.0
      %v1973 = vmax.f32 %v1941, 0.0
      %v1974 = vmax.f32 %v1942, 0.0
      %v1975 = vmax.f32 %v1943, 0.0
      %v1976 = vmax.f32 %v1944, 0.0
      %v1977 = vmax.f32 %v1945, 0.0
      %v1978 = vmax.f32 %v1946, 0.0
      %v1979 = vmax.f32 %v1947, 0.0
      %v1980 = vmax.f32 %v1948, 0.0
      %v1981 = vmax.f32 %v1949, 0.0
      %v1982 = vmax.f32 %v1950, 0.0
      %v1983 = vmax.f32 %v1951, 0.0
      %v1984 = vmax.f32 %v1952, 0.0
      %v1985 = vmax.f32 %v1953, 0.0
      %v1986 = vmax.f32 %v1954, 0.0
      %v1987 = vmax.f32 %v1955, 0.0
      %v1988 = vmax.f32 %v1956, 0.0
      %v1989 = vmax.f32 %v1957, 0.0
      %v1990 = vmax.f32 %v1958, 0.0
      %v1991 = vmax.f32 %v1959, 0.0
      %v1992 = vmax.f32 %v1960, 0.0
      %v1993 = vmax.f32 %v1961, 0.0
      %v1994 = vmax.f32 %v1962, 0.0
      %v1995 = vmax.f32 %v1963, 0.0
      %v1996 = vmax.f32 %v1964, 0.0
      %v1997 = vmax.f32 %v1965, 0.0
      %v1998 = vmax.f32 %v1966, 0.0
      %v1999 = vmax.f32 %v1967, 0.0
      %v2000 = vmax.f32 %v1968, 0.0
      %v2001 = vmax.f32 %v1969, 0.0
      %v2002 = vmin.f32 %v1970, 6.0
      %v2003 = vmin.f32 %v1971, 6.0
      %v2004 = vmin.f32 %v1972, 6.0
      %v2005 = vmin.f32 %v1973, 6.0
      %v2006 = vmin.f32 %v1974, 6.0
      %v2007 = vmin.f32 %v1975, 6.0
      %v2008 = vmin.f32 %v1976, 6.0
      %v2009 = vmin.f32 %v1977, 6.0
      %v2010 = vmin.f32 %v1978, 6.0
      %v2011 = vmin.f32 %v1979, 6.0
      %v2012 = vmin.f32 %v1980, 6.0
      %v2013 = vmin.f32 %v1981, 6.0
      %v2014 = vmin.f32 %v1982, 6.0
      %v2015 = vmin.f32 %v1983, 6.0
      %v2016 = vmin.f32 %v1984, 6.0
      %v2017 = vmin.f32 %v1985, 6.0
      %v2018 = vmin.f32 %v1986, 6.0
      %v2019 = vmin.f32 %v1987, 6.0
      %v2020 = vmin.f32 %v1988, 6.0
      %v2021 = vmin.f32 %v1989, 6.0
      %v2022 = vmin.f32 %v1990, 6.0
      %v2023 = vmin.f32 %v1991, 6.0
      %v2024 = vmin.f32 %v1992, 6.0
      %v2025 = vmin.f32 %v1993, 6.0
      %v2026 = vmin.f32 %v1994, 6.0
      %v2027 = vmin.f32 %v1995, 6.0
      %v2028 = vmin.f32 %v1996, 6.0
      %v2029 = vmin.f32 %v1997, 6.0
      %v2030 = vmin.f32 %v1998, 6.0
      %v2031 = vmin.f32 %v1999, 6.0
      %v2032 = vmin.f32 %v2000, 6.0
      %v2033 = vmin.f32 %v2001, 6.0
      %v2034 = vmul.f32 %v2002, 0.16666667
      %v2035 = vmul.f32 %v2003, 0.16666667
      %v2036 = vmul.f32 %v2004, 0.16666667
      %v2037 = vmul.f32 %v2005, 0.16666667
      %v2038 = vmul.f32 %v2006, 0.16666667
      %v2039 = vmul.f32 %v2007, 0.16666667
      %v2040 = vmul.f32 %v2008, 0.16666667
      %v2041 = vmul.f32 %v2009, 0.16666667
      %v2042 = vmul.f32 %v2010, 0.16666667
      %v2043 = vmul.f32 %v2011, 0.16666667
      %v2044 = vmul.f32 %v2012, 0.16666667
      %v2045 = vmul.f32 %v2013, 0.16666667
      %v2046 = vmul.f32 %v2014, 0.16666667
      %v2047 = vmul.f32 %v2015, 0.16666667
      %v2048 = vmul.f32 %v2016, 0.16666667
      %v2049 = vmul.f32 %v2017, 0.16666667
      %v2050 = vmul.f32 %v2018, 0.16666667
      %v2051 = vmul.f32 %v2019, 0.16666667
      %v2052 = vmul.f32 %v2020, 0.16666667
      %v2053 = vmul.f32 %v2021, 0.16666667
      %v2054 = vmul.f32 %v2022, 0.16666667
      %v2055 = vmul.f32 %v2023, 0.16666667
      %v2056 = vmul.f32 %v2024, 0.16666667
      %v2057 = vmul.f32 %v2025, 0.16666667
      %v2058 = vmul.f32 %v2026, 0.16666667
      %v2059 = vmul.f32 %v2027, 0.16666667
      %v2060 = vmul.f32 %v2028, 0.16666667
      %v2061 = vmul.f32 %v2029, 0.16666667
      %v2062 = vmul.f32 %v2030, 0.16666667
      %v2063 = vmul.f32 %v2031, 0.16666667
      %v2064 = vmul.f32 %v2032, 0.16666667
      %v2065 = vmul.f32 %v2033, 0.16666667
      %v2066 = vmul.f32 %v1906, %v2034
      %v2067 = vmul.f32 %v1907, %v2035
      %v2068 = vmul.f32 %v1908, %v2036
      %v2069 = vmul.f32 %v1909, %v2037
      %v2070 = vmul.f32 %v1910, %v2038
      %v2071 = vmul.f32 %v1911, %v2039
      %v2072 = vmul.f32 %v1912, %v2040
      %v2073 = vmul.f32 %v1913, %v2041
      %v2074 = vmul.f32 %v1914, %v2042
      %v2075 = vmul.f32 %v1915, %v2043
      %v2076 = vmul.f32 %v1916, %v2044
      %v2077 = vmul.f32 %v1917, %v2045
      %v2078 = vmul.f32 %v1918, %v2046
      %v2079 = vmul.f32 %v1919, %v2047
      %v2080 = vmul.f32 %v1920, %v2048
      %v2081 = vmul.f32 %v1921, %v2049
      %v2082 = vmul.f32 %v1922, %v2050
      %v2083 = vmul.f32 %v1923, %v2051
      %v2084 = vmul.f32 %v1924, %v2052
      %v2085 = vmul.f32 %v1925, %v2053
      %v2086 = vmul.f32 %v1926, %v2054
      %v2087 = vmul.f32 %v1927, %v2055
      %v2088 = vmul.f32 %v1928, %v2056
      %v2089 = vmul.f32 %v1929, %v2057
      %v2090 = vmul.f32 %v1930, %v2058
      %v2091 = vmul.f32 %v1931, %v2059
      %v2092 = vmul.f32 %v1932, %v2060
      %v2093 = vmul.f32 %v1933, %v2061
      %v2094 = vmul.f32 %v1934, %v2062
      %v2095 = vmul.f32 %v1935, %v2063
      %v2096 = vmul.f32 %v1936, %v2064
      %v2097 = vmul.f32 %v1937, %v2065
      %v2098 = vpack.c.bf16 %v2067, %v2066
      %v2099 = vpack.c.bf16 %v2069, %v2068
      %v2100 = vpack.c.bf16 %v2071, %v2070
      %v2101 = vpack.c.bf16 %v2073, %v2072
      %v2102 = vpack.c.bf16 %v2075, %v2074
      %v2103 = vpack.c.bf16 %v2077, %v2076
      %v2104 = vpack.c.bf16 %v2079, %v2078
      %v2105 = vpack.c.bf16 %v2081, %v2080
      %v2106 = vpack.c.bf16 %v2083, %v2082
      %v2107 = vpack.c.bf16 %v2085, %v2084
      %v2108 = vpack.c.bf16 %v2087, %v2086
      %v2109 = vpack.c.bf16 %v2089, %v2088
      %v2110 = vpack.c.bf16 %v2091, %v2090
      %v2111 = vpack.c.bf16 %v2093, %v2092
      %v2112 = vpack.c.bf16 %v2095, %v2094
      %v2113 = vpack.c.bf16 %v2097, %v2096
      %v2114 = vld [vmem:[%s530] sm:$0xf]
      %v2115 = vld [vmem:[%s530 + $0x4] sm:$0xf]
      %v2116 = vld [vmem:[%s530 + $0x8] sm:$0xf]
      %v2120 = vunpack.c.l.b16 %v2114
      %v2121 = vunpack.c.l.b16 %v2115
      %v2122 = vunpack.c.l.b16 %v2116
      %v2123 = vpack.c.b16 %v2121, %v2120
      %v2124 = vpack.c.b16 %v2122, %v2122
      %v2127 = vsel %vm1018, %v2098, 0
      %v2130 = vsel %vm1018, %v2099, 0
      %v2133 = vsel %vm1018, %v2100, 0
      %v2136 = vsel %vm1018, %v2101, 0
      %v2139 = vsel %vm1018, %v2102, 0
      %v2142 = vsel %vm1018, %v2103, 0
      %v2145 = vsel %vm1018, %v2104, 0
      %v2148 = vsel %vm1018, %v2105, 0
      %v2151 = vsel %vm1018, %v2106, 0
      %v2154 = vsel %vm1018, %v2107, 0
      %v2157 = vsel %vm1018, %v2108, 0
      %v2160 = vsel %vm1018, %v2109, 0
      %v2163 = vsel %vm1018, %v2110, 0
      %v2166 = vsel %vm1018, %v2111, 0
      %v2169 = vsel %vm1018, %v2112, 0
      %v2172 = vsel %vm1018, %v2113, 0
      %v2175 = vsel %vm764, %v2124, 0
      %2177 = vmatpush.bf16.msra.mxu0 0
      %2178 = vmatpush.bf16.msra.mxu0 0
      %2179 = vmatpush.bf16.msra.mxu0 0
      %2180 = vmatpush.bf16.msra.mxu0 0
      %2181 = vmatpush.bf16.msra.mxu0 0
      %2182 = vmatpush.bf16.msra.mxu0 0
      %2183 = vmatpush.bf16.msra.mxu0 %v2175
      %2184 = vmatpush.bf16.msra.mxu0 %v2123
      %2185 = vmatmul.bf16.gmra.mxu0 %v2127
      %v2186 = vpop.f32.mrf.mxu0
      %v2187 = vadd.f32 0.0, %v2186
      %v2188 = vpop.f32.mrf.mxu0
      %v2189 = vadd.f32 0.0, %v2188
      %2190 = vmatmul.bf16.gmra.mxu0 %v2130
      %v2191 = vpop.f32.mrf.mxu0
      %v2192 = vadd.f32 0.0, %v2191
      %v2193 = vpop.f32.mrf.mxu0
      %v2194 = vadd.f32 0.0, %v2193
      %2195 = vmatmul.bf16.gmra.mxu0 %v2133
      %v2196 = vpop.f32.mrf.mxu0
      %v2197 = vadd.f32 0.0, %v2196
      %v2198 = vpop.f32.mrf.mxu0
      %v2199 = vadd.f32 0.0, %v2198
      %2200 = vmatmul.bf16.gmra.mxu0 %v2136
      %v2201 = vpop.f32.mrf.mxu0
      %v2202 = vadd.f32 0.0, %v2201
      %v2203 = vpop.f32.mrf.mxu0
      %v2204 = vadd.f32 0.0, %v2203
      %2205 = vmatmul.bf16.gmra.mxu0 %v2139
      %v2206 = vpop.f32.mrf.mxu0
      %v2207 = vadd.f32 0.0, %v2206
      %v2208 = vpop.f32.mrf.mxu0
      %v2209 = vadd.f32 0.0, %v2208
      %2210 = vmatmul.bf16.gmra.mxu0 %v2142
      %v2211 = vpop.f32.mrf.mxu0
      %v2212 = vadd.f32 0.0, %v2211
      %v2213 = vpop.f32.mrf.mxu0
      %v2214 = vadd.f32 0.0, %v2213
      %2215 = vmatmul.bf16.gmra.mxu0 %v2145
      %v2216 = vpop.f32.mrf.mxu0
      %v2217 = vadd.f32 0.0, %v2216
      %v2218 = vpop.f32.mrf.mxu0
      %v2219 = vadd.f32 0.0, %v2218
      %2220 = vmatmul.bf16.gmra.mxu0 %v2148
      %v2221 = vpop.f32.mrf.mxu0
      %v2222 = vadd.f32 0.0, %v2221
      %v2223 = vpop.f32.mrf.mxu0
      %v2224 = vadd.f32 0.0, %v2223
      %2225 = vmatmul.bf16.gmra.mxu0 %v2151
      %v2226 = vpop.f32.mrf.mxu0
      %v2227 = vadd.f32 0.0, %v2226
      %v2228 = vpop.f32.mrf.mxu0
      %v2229 = vadd.f32 0.0, %v2228
      %2230 = vmatmul.bf16.gmra.mxu0 %v2154
      %v2231 = vpop.f32.mrf.mxu0
      %v2232 = vadd.f32 0.0, %v2231
      %v2233 = vpop.f32.mrf.mxu0
      %v2234 = vadd.f32 0.0, %v2233
      %2235 = vmatmul.bf16.gmra.mxu0 %v2157
      %v2236 = vpop.f32.mrf.mxu0
      %v2237 = vadd.f32 0.0, %v2236
      %v2238 = vpop.f32.mrf.mxu0
      %v2239 = vadd.f32 0.0, %v2238
      %2240 = vmatmul.bf16.gmra.mxu0 %v2160
      %v2241 = vpop.f32.mrf.mxu0
      %v2242 = vadd.f32 0.0, %v2241
      %v2243 = vpop.f32.mrf.mxu0
      %v2244 = vadd.f32 0.0, %v2243
      %2245 = vmatmul.bf16.gmra.mxu0 %v2163
      %v2246 = vpop.f32.mrf.mxu0
      %v2247 = vadd.f32 0.0, %v2246
      %v2248 = vpop.f32.mrf.mxu0
      %v2249 = vadd.f32 0.0, %v2248
      %2250 = vmatmul.bf16.gmra.mxu0 %v2166
      %v2251 = vpop.f32.mrf.mxu0
      %v2252 = vadd.f32 0.0, %v2251
      %v2253 = vpop.f32.mrf.mxu0
      %v2254 = vadd.f32 0.0, %v2253
      %2255 = vmatmul.bf16.gmra.mxu0 %v2169
      %v2256 = vpop.f32.mrf.mxu0
      %v2257 = vadd.f32 0.0, %v2256
      %v2258 = vpop.f32.mrf.mxu0
      %v2259 = vadd.f32 0.0, %v2258
      %2260 = vmatmul.bf16.gmra.mxu0 %v2172
      %v2261 = vpop.f32.mrf.mxu0
      %v2262 = vadd.f32 0.0, %v2261
      %v2263 = vpop.f32.mrf.mxu0
      %v2264 = vadd.f32 0.0, %v2263
      %2265 = vdwg.mxu0
      // Predicated region
      $region77: #{tpu_custom_call.1} parent=71 // pred_check
        %p2266 = pneg %p538
      $region78: #{tpu_custom_call.1} parent=71 // pred_check_branch
        %2268 = sbr.rel (%p2266) target = $region80
      $region79: #{tpu_custom_call.1} parent=71 // pred_region
        %v2269 = vld [vmem:[%s6] sm:$0x1]
        %v2271 = vperm.slane %v2269, 0
        %v2273 = vadd.f32 %v2187, %v2271
        %v2274 = vadd.f32 %v2189, %v2271
        %v2275 = vadd.f32 %v2192, %v2271
        %v2276 = vadd.f32 %v2194, %v2271
        %v2277 = vadd.f32 %v2197, %v2271
        %v2278 = vadd.f32 %v2199, %v2271
        %v2279 = vadd.f32 %v2202, %v2271
        %v2280 = vadd.f32 %v2204, %v2271
        %v2281 = vadd.f32 %v2207, %v2271
        %v2282 = vadd.f32 %v2209, %v2271
        %v2283 = vadd.f32 %v2212, %v2271
        %v2284 = vadd.f32 %v2214, %v2271
        %v2285 = vadd.f32 %v2217, %v2271
        %v2286 = vadd.f32 %v2219, %v2271
        %v2287 = vadd.f32 %v2222, %v2271
        %v2288 = vadd.f32 %v2224, %v2271
        %v2289 = vadd.f32 %v2227, %v2271
        %v2290 = vadd.f32 %v2229, %v2271
        %v2291 = vadd.f32 %v2232, %v2271
        %v2292 = vadd.f32 %v2234, %v2271
        %v2293 = vadd.f32 %v2237, %v2271
        %v2294 = vadd.f32 %v2239, %v2271
        %v2295 = vadd.f32 %v2242, %v2271
        %v2296 = vadd.f32 %v2244, %v2271
        %v2297 = vadd.f32 %v2247, %v2271
        %v2298 = vadd.f32 %v2249, %v2271
        %v2299 = vadd.f32 %v2252, %v2271
        %v2300 = vadd.f32 %v2254, %v2271
        %v2301 = vadd.f32 %v2257, %v2271
        %v2302 = vadd.f32 %v2259, %v2271
        %v2303 = vadd.f32 %v2262, %v2271
        %v2304 = vadd.f32 %v2264, %v2271
        %vm2305 = vcmask 97280
        %2306 = vst.msk [vmem:[%s536] sm:$0xff] %vm2305, %v2273
        %2307 = vst.msk [vmem:[%s536 + $0x8] sm:$0xff] %vm2305, %v2274
        %2308 = vst.msk [vmem:[%s536 + $0x10] sm:$0xff] %vm2305, %v2275
        %2309 = vst.msk [vmem:[%s536 + $0x18] sm:$0xff] %vm2305, %v2276
        %2310 = vst.msk [vmem:[%s536 + $0x20] sm:$0xff] %vm2305, %v2277
        %2311 = vst.msk [vmem:[%s536 + $0x28] sm:$0xff] %vm2305, %v2278
        %2312 = vst.msk [vmem:[%s536 + $0x30] sm:$0xff] %vm2305, %v2279
        %2313 = vst.msk [vmem:[%s536 + $0x38] sm:$0xff] %vm2305, %v2280
        %2314 = vst.msk [vmem:[%s536 + $0x40] sm:$0xff] %vm2305, %v2281
        %2315 = vst.msk [vmem:[%s536 + $0x48] sm:$0xff] %vm2305, %v2282
        %2316 = vst.msk [vmem:[%s536 + $0x50] sm:$0xff] %vm2305, %v2283
        %2317 = vst.msk [vmem:[%s536 + $0x58] sm:$0xff] %vm2305, %v2284
        %2318 = vst.msk [vmem:[%s536 + $0x60] sm:$0xff] %vm2305, %v2285
        %2319 = vst.msk [vmem:[%s536 + $0x68] sm:$0xff] %vm2305, %v2286
        %2320 = vst.msk [vmem:[%s536 + $0x70] sm:$0xff] %vm2305, %v2287
        %2321 = vst.msk [vmem:[%s536 + $0x78] sm:$0xff] %vm2305, %v2288
        %2322 = vst.msk [vmem:[%s536 + $0x80] sm:$0xff] %vm2305, %v2289
        %2323 = vst.msk [vmem:[%s536 + $0x88] sm:$0xff] %vm2305, %v2290
        %2324 = vst.msk [vmem:[%s536 + $0x90] sm:$0xff] %vm2305, %v2291
        %2325 = vst.msk [vmem:[%s536 + $0x98] sm:$0xff] %vm2305, %v2292
        %2326 = vst.msk [vmem:[%s536 + $0xa0] sm:$0xff] %vm2305, %v2293
        %2327 = vst.msk [vmem:[%s536 + $0xa8] sm:$0xff] %vm2305, %v2294
        %2328 = vst.msk [vmem:[%s536 + $0xb0] sm:$0xff] %vm2305, %v2295
        %2329 = vst.msk [vmem:[%s536 + $0xb8] sm:$0xff] %vm2305, %v2296
        %2330 = vst.msk [vmem:[%s536 + $0xc0] sm:$0xff] %vm2305, %v2297
        %2331 = vst.msk [vmem:[%s536 + $0xc8] sm:$0xff] %vm2305, %v2298
        %2332 = vst.msk [vmem:[%s536 + $0xd0] sm:$0xff] %vm2305, %v2299
        %2333 = vst.msk [vmem:[%s536 + $0xd8] sm:$0xff] %vm2305, %v2300
        %2334 = vst.msk [vmem:[%s536 + $0xe0] sm:$0xff] %vm2305, %v2301
        %2335 = vst.msk [vmem:[%s536 + $0xe8] sm:$0xff] %vm2305, %v2302
        %2336 = vst.msk [vmem:[%s536 + $0xf0] sm:$0xff] %vm2305, %v2303
        %2337 = vst.msk [vmem:[%s536 + $0xf8] sm:$0xff] %vm2305, %v2304
      $region80: #{tpu_custom_call.1} parent=71 // pred_fallthru
        _
      %p2338 = scmp.gt.s32.totalorder %s29, 0
      // Predicated region
      $region81: #{tpu_custom_call.1} parent=71 // pred_check
        %p2339 = pneg %p2338
      $region82: #{tpu_custom_call.1} parent=71 // pred_check_branch
        %2341 = sbr.rel (%p2339) target = $region84
      $region83: #{tpu_custom_call.1} parent=71 // pred_region
        %v2342 = vld [vmem:[%s536] sm:$0xff]
        %v2343 = vld [vmem:[%s536 + $0x8] sm:$0xff]
        %v2344 = vld [vmem:[%s536 + $0x10] sm:$0xff]
        %v2345 = vld [vmem:[%s536 + $0x18] sm:$0xff]
        %v2346 = vld [vmem:[%s536 + $0x20] sm:$0xff]
        %v2347 = vld [vmem:[%s536 + $0x28] sm:$0xff]
        %v2348 = vld [vmem:[%s536 + $0x30] sm:$0xff]
        %v2349 = vld [vmem:[%s536 + $0x38] sm:$0xff]
        %v2350 = vld [vmem:[%s536 + $0x40] sm:$0xff]
        %v2351 = vld [vmem:[%s536 + $0x48] sm:$0xff]
        %v2352 = vld [vmem:[%s536 + $0x50] sm:$0xff]
        %v2353 = vld [vmem:[%s536 + $0x58] sm:$0xff]
        %v2354 = vld [vmem:[%s536 + $0x60] sm:$0xff]
        %v2355 = vld [vmem:[%s536 + $0x68] sm:$0xff]
        %v2356 = vld [vmem:[%s536 + $0x70] sm:$0xff]
        %v2357 = vld [vmem:[%s536 + $0x78] sm:$0xff]
        %v2358 = vld [vmem:[%s536 + $0x80] sm:$0xff]
        %v2359 = vld [vmem:[%s536 + $0x88] sm:$0xff]
        %v2360 = vld [vmem:[%s536 + $0x90] sm:$0xff]
        %v2361 = vld [vmem:[%s536 + $0x98] sm:$0xff]
        %v2362 = vld [vmem:[%s536 + $0xa0] sm:$0xff]
        %v2363 = vld [vmem:[%s536 + $0xa8] sm:$0xff]
        %v2364 = vld [vmem:[%s536 + $0xb0] sm:$0xff]
        %v2365 = vld [vmem:[%s536 + $0xb8] sm:$0xff]
        %v2366 = vld [vmem:[%s536 + $0xc0] sm:$0xff]
        %v2367 = vld [vmem:[%s536 + $0xc8] sm:$0xff]
        %v2368 = vld [vmem:[%s536 + $0xd0] sm:$0xff]
        %v2369 = vld [vmem:[%s536 + $0xd8] sm:$0xff]
        %v2370 = vld [vmem:[%s536 + $0xe0] sm:$0xff]
        %v2371 = vld [vmem:[%s536 + $0xe8] sm:$0xff]
        %v2372 = vld [vmem:[%s536 + $0xf0] sm:$0xff]
        %v2373 = vld [vmem:[%s536 + $0xf8] sm:$0xff]
        %v2374 = vadd.f32 %v2342, %v2187
        %v2375 = vadd.f32 %v2343, %v2189
        %v2376 = vadd.f32 %v2344, %v2192
        %v2377 = vadd.f32 %v2345, %v2194
        %v2378 = vadd.f32 %v2346, %v2197
        %v2379 = vadd.f32 %v2347, %v2199
        %v2380 = vadd.f32 %v2348, %v2202
        %v2381 = vadd.f32 %v2349, %v2204
        %v2382 = vadd.f32 %v2350, %v2207
        %v2383 = vadd.f32 %v2351, %v2209
        %v2384 = vadd.f32 %v2352, %v2212
        %v2385 = vadd.f32 %v2353, %v2214
        %v2386 = vadd.f32 %v2354, %v2217
        %v2387 = vadd.f32 %v2355, %v2219
        %v2388 = vadd.f32 %v2356, %v2222
        %v2389 = vadd.f32 %v2357, %v2224
        %v2390 = vadd.f32 %v2358, %v2227
        %v2391 = vadd.f32 %v2359, %v2229
        %v2392 = vadd.f32 %v2360, %v2232
        %v2393 = vadd.f32 %v2361, %v2234
        %v2394 = vadd.f32 %v2362, %v2237
        %v2395 = vadd.f32 %v2363, %v2239
        %v2396 = vadd.f32 %v2364, %v2242
        %v2397 = vadd.f32 %v2365, %v2244
        %v2398 = vadd.f32 %v2366, %v2247
        %v2399 = vadd.f32 %v2367, %v2249
        %v2400 = vadd.f32 %v2368, %v2252
        %v2401 = vadd.f32 %v2369, %v2254
        %v2402 = vadd.f32 %v2370, %v2257
        %v2403 = vadd.f32 %v2371, %v2259
        %v2404 = vadd.f32 %v2372, %v2262
        %v2405 = vadd.f32 %v2373, %v2264
        %vm2406 = vcmask 97280
        %2407 = vst.msk [vmem:[%s536] sm:$0xff] %vm2406, %v2374
        %2408 = vst.msk [vmem:[%s536 + $0x8] sm:$0xff] %vm2406, %v2375
        %2409 = vst.msk [vmem:[%s536 + $0x10] sm:$0xff] %vm2406, %v2376
        %2410 = vst.msk [vmem:[%s536 + $0x18] sm:$0xff] %vm2406, %v2377
        %2411 = vst.msk [vmem:[%s536 + $0x20] sm:$0xff] %vm2406, %v2378
        %2412 = vst.msk [vmem:[%s536 + $0x28] sm:$0xff] %vm2406, %v2379
        %2413 = vst.msk [vmem:[%s536 + $0x30] sm:$0xff] %vm2406, %v2380
        %2414 = vst.msk [vmem:[%s536 + $0x38] sm:$0xff] %vm2406, %v2381
        %2415 = vst.msk [vmem:[%s536 + $0x40] sm:$0xff] %vm2406, %v2382
        %2416 = vst.msk [vmem:[%s536 + $0x48] sm:$0xff] %vm2406, %v2383
        %2417 = vst.msk [vmem:[%s536 + $0x50] sm:$0xff] %vm2406, %v2384
        %2418 = vst.msk [vmem:[%s536 + $0x58] sm:$0xff] %vm2406, %v2385
        %2419 = vst.msk [vmem:[%s536 + $0x60] sm:$0xff] %vm2406, %v2386
        %2420 = vst.msk [vmem:[%s536 + $0x68] sm:$0xff] %vm2406, %v2387
        %2421 = vst.msk [vmem:[%s536 + $0x70] sm:$0xff] %vm2406, %v2388
        %2422 = vst.msk [vmem:[%s536 + $0x78] sm:$0xff] %vm2406, %v2389
        %2423 = vst.msk [vmem:[%s536 + $0x80] sm:$0xff] %vm2406, %v2390
        %2424 = vst.msk [vmem:[%s536 + $0x88] sm:$0xff] %vm2406, %v2391
        %2425 = vst.msk [vmem:[%s536 + $0x90] sm:$0xff] %vm2406, %v2392
        %2426 = vst.msk [vmem:[%s536 + $0x98] sm:$0xff] %vm2406, %v2393
        %2427 = vst.msk [vmem:[%s536 + $0xa0] sm:$0xff] %vm2406, %v2394
        %2428 = vst.msk [vmem:[%s536 + $0xa8] sm:$0xff] %vm2406, %v2395
        %2429 = vst.msk [vmem:[%s536 + $0xb0] sm:$0xff] %vm2406, %v2396
        %2430 = vst.msk [vmem:[%s536 + $0xb8] sm:$0xff] %vm2406, %v2397
        %2431 = vst.msk [vmem:[%s536 + $0xc0] sm:$0xff] %vm2406, %v2398
        %2432 = vst.msk [vmem:[%s536 + $0xc8] sm:$0xff] %vm2406, %v2399
        %2433 = vst.msk [vmem:[%s536 + $0xd0] sm:$0xff] %vm2406, %v2400
        %2434 = vst.msk [vmem:[%s536 + $0xd8] sm:$0xff] %vm2406, %v2401
        %2435 = vst.msk [vmem:[%s536 + $0xe0] sm:$0xff] %vm2406, %v2402
        %2436 = vst.msk [vmem:[%s536 + $0xe8] sm:$0xff] %vm2406, %v2403
        %2437 = vst.msk [vmem:[%s536 + $0xf0] sm:$0xff] %vm2406, %v2404
        %2438 = vst.msk [vmem:[%s536 + $0xf8] sm:$0xff] %vm2406, %v2405
      $region84: #{tpu_custom_call.1} parent=71 // pred_fallthru
        _
      // Predicated region
      $region85: #{tpu_custom_call.1} parent=71 // pred_check
        %p2439 = pneg %p538
      $region86: #{tpu_custom_call.1} parent=71 // pred_check_branch
        %2441 = sbr.rel (%p2439) target = $region88
      $region87: #{tpu_custom_call.1} parent=71 // pred_region
        %v2442 = vld [vmem:[%s536] sm:$0xff]
        %v2443 = vld [vmem:[%s536 + $0x8] sm:$0xff]
        %v2444 = vld [vmem:[%s536 + $0x10] sm:$0xff]
        %v2445 = vld [vmem:[%s536 + $0x18] sm:$0xff]
        %v2446 = vld [vmem:[%s536 + $0x20] sm:$0xff]
        %v2447 = vld [vmem:[%s536 + $0x28] sm:$0xff]
        %v2448 = vld [vmem:[%s536 + $0x30] sm:$0xff]
        %v2449 = vld [vmem:[%s536 + $0x38] sm:$0xff]
        %v2450 = vld [vmem:[%s536 + $0x40] sm:$0xff]
        %v2451 = vld [vmem:[%s536 + $0x48] sm:$0xff]
        %v2452 = vld [vmem:[%s536 + $0x50] sm:$0xff]
        %v2453 = vld [vmem:[%s536 + $0x58] sm:$0xff]
        %v2454 = vld [vmem:[%s536 + $0x60] sm:$0xff]
        %v2455 = vld [vmem:[%s536 + $0x68] sm:$0xff]
        %v2456 = vld [vmem:[%s536 + $0x70] sm:$0xff]
        %v2457 = vld [vmem:[%s536 + $0x78] sm:$0xff]
        %v2458 = vld [vmem:[%s536 + $0x80] sm:$0xff]
        %v2459 = vld [vmem:[%s536 + $0x88] sm:$0xff]
        %v2460 = vld [vmem:[%s536 + $0x90] sm:$0xff]
        %v2461 = vld [vmem:[%s536 + $0x98] sm:$0xff]
        %v2462 = vld [vmem:[%s536 + $0xa0] sm:$0xff]
        %v2463 = vld [vmem:[%s536 + $0xa8] sm:$0xff]
        %v2464 = vld [vmem:[%s536 + $0xb0] sm:$0xff]
        %v2465 = vld [vmem:[%s536 + $0xb8] sm:$0xff]
        %v2466 = vld [vmem:[%s536 + $0xc0] sm:$0xff]
        %v2467 = vld [vmem:[%s536 + $0xc8] sm:$0xff]
        %v2468 = vld [vmem:[%s536 + $0xd0] sm:$0xff]
        %v2469 = vld [vmem:[%s536 + $0xd8] sm:$0xff]
        %v2470 = vld [vmem:[%s536 + $0xe0] sm:$0xff]
        %v2471 = vld [vmem:[%s536 + $0xe8] sm:$0xff]
        %v2472 = vld [vmem:[%s536 + $0xf0] sm:$0xff]
        %v2473 = vld [vmem:[%s536 + $0xf8] sm:$0xff]
        %vm2474 = vcmask 97280
        %v2475 = vsel %vm2474, %v2442, 0.0
        %v2476 = vsel %vm2474, %v2443, 0.0
        %v2477 = vadd.f32 %v2475, %v2476
        %v2478 = vsel %vm2474, %v2444, 0.0
        %v2479 = vadd.f32 %v2477, %v2478
        %v2480 = vsel %vm2474, %v2445, 0.0
        %v2481 = vadd.f32 %v2479, %v2480
        %v2482 = vsel %vm2474, %v2446, 0.0
        %v2483 = vadd.f32 %v2481, %v2482
        %v2484 = vsel %vm2474, %v2447, 0.0
        %v2485 = vadd.f32 %v2483, %v2484
        %v2486 = vsel %vm2474, %v2448, 0.0
        %v2487 = vadd.f32 %v2485, %v2486
        %v2488 = vsel %vm2474, %v2449, 0.0
        %v2489 = vadd.f32 %v2487, %v2488
        %v2490 = vsel %vm2474, %v2450, 0.0
        %v2491 = vadd.f32 %v2489, %v2490
        %v2492 = vsel %vm2474, %v2451, 0.0
        %v2493 = vadd.f32 %v2491, %v2492
        %v2494 = vsel %vm2474, %v2452, 0.0
        %v2495 = vadd.f32 %v2493, %v2494
        %v2496 = vsel %vm2474, %v2453, 0.0
        %v2497 = vadd.f32 %v2495, %v2496
        %v2498 = vsel %vm2474, %v2454, 0.0
        %v2499 = vadd.f32 %v2497, %v2498
        %v2500 = vsel %vm2474, %v2455, 0.0
        %v2501 = vadd.f32 %v2499, %v2500
        %v2502 = vsel %vm2474, %v2456, 0.0
        %v2503 = vadd.f32 %v2501, %v2502
        %v2504 = vsel %vm2474, %v2457, 0.0
        %v2505 = vadd.f32 %v2503, %v2504
        %v2506 = vsel %vm2474, %v2458, 0.0
        %v2507 = vadd.f32 %v2505, %v2506
        %v2508 = vsel %vm2474, %v2459, 0.0
        %v2509 = vadd.f32 %v2507, %v2508
        %v2510 = vsel %vm2474, %v2460, 0.0
        %v2511 = vadd.f32 %v2509, %v2510
        %v2512 = vsel %vm2474, %v2461, 0.0
        %v2513 = vadd.f32 %v2511, %v2512
        %v2514 = vsel %vm2474, %v2462, 0.0
        %v2515 = vadd.f32 %v2513, %v2514
        %v2516 = vsel %vm2474, %v2463, 0.0
        %v2517 = vadd.f32 %v2515, %v2516
        %v2518 = vsel %vm2474, %v2464, 0.0
        %v2519 = vadd.f32 %v2517, %v2518
        %v2520 = vsel %vm2474, %v2465, 0.0
        %v2521 = vadd.f32 %v2519, %v2520
        %v2522 = vsel %vm2474, %v2466, 0.0
        %v2523 = vadd.f32 %v2521, %v2522
        %v2524 = vsel %vm2474, %v2467, 0.0
        %v2525 = vadd.f32 %v2523, %v2524
        %v2526 = vsel %vm2474, %v2468, 0.0
        %v2527 = vadd.f32 %v2525, %v2526
        %v2528 = vsel %vm2474, %v2469, 0.0
        %v2529 = vadd.f32 %v2527, %v2528
        %v2530 = vsel %vm2474, %v2470, 0.0
        %v2531 = vadd.f32 %v2529, %v2530
        %v2532 = vsel %vm2474, %v2471, 0.0
        %v2533 = vadd.f32 %v2531, %v2532
        %v2534 = vsel %vm2474, %v2472, 0.0
        %v2535 = vadd.f32 %v2533, %v2534
        %v2536 = vsel %vm2474, %v2473, 0.0
        %v2537 = vadd.f32 %v2535, %v2536
        %v2538 = vrot.slane %v2537, 4
        %v2539 = vadd.f32 %v2537, %v2538
        %v2540 = vrot.slane %v2539, 2
        %v2541 = vadd.f32 %v2539, %v2540
        %v2542 = vrot.slane %v2541, 1
        %v2543 = vadd.f32 %v2541, %v2542
        %v2544 = vrcp.pop 256.0
        %v2545 = vmul.f32 256.0, %v2544
        %v2546 = vsub.f32 1.0, %v2545
        %v2547 = vmul.f32 %v2544, %v2546
        %v2548 = vadd.f32 %v2544, %v2547
        %vm2549 = vweird.f32 %v2544
        %v2550 = vsel %vm2549, %v2544, %v2548
        %v2551 = vmul.f32 %v2543, %v2550
        %v2552 = vpack.c.bf16 %v2551, %v2551
        %v2553 = vld [vmem:[%s7] sm:$0xf]
        %v2554 = vld [vmem:[%s7 + $0x4] sm:$0x3]
        %v2555 = vld [vmem:[%s8] sm:$0x1]
        %v2558 = vunpack.c.l.b16 %v2553
        %v2559 = vunpack.c.l.b16 %v2554
        %v2560 = vpack.c.b16 %v2559, %v2558
        %v2562 = vsel %vm2474, %v2552, 0
        %vm2564 = vcmask 1045504
        %v2566 = vsel %vm2564, %v2560, 0
        %2568 = vmatpush.bf16.msra.mxu0 0
        %2569 = vmatpush.bf16.msra.mxu0 0
        %2570 = vmatpush.bf16.msra.mxu0 0
        %2571 = vmatpush.bf16.msra.mxu0 0
        %2572 = vmatpush.bf16.msra.mxu0 0
        %2573 = vmatpush.bf16.msra.mxu0 0
        %2574 = vmatpush.bf16.msra.mxu0 0
        %2575 = vmatpush.bf16.msra.mxu0 %v2566
        %2576 = vmatmul.bf16.gmra.mxu0 %v2562
        %v2577 = vpop.f32.mrf.mxu0
        %v2578 = vadd.f32 %v2555, %v2577
        %v2579 = vpop.f32.mrf.mxu0
        %2580 = vdwg.mxu0
        %v2581 = vmax.f32 %v2578, 0.0
        %v2582 = vpack.c.bf16 %v2581, %v2581
        %v2583 = vld [vmem:[%s9] sm:$0x3]
        %v2584 = vld [vmem:[%s10] sm:$0x1]
        %vm2585 = vcmask 23552
        %v2587 = vsel %vm2585, %v2582, 0
        %vm2589 = vcmask 1040384
        %vm2590 = vcmask 1041408
        %v2591 = vsel %vm2589, 4294967295, 65535
        %v2592 = vsel %vm2590, %v2591, 0
        %v2594 = vand.u32 %v2583, %v2592
        %2596 = vmatpush.bf16.msra.mxu0 0
        %2597 = vmatpush.bf16.msra.mxu0 0
        %2598 = vmatpush.bf16.msra.mxu0 0
        %2599 = vmatpush.bf16.msra.mxu0 0
        %2600 = vmatpush.bf16.msra.mxu0 0
        %2601 = vmatpush.bf16.msra.mxu0 0
        %2602 = vmatpush.bf16.msra.mxu0 0
        %2603 = vmatpush.bf16.msra.mxu0 %v2594
        %2604 = vmatmul.bf16.gmra.mxu0 %v2587
        %v2605 = vpop.f32.mrf.mxu0
        %v2606 = vadd.f32 %v2584, %v2605
        %v2607 = vpop.f32.mrf.mxu0
        %2608 = vdwg.mxu0
        %v2609 = vadd.f32 %v2606, 3.0
        %v2610 = vmax.f32 %v2609, 0.0
        %v2611 = vmin.f32 %v2610, 6.0
        %v2612 = vmul.f32 %v2611, 0.16666667
        %v2613 = vperm.slane %v2612, 0
        %v2614 = vmul.f32 %v2442, %v2613
        %v2615 = vmul.f32 %v2443, %v2613
        %v2616 = vmul.f32 %v2444, %v2613
        %v2617 = vmul.f32 %v2445, %v2613
        %v2618 = vmul.f32 %v2446, %v2613
        %v2619 = vmul.f32 %v2447, %v2613
        %v2620 = vmul.f32 %v2448, %v2613
        %v2621 = vmul.f32 %v2449, %v2613
        %v2622 = vmul.f32 %v2450, %v2613
        %v2623 = vmul.f32 %v2451, %v2613
        %v2624 = vmul.f32 %v2452, %v2613
        %v2625 = vmul.f32 %v2453, %v2613
        %v2626 = vmul.f32 %v2454, %v2613
        %v2627 = vmul.f32 %v2455, %v2613
        %v2628 = vmul.f32 %v2456, %v2613
        %v2629 = vmul.f32 %v2457, %v2613
        %v2630 = vmul.f32 %v2458, %v2613
        %v2631 = vmul.f32 %v2459, %v2613
        %v2632 = vmul.f32 %v2460, %v2613
        %v2633 = vmul.f32 %v2461, %v2613
        %v2634 = vmul.f32 %v2462, %v2613
        %v2635 = vmul.f32 %v2463, %v2613
        %v2636 = vmul.f32 %v2464, %v2613
        %v2637 = vmul.f32 %v2465, %v2613
        %v2638 = vmul.f32 %v2466, %v2613
        %v2639 = vmul.f32 %v2467, %v2613
        %v2640 = vmul.f32 %v2468, %v2613
        %v2641 = vmul.f32 %v2469, %v2613
        %v2642 = vmul.f32 %v2470, %v2613
        %v2643 = vmul.f32 %v2471, %v2613
        %v2644 = vmul.f32 %v2472, %v2613
        %v2645 = vmul.f32 %v2473, %v2613
        %v2646 = vld [vmem:[%s511] sm:$0xf]
        %v2647 = vld [vmem:[%s511 + $0x4] sm:$0xf]
        %v2648 = vld [vmem:[%s511 + $0x8] sm:$0xf]
        %v2649 = vld [vmem:[%s511 + $0xc] sm:$0xf]
        %v2650 = vld [vmem:[%s511 + $0x10] sm:$0xf]
        %v2651 = vld [vmem:[%s511 + $0x14] sm:$0xf]
        %v2652 = vld [vmem:[%s511 + $0x18] sm:$0xf]
        %v2653 = vld [vmem:[%s511 + $0x1c] sm:$0xf]
        %v2654 = vld [vmem:[%s511 + $0x20] sm:$0xf]
        %v2655 = vld [vmem:[%s511 + $0x24] sm:$0xf]
        %v2656 = vld [vmem:[%s511 + $0x28] sm:$0xf]
        %v2657 = vld [vmem:[%s511 + $0x2c] sm:$0xf]
        %v2658 = vld [vmem:[%s511 + $0x30] sm:$0xf]
        %v2659 = vld [vmem:[%s511 + $0x34] sm:$0xf]
        %v2660 = vld [vmem:[%s511 + $0x38] sm:$0xf]
        %v2661 = vld [vmem:[%s511 + $0x3c] sm:$0xf]
        %v2662 = vld [vmem:[%s511 + $0x40] sm:$0xf]
        %v2663 = vld [vmem:[%s511 + $0x44] sm:$0xf]
        %v2664 = vld [vmem:[%s511 + $0x48] sm:$0xf]
        %v2665 = vld [vmem:[%s511 + $0x4c] sm:$0xf]
        %v2666 = vld [vmem:[%s511 + $0x50] sm:$0xf]
        %v2667 = vld [vmem:[%s511 + $0x54] sm:$0xf]
        %v2668 = vld [vmem:[%s511 + $0x58] sm:$0xf]
        %v2669 = vld [vmem:[%s511 + $0x5c] sm:$0xf]
        %v2670 = vld [vmem:[%s511 + $0x60] sm:$0xf]
        %v2671 = vld [vmem:[%s511 + $0x64] sm:$0xf]
        %v2672 = vld [vmem:[%s511 + $0x68] sm:$0xf]
        %v2673 = vld [vmem:[%s511 + $0x6c] sm:$0xf]
        %v2674 = vld [vmem:[%s511 + $0x70] sm:$0xf]
        %v2675 = vld [vmem:[%s511 + $0x74] sm:$0xf]
        %v2676 = vld [vmem:[%s511 + $0x78] sm:$0xf]
        %v2677 = vld [vmem:[%s511 + $0x7c] sm:$0xf]
        %v2678 = vld [vmem:[%s11] sm:$0xf]
        %v2679 = vld [vmem:[%s12] sm:$0x1]
        %v2681 = vperm.slane %v2679, 0
        %v2715 = vunpack.c.l.b16 %v2646
        %v2716 = vunpack.c.l.b16 %v2647
        %v2717 = vunpack.c.l.b16 %v2648
        %v2718 = vunpack.c.l.b16 %v2649
        %v2719 = vunpack.c.l.b16 %v2650
        %v2720 = vunpack.c.l.b16 %v2651
        %v2721 = vunpack.c.l.b16 %v2652
        %v2722 = vunpack.c.l.b16 %v2653
        %v2723 = vunpack.c.l.b16 %v2654
        %v2724 = vunpack.c.l.b16 %v2655
        %v2725 = vunpack.c.l.b16 %v2656
        %v2726 = vunpack.c.l.b16 %v2657
        %v2727 = vunpack.c.l.b16 %v2658
        %v2728 = vunpack.c.l.b16 %v2659
        %v2729 = vunpack.c.l.b16 %v2660
        %v2730 = vunpack.c.l.b16 %v2661
        %v2731 = vunpack.c.l.b16 %v2662
        %v2732 = vunpack.c.l.b16 %v2663
        %v2733 = vunpack.c.l.b16 %v2664
        %v2734 = vunpack.c.l.b16 %v2665
        %v2735 = vunpack.c.l.b16 %v2666
        %v2736 = vunpack.c.l.b16 %v2667
        %v2737 = vunpack.c.l.b16 %v2668
        %v2738 = vunpack.c.l.b16 %v2669
        %v2739 = vunpack.c.l.b16 %v2670
        %v2740 = vunpack.c.l.b16 %v2671
        %v2741 = vunpack.c.l.b16 %v2672
        %v2742 = vunpack.c.l.b16 %v2673
        %v2743 = vunpack.c.l.b16 %v2674
        %v2744 = vunpack.c.l.b16 %v2675
        %v2745 = vunpack.c.l.b16 %v2676
        %v2746 = vunpack.c.l.b16 %v2677
        %v2747 = vpack.c.b16 %v2716, %v2715
        %v2748 = vpack.c.b16 %v2718, %v2717
        %v2749 = vpack.c.b16 %v2720, %v2719
        %v2750 = vpack.c.b16 %v2722, %v2721
        %v2751 = vpack.c.b16 %v2724, %v2723
        %v2752 = vpack.c.b16 %v2726, %v2725
        %v2753 = vpack.c.b16 %v2728, %v2727
        %v2754 = vpack.c.b16 %v2730, %v2729
        %v2755 = vpack.c.b16 %v2732, %v2731
        %v2756 = vpack.c.b16 %v2734, %v2733
        %v2757 = vpack.c.b16 %v2736, %v2735
        %v2758 = vpack.c.b16 %v2738, %v2737
        %v2759 = vpack.c.b16 %v2740, %v2739
        %v2760 = vpack.c.b16 %v2742, %v2741
        %v2761 = vpack.c.b16 %v2744, %v2743
        %v2762 = vpack.c.b16 %v2746, %v2745
        %v2764 = vsel %vm715, %v2747, 0
        %v2767 = vsel %vm715, %v2748, 0
        %v2770 = vsel %vm715, %v2749, 0
        %v2773 = vsel %vm715, %v2750, 0
        %v2776 = vsel %vm715, %v2751, 0
        %v2779 = vsel %vm715, %v2752, 0
        %v2782 = vsel %vm715, %v2753, 0
        %v2785 = vsel %vm715, %v2754, 0
        %v2788 = vsel %vm715, %v2755, 0
        %v2791 = vsel %vm715, %v2756, 0
        %v2794 = vsel %vm715, %v2757, 0
        %v2797 = vsel %vm715, %v2758, 0
        %v2800 = vsel %vm715, %v2759, 0
        %v2803 = vsel %vm715, %v2760, 0
        %v2806 = vsel %vm715, %v2761, 0
        %v2809 = vsel %vm715, %v2762, 0
        %v2812 = vsel %vm764, %v2678, 0
        %2814 = vmatpush.bf16.msra.mxu0 0
        %2815 = vmatpush.bf16.msra.mxu0 0
        %2816 = vmatpush.bf16.msra.mxu0 0
        %2817 = vmatpush.bf16.msra.mxu0 0
        %2818 = vmatpush.bf16.msra.mxu0 0
        %2819 = vmatpush.bf16.msra.mxu0 0
        %2820 = vmatpush.bf16.msra.mxu0 0
        %2821 = vmatpush.bf16.msra.mxu0 %v2812
        %2822 = vmatmul.bf16.gmra.mxu0 %v2764
        %v2823 = vpop.f32.mrf.mxu0
        %v2824 = vadd.f32 %v2681, %v2823
        %v2825 = vpop.f32.mrf.mxu0
        %v2826 = vadd.f32 %v2681, %v2825
        %2827 = vmatmul.bf16.gmra.mxu0 %v2767
        %v2828 = vpop.f32.mrf.mxu0
        %v2829 = vadd.f32 %v2681, %v2828
        %v2830 = vpop.f32.mrf.mxu0
        %v2831 = vadd.f32 %v2681, %v2830
        %2832 = vmatmul.bf16.gmra.mxu0 %v2770
        %v2833 = vpop.f32.mrf.mxu0
        %v2834 = vadd.f32 %v2681, %v2833
        %v2835 = vpop.f32.mrf.mxu0
        %v2836 = vadd.f32 %v2681, %v2835
        %2837 = vmatmul.bf16.gmra.mxu0 %v2773
        %v2838 = vpop.f32.mrf.mxu0
        %v2839 = vadd.f32 %v2681, %v2838
        %v2840 = vpop.f32.mrf.mxu0
        %v2841 = vadd.f32 %v2681, %v2840
        %2842 = vmatmul.bf16.gmra.mxu0 %v2776
        %v2843 = vpop.f32.mrf.mxu0
        %v2844 = vadd.f32 %v2681, %v2843
        %v2845 = vpop.f32.mrf.mxu0
        %v2846 = vadd.f32 %v2681, %v2845
        %2847 = vmatmul.bf16.gmra.mxu0 %v2779
        %v2848 = vpop.f32.mrf.mxu0
        %v2849 = vadd.f32 %v2681, %v2848
        %v2850 = vpop.f32.mrf.mxu0
        %v2851 = vadd.f32 %v2681, %v2850
        %2852 = vmatmul.bf16.gmra.mxu0 %v2782
        %v2853 = vpop.f32.mrf.mxu0
        %v2854 = vadd.f32 %v2681, %v2853
        %v2855 = vpop.f32.mrf.mxu0
        %v2856 = vadd.f32 %v2681, %v2855
        %2857 = vmatmul.bf16.gmra.mxu0 %v2785
        %v2858 = vpop.f32.mrf.mxu0
        %v2859 = vadd.f32 %v2681, %v2858
        %v2860 = vpop.f32.mrf.mxu0
        %v2861 = vadd.f32 %v2681, %v2860
        %2862 = vmatmul.bf16.gmra.mxu0 %v2788
        %v2863 = vpop.f32.mrf.mxu0
        %v2864 = vadd.f32 %v2681, %v2863
        %v2865 = vpop.f32.mrf.mxu0
        %v2866 = vadd.f32 %v2681, %v2865
        %2867 = vmatmul.bf16.gmra.mxu0 %v2791
        %v2868 = vpop.f32.mrf.mxu0
        %v2869 = vadd.f32 %v2681, %v2868
        %v2870 = vpop.f32.mrf.mxu0
        %v2871 = vadd.f32 %v2681, %v2870
        %2872 = vmatmul.bf16.gmra.mxu0 %v2794
        %v2873 = vpop.f32.mrf.mxu0
        %v2874 = vadd.f32 %v2681, %v2873
        %v2875 = vpop.f32.mrf.mxu0
        %v2876 = vadd.f32 %v2681, %v2875
        %2877 = vmatmul.bf16.gmra.mxu0 %v2797
        %v2878 = vpop.f32.mrf.mxu0
        %v2879 = vadd.f32 %v2681, %v2878
        %v2880 = vpop.f32.mrf.mxu0
        %v2881 = vadd.f32 %v2681, %v2880
        %2882 = vmatmul.bf16.gmra.mxu0 %v2800
        %v2883 = vpop.f32.mrf.mxu0
        %v2884 = vadd.f32 %v2681, %v2883
        %v2885 = vpop.f32.mrf.mxu0
        %v2886 = vadd.f32 %v2681, %v2885
        %2887 = vmatmul.bf16.gmra.mxu0 %v2803
        %v2888 = vpop.f32.mrf.mxu0
        %v2889 = vadd.f32 %v2681, %v2888
        %v2890 = vpop.f32.mrf.mxu0
        %v2891 = vadd.f32 %v2681, %v2890
        %2892 = vmatmul.bf16.gmra.mxu0 %v2806
        %v2893 = vpop.f32.mrf.mxu0
        %v2894 = vadd.f32 %v2681, %v2893
        %v2895 = vpop.f32.mrf.mxu0
        %v2896 = vadd.f32 %v2681, %v2895
        %2897 = vmatmul.bf16.gmra.mxu0 %v2809
        %v2898 = vpop.f32.mrf.mxu0
        %v2899 = vadd.f32 %v2681, %v2898
        %v2900 = vpop.f32.mrf.mxu0
        %v2901 = vadd.f32 %v2681, %v2900
        %2902 = vdwg.mxu0
        %v2903 = vadd.f32 %v2614, %v2824
        %v2904 = vadd.f32 %v2615, %v2826
        %v2905 = vadd.f32 %v2616, %v2829
        %v2906 = vadd.f32 %v2617, %v2831
        %v2907 = vadd.f32 %v2618, %v2834
        %v2908 = vadd.f32 %v2619, %v2836
        %v2909 = vadd.f32 %v2620, %v2839
        %v2910 = vadd.f32 %v2621, %v2841
        %v2911 = vadd.f32 %v2622, %v2844
        %v2912 = vadd.f32 %v2623, %v2846
        %v2913 = vadd.f32 %v2624, %v2849
        %v2914 = vadd.f32 %v2625, %v2851
        %v2915 = vadd.f32 %v2626, %v2854
        %v2916 = vadd.f32 %v2627, %v2856
        %v2917 = vadd.f32 %v2628, %v2859
        %v2918 = vadd.f32 %v2629, %v2861
        %v2919 = vadd.f32 %v2630, %v2864
        %v2920 = vadd.f32 %v2631, %v2866
        %v2921 = vadd.f32 %v2632, %v2869
        %v2922 = vadd.f32 %v2633, %v2871
        %v2923 = vadd.f32 %v2634, %v2874
        %v2924 = vadd.f32 %v2635, %v2876
        %v2925 = vadd.f32 %v2636, %v2879
        %v2926 = vadd.f32 %v2637, %v2881
        %v2927 = vadd.f32 %v2638, %v2884
        %v2928 = vadd.f32 %v2639, %v2886
        %v2929 = vadd.f32 %v2640, %v2889
        %v2930 = vadd.f32 %v2641, %v2891
        %v2931 = vadd.f32 %v2642, %v2894
        %v2932 = vadd.f32 %v2643, %v2896
        %v2933 = vadd.f32 %v2644, %v2899
        %v2934 = vadd.f32 %v2645, %v2901
        %2935 = vst.msk [vmem:[%s536] sm:$0xff] %vm2474, %v2903
        %2936 = vst.msk [vmem:[%s536 + $0x8] sm:$0xff] %vm2474, %v2904
        %2937 = vst.msk [vmem:[%s536 + $0x10] sm:$0xff] %vm2474, %v2905
        %2938 = vst.msk [vmem:[%s536 + $0x18] sm:$0xff] %vm2474, %v2906
        %2939 = vst.msk [vmem:[%s536 + $0x20] sm:$0xff] %vm2474, %v2907
        %2940 = vst.msk [vmem:[%s536 + $0x28] sm:$0xff] %vm2474, %v2908
        %2941 = vst.msk [vmem:[%s536 + $0x30] sm:$0xff] %vm2474, %v2909
        %2942 = vst.msk [vmem:[%s536 + $0x38] sm:$0xff] %vm2474, %v2910
        %2943 = vst.msk [vmem:[%s536 + $0x40] sm:$0xff] %vm2474, %v2911
        %2944 = vst.msk [vmem:[%s536 + $0x48] sm:$0xff] %vm2474, %v2912
        %2945 = vst.msk [vmem:[%s536 + $0x50] sm:$0xff] %vm2474, %v2913
        %2946 = vst.msk [vmem:[%s536 + $0x58] sm:$0xff] %vm2474, %v2914
        %2947 = vst.msk [vmem:[%s536 + $0x60] sm:$0xff] %vm2474, %v2915
        %2948 = vst.msk [vmem:[%s536 + $0x68] sm:$0xff] %vm2474, %v2916
        %2949 = vst.msk [vmem:[%s536 + $0x70] sm:$0xff] %vm2474, %v2917
        %2950 = vst.msk [vmem:[%s536 + $0x78] sm:$0xff] %vm2474, %v2918
        %2951 = vst.msk [vmem:[%s536 + $0x80] sm:$0xff] %vm2474, %v2919
        %2952 = vst.msk [vmem:[%s536 + $0x88] sm:$0xff] %vm2474, %v2920
        %2953 = vst.msk [vmem:[%s536 + $0x90] sm:$0xff] %vm2474, %v2921
        %2954 = vst.msk [vmem:[%s536 + $0x98] sm:$0xff] %vm2474, %v2922
        %2955 = vst.msk [vmem:[%s536 + $0xa0] sm:$0xff] %vm2474, %v2923
        %2956 = vst.msk [vmem:[%s536 + $0xa8] sm:$0xff] %vm2474, %v2924
        %2957 = vst.msk [vmem:[%s536 + $0xb0] sm:$0xff] %vm2474, %v2925
        %2958 = vst.msk [vmem:[%s536 + $0xb8] sm:$0xff] %vm2474, %v2926
        %2959 = vst.msk [vmem:[%s536 + $0xc0] sm:$0xff] %vm2474, %v2927
        %2960 = vst.msk [vmem:[%s536 + $0xc8] sm:$0xff] %vm2474, %v2928
        %2961 = vst.msk [vmem:[%s536 + $0xd0] sm:$0xff] %vm2474, %v2929
        %2962 = vst.msk [vmem:[%s536 + $0xd8] sm:$0xff] %vm2474, %v2930
        %2963 = vst.msk [vmem:[%s536 + $0xe0] sm:$0xff] %vm2474, %v2931
        %2964 = vst.msk [vmem:[%s536 + $0xe8] sm:$0xff] %vm2474, %v2932
        %2965 = vst.msk [vmem:[%s536 + $0xf0] sm:$0xff] %vm2474, %v2933
        %2966 = vst.msk [vmem:[%s536 + $0xf8] sm:$0xff] %vm2474, %v2934
      $region88: #{tpu_custom_call.1} parent=71 // pred_fallthru
        _
      %p2967 = scmp.lt.s32.totalorder %s28, 1
      %s2968 = scalar_select %p2967, %s28, 1
      %s2969 = smul.addr %s2968, 32
      %s2970 = smul.addr %s2969, 8
      %s2971 = scalar_lea.vmem %s13, %s2970
      // Predicated region
      $region89: #{tpu_custom_call.1} parent=71 // pred_check
        %p2972 = pneg %p357
      $region90: #{tpu_custom_call.1} parent=71 // pred_check_branch
        %2974 = sbr.rel (%p2972) target = $region92
      $region91: #{tpu_custom_call.1} parent=71 // pred_region
        _
      $region92: #{tpu_custom_call.1} parent=71 // pred_fallthru
        _
    $region72: #{tpu_custom_call.1} parent=5 // pred_fallthru
      _
    %p2975 = scmp.le.s32.totalorder 2, %s19
    // Predicated region
    $region93: #{tpu_custom_call.1} parent=5 // pred_check
      %p2976 = pneg %p2975
    $region94: #{tpu_custom_call.1} parent=5 // pred_check_branch
      %2978 = sbr.rel (%p2976) target = $region96
    $region95: #{tpu_custom_call.1} parent=5 // pred_region
      %s2979 = ssub.s32 %s19, 2
      // Predicated region
      $region97: #{tpu_custom_call.1} parent=95 // pred_check
        %p2980 = pneg %p363
      $region98: #{tpu_custom_call.1} parent=95 // pred_check_branch
        %2982 = sbr.rel (%p2980) target = $region100
      $region99: #{tpu_custom_call.1} parent=95 // pred_region
        %p2983 = scmp.lt.s32.totalorder %s30, 1
        %s2984 = scalar_select %p2983, %s30, 1
        %s2985 = smul.addr %s2984, 32
        %s2986 = smul.addr %s2985, 8
        %s2987 = scalar_lea.vmem %s13, %s2986
      $region100: #{tpu_custom_call.1} parent=95 // pred_fallthru
        _
    $region96: #{tpu_custom_call.1} parent=5 // pred_fallthru
      _
  $region6: #{tpu_custom_call.1} parent=0 // loop_footer
    %s23 = sadd.s32 1, %s19
  $region7: #{tpu_custom_call.1} parent=0 // loop_footer_branch
    %18 = sbr.rel target = $region3
  $region8: #{tpu_custom_call.1} parent=0 // loop_exit
    _

</llo_original>
